<compile_context>
chip_gen: v7x
topology: tpu7x:2x2x1
jax: 0.10.0
libtpu: 0.0.40
codegen_flags: <defaults>
</compile_context>

<pallas_src>
import numpy as np
import jax
import jax.numpy as jnp
from jax.experimental import pallas as pl
from jax.experimental.pallas import tpu as pltpu

C_FEAT = 512          # resnet18 final channel count -> hidden_dim = 2 * 512 = 1024
NUM_CLASS = 28        # config['setting']['num_class'] (AVE dataset)
FPS = 2
OUT_PAD = -(-NUM_CLASS // 128) * 128   # lane-dense padded class dim (= 128)


def _tiny_linear(pooled, w, b):
    """pooled (TB, C) @ w (C, F) + b with C tiny (1 or fps*3).

    Unrolled as C lane/sublane broadcast multiplies on the VPU (f32); avoids a
    degenerate tiny-K MXU matmul.  Cost is negligible after pool-first."""
    c = w.shape[0]
    acc = pooled[:, 0:1] * w[0:1, :]
    for k in range(1, c):
        acc = acc + pooled[:, k:k + 1] * w[k:k + 1, :]
    return acc + b


def _ave_fused_kernel(audio_ref, video_ref,
                      aw_ref, ab_ref, vw_ref, vb_ref,
                      w1a_ref, w1v_ref, b1_ref,
                      w23_ref, b23_ref,
                      out_ref):
    # ---- AudioEncoder: 1x1-conv backbone stand-in + adaptive_avg_pool2d(1) ----
    # Lane-dense sum over H*W; the 1/(H*W) scale is folded into aw_ref.
    a_pool = jnp.sum(audio_ref[...], axis=-1, keepdims=True)     # (TB, 1)
    a_feat = _tiny_linear(a_pool, aw_ref[...], ab_ref[...])      # (TB, 512) f32

    # ---- VideoEncoder: per-frame backbone + adaptive_avg_pool3d over (fps,H,W)
    # video_ref is (TB, fps*3, H*W); vw rows are tile(vw,(fps,1)) scaled by
    # 1/(fps*H*W), so the projection also performs the exact frame average.
    v_pool = jnp.sum(video_ref[...], axis=-1)                    # (TB, fps*3)
    v_feat = _tiny_linear(v_pool, vw_ref[...], vb_ref[...])      # (TB, 512) f32

    # ---- cls head: cat((a, v), 1) @ W1 == a @ W1[:512] + v @ W1[512:] ----
    h1 = (jnp.dot(a_feat.astype(jnp.bfloat16), w1a_ref[...],
                  preferred_element_type=jnp.float32)
          + jnp.dot(v_feat.astype(jnp.bfloat16), w1v_ref[...],
                    preferred_element_type=jnp.float32)
          + b1_ref[...])                                         # Linear(1024,256)
    h1 = jnp.maximum(h1, 0.0)                                    # ReLU
    # Linear(256,64) and Linear(64,num_class) folded (no activation between).
    out_ref[...] = (jnp.dot(h1.astype(jnp.bfloat16), w23_ref[...],
                            preferred_element_type=jnp.float32)
                    + b23_ref[...])


def _padded_vmem_bytes(shape, dtype):
    """VMEM footprint of a rank>=2 array with sublane/lane tile padding."""
    itemsize = np.dtype(dtype).itemsize
    sub = 8 * max(1, 4 // itemsize)          # 8 for f32, 16 for bf16
    lead = 1
    for d in shape[:-2]:
        lead *= int(d)
    sl = -(-int(shape[-2]) // sub) * sub
    ln = -(-int(shape[-1]) // 128) * 128
    return lead * sl * ln * itemsize


def _pick_batch_tile(B):
    """Batch tile that satisfies the (8,128) constraint on the output block."""
    if B % 8 == 0:
        for t in (64, 32, 16, 8):
            if B % t == 0:
                return t
    return B


def ave_classifier_forward(audio, video, params, fps=FPS):
    """audio: (B, 1, H, W);  video: (B*fps, 3, H, W)  ->  (B, num_class)."""
    B, Ca, Ha, Wa = audio.shape
    Bf, Cv, Hv, Wv = video.shape
    assert Ca == 1 and Bf == B * fps
    HWa = Ha * Wa
    HWv = Hv * Wv

    # Contiguous NCHW -> lane-dense rows: metadata-only reshapes.
    audio2 = audio.reshape(B, HWa)
    video3 = video.reshape(B, fps * Cv, HWv)

    TB = _pick_batch_tile(B)
    grid = (B // TB,)

    operands = (audio2, video3,
                params["aw"], params["ab"], params["vw_exp"], params["vb"],
                params["w1a"], params["w1v"], params["b1"],
                params["w23"], params["b23"])

    def _pinned(x):
        return pl.BlockSpec(x.shape, lambda i: (0,) * x.ndim)

    in_specs = [
        pl.BlockSpec((TB, HWa), lambda i: (i, 0)),
        pl.BlockSpec((TB, fps * Cv, HWv), lambda i: (i, 0, 0)),
    ] + [_pinned(x) for x in operands[2:]]
    out_specs = pl.BlockSpec((TB, OUT_PAD), lambda i: (i, 0))

    # VMEM budget: double-buffered per-tile blocks + resident weights + headroom,
    # clamped to this generation's physical VMEM (64 MiB v7x, 128 MiB v5e/v6e).
    blk_bytes = (_padded_vmem_bytes((TB, HWa), jnp.float32)
                 + _padded_vmem_bytes((TB, fps * Cv, HWv), jnp.float32)
                 + _padded_vmem_bytes((TB, OUT_PAD), jnp.float32))
    w_bytes = sum(_padded_vmem_bytes(x.shape, x.dtype) for x in operands[2:])
    try:
        vmem_cap = int(pltpu.get_tpu_info().vmem_capacity_bytes)
    except Exception:
        vmem_cap = 64 << 20
    vmem_limit = min(max(2 * (blk_bytes + w_bytes) + (2 << 20), 8 << 20),
                     int(vmem_cap * 0.85))

    out_padded = pl.pallas_call(
        _ave_fused_kernel,
        out_shape=jax.ShapeDtypeStruct((B, OUT_PAD), jnp.float32),
        grid=grid,
        in_specs=in_specs,
        out_specs=out_specs,
        compiler_params=pltpu.CompilerParams(
            dimension_semantics=("parallel",),
            vmem_limit_bytes=vmem_limit),
    )(*operands)
    return out_padded[:, :NUM_CLASS]


# --------------------------------------------------------------------------
# Parameter construction (deterministic, PyTorch-Linear-style uniform init).
# --------------------------------------------------------------------------
def _uniform(key, shape, fan_in):
    bound = 1.0 / jnp.sqrt(jnp.float32(fan_in))
    return jax.random.uniform(key, shape, jnp.float32, -bound, bound)


def make_params(key, fps=FPS, audio_hw=(16, 16), video_hw=(16, 16)):
    ks = jax.random.split(key, 10)
    hidden = 2 * C_FEAT  # 1024 for resnet18/34 backbones
    inv_a = 1.0 / float(audio_hw[0] * audio_hw[1])          # audio avg-pool scale
    inv_v = 1.0 / float(video_hw[0] * video_hw[1] * fps)    # video (fps,H,W) scale

    vw = _uniform(ks[2], (3, C_FEAT), 3)
    w1 = _uniform(ks[4], (hidden, 256), hidden)
    w2 = _uniform(ks[6], (256, 64), 256)
    b2 = _uniform(ks[7], (1, 64), 256)
    w3 = _uniform(ks[8], (64, NUM_CLASS), 64)
    b3 = _uniform(ks[9], (1, NUM_CLASS), 64)
    w3p = jnp.pad(w3, ((0, 0), (0, OUT_PAD - NUM_CLASS)))
    b3p = jnp.pad(b3, ((0, 0), (0, OUT_PAD - NUM_CLASS)))

    return {
        # backbone stand-ins (1x1 conv), channels-last, pool scales folded in
        "aw": _uniform(ks[0], (1, C_FEAT), 1) * inv_a,
        "ab": _uniform(ks[1], (1, C_FEAT), 1),
        "vw_exp": jnp.tile(vw, (fps, 1)) * inv_v,   # row (f*3+c) = vw[c]/(fps*H*W)
        "vb": _uniform(ks[3], (1, C_FEAT), 3),
        # cls head: Linear(1024,256) -> ReLU -> Linear(256,64) -> Linear(64,nc)
        # w1 pre-split (cat trick) in bf16; last two linears folded + padded.
        "w1a": w1[:C_FEAT].astype(jnp.bfloat16),
        "w1v": w1[C_FEAT:].astype(jnp.bfloat16),
        "b1": _uniform(ks[5], (1, 256), hidden),
        "w23": jnp.dot(w2, w3p).astype(jnp.bfloat16),
        "b23": jnp.dot(b2, w3p) + b3p,
    }


def _reference(audio, video, params, fps=FPS):
    """Pure-JAX reference of the same (stand-in-backbone) forward pass."""
    B = audio.shape[0]
    a_pool = jnp.sum(audio.reshape(B, -1), axis=-1, keepdims=True)
    v_pool = jnp.sum(video.reshape(B, fps * 3, -1), axis=-1)
    a_feat = a_pool @ params["aw"] + params["ab"]
    v_feat = v_pool @ params["vw_exp"] + params["vb"]
    w1 = jnp.concatenate([params["w1a"].astype(jnp.float32),
                          params["w1v"].astype(jnp.float32)], axis=0)
    feat = jnp.concatenate([a_feat, v_feat], axis=1)
    h1 = jnp.maximum(feat @ w1 + params["b1"], 0.0)
    out = h1 @ params["w23"].astype(jnp.float32) + params["b23"]
    return out[:, :NUM_CLASS]


if __name__ == "__main__":
    key = jax.random.PRNGKey(0)
    k_audio, k_video, k_params = jax.random.split(key, 3)

    B, H, W = 2, 16, 16
    audio = jax.random.normal(k_audio, (B, 1, H, W), jnp.float32)          # spectrogram, NCHW
    video = jax.random.normal(k_video, (B * FPS, 3, H, W), jnp.float32)    # frames, NCHW

    params = make_params(k_params, fps=FPS, audio_hw=(H, W), video_hw=(H, W))

    out = ave_classifier_forward(audio, video, params, fps=FPS)
    out = jax.block_until_ready(out)
    assert out.shape == (B, NUM_CLASS) and out.dtype == jnp.float32

    ref = _reference(audio, video, params, fps=FPS)
    max_err = float(jnp.max(jnp.abs(out - ref)))
    assert max_err < 1e-1, f"kernel vs reference mismatch: {max_err}"
    print("KERNEL_OK")
</pallas_src>

<mosaic_0001>
module attributes {stable_mosaic.version = 11 : i64} {
  func.func @_ave_fused_kernel(%arg0: i32, %arg1: memref<2x256xf32, #tpu.memory_space<vmem>>, %arg2: memref<2x6x256xf32, #tpu.memory_space<vmem>>, %arg3: memref<1x512xf32, #tpu.memory_space<vmem>>, %arg4: memref<1x512xf32, #tpu.memory_space<vmem>>, %arg5: memref<6x512xf32, #tpu.memory_space<vmem>>, %arg6: memref<1x512xf32, #tpu.memory_space<vmem>>, %arg7: memref<512x256xbf16, #tpu.memory_space<vmem>>, %arg8: memref<512x256xbf16, #tpu.memory_space<vmem>>, %arg9: memref<1x256xf32, #tpu.memory_space<vmem>>, %arg10: memref<256x128xbf16, #tpu.memory_space<vmem>>, %arg11: memref<1x128xf32, #tpu.memory_space<vmem>>, %arg12: memref<2x128xf32, #tpu.memory_space<vmem>>) attributes {dimension_semantics = [#tpu.dimension_semantics<parallel>], iteration_bounds = array<i64: 1>, scalar_prefetch = 0 : i64, scratch_operands = 0 : i64, tpu.core_type = #tpu.core_type<tc>, window_params = [{transform_indices = @transform_0, window_bounds = array<i64: 2, 256>}, {transform_indices = @transform_1, window_bounds = array<i64: 2, 6, 256>}, {pipeline_mode = #tpu.pipeline_mode<synchronous>, transform_indices = @transform_2, window_bounds = array<i64: 1, 512>}, {pipeline_mode = #tpu.pipeline_mode<synchronous>, transform_indices = @transform_3, window_bounds = array<i64: 1, 512>}, {pipeline_mode = #tpu.pipeline_mode<synchronous>, transform_indices = @transform_4, window_bounds = array<i64: 6, 512>}, {pipeline_mode = #tpu.pipeline_mode<synchronous>, transform_indices = @transform_5, window_bounds = array<i64: 1, 512>}, {pipeline_mode = #tpu.pipeline_mode<synchronous>, transform_indices = @transform_6, window_bounds = array<i64: 512, 256>}, {pipeline_mode = #tpu.pipeline_mode<synchronous>, transform_indices = @transform_7, window_bounds = array<i64: 512, 256>}, {pipeline_mode = #tpu.pipeline_mode<synchronous>, transform_indices = @transform_8, window_bounds = array<i64: 1, 256>}, {pipeline_mode = #tpu.pipeline_mode<synchronous>, transform_indices = @transform_9, window_bounds = array<i64: 256, 128>}, {pipeline_mode = #tpu.pipeline_mode<synchronous>, transform_indices = @transform_10, window_bounds = array<i64: 1, 128>}, {transform_indices = @transform_11, window_bounds = array<i64: 2, 128>}]} {
    %c0 = arith.constant 0 : index
    %c0_0 = arith.constant 0 : index
    %0 = vector.load %arg1[%c0, %c0_0] : memref<2x256xf32, #tpu.memory_space<vmem>>, vector<2x256xf32>
    %cst = arith.constant dense<0.000000e+00> : vector<2xf32>
    %1 = vector.multi_reduction <add>, %0, %cst [1] : vector<2x256xf32> to vector<2xf32>
    %2 = vector.shape_cast %1 : vector<2xf32> to vector<2x1xf32>
    %c0_1 = arith.constant 0 : index
    %c0_2 = arith.constant 0 : index
    %3 = vector.load %arg3[%c0_1, %c0_2] : memref<1x512xf32, #tpu.memory_space<vmem>>, vector<1x512xf32>
    %c0_3 = arith.constant 0 : index
    %c0_4 = arith.constant 0 : index
    %4 = vector.load %arg4[%c0_3, %c0_4] : memref<1x512xf32, #tpu.memory_space<vmem>>, vector<1x512xf32>
    %5 = vector.broadcast %2 : vector<2x1xf32> to vector<2x512xf32>
    %6 = vector.broadcast %3 : vector<1x512xf32> to vector<2x512xf32>
    %7 = arith.mulf %5, %6 : vector<2x512xf32>
    %8 = vector.broadcast %4 : vector<1x512xf32> to vector<2x512xf32>
    %9 = arith.addf %7, %8 : vector<2x512xf32>
    %c0_5 = arith.constant 0 : index
    %c0_6 = arith.constant 0 : index
    %c0_7 = arith.constant 0 : index
    %10 = vector.load %arg2[%c0_5, %c0_6, %c0_7] : memref<2x6x256xf32, #tpu.memory_space<vmem>>, vector<2x6x256xf32>
    %cst_8 = arith.constant dense<0.000000e+00> : vector<2x6xf32>
    %11 = vector.multi_reduction <add>, %10, %cst_8 [2] : vector<2x6x256xf32> to vector<2x6xf32>
    %c0_9 = arith.constant 0 : index
    %c0_10 = arith.constant 0 : index
    %12 = vector.load %arg5[%c0_9, %c0_10] : memref<6x512xf32, #tpu.memory_space<vmem>>, vector<6x512xf32>
    %c0_11 = arith.constant 0 : index
    %c0_12 = arith.constant 0 : index
    %13 = vector.load %arg6[%c0_11, %c0_12] : memref<1x512xf32, #tpu.memory_space<vmem>>, vector<1x512xf32>
    %14 = vector.extract_strided_slice %11 {offsets = [0, 0], sizes = [2, 1], strides = [1, 1]} : vector<2x6xf32> to vector<2x1xf32>
    %15 = vector.extract_strided_slice %12 {offsets = [0, 0], sizes = [1, 512], strides = [1, 1]} : vector<6x512xf32> to vector<1x512xf32>
    %16 = vector.broadcast %14 : vector<2x1xf32> to vector<2x512xf32>
    %17 = vector.broadcast %15 : vector<1x512xf32> to vector<2x512xf32>
    %18 = arith.mulf %16, %17 : vector<2x512xf32>
    %19 = vector.extract_strided_slice %11 {offsets = [0, 1], sizes = [2, 1], strides = [1, 1]} : vector<2x6xf32> to vector<2x1xf32>
    %20 = vector.extract_strided_slice %12 {offsets = [1, 0], sizes = [1, 512], strides = [1, 1]} : vector<6x512xf32> to vector<1x512xf32>
    %21 = vector.broadcast %19 : vector<2x1xf32> to vector<2x512xf32>
    %22 = vector.broadcast %20 : vector<1x512xf32> to vector<2x512xf32>
    %23 = arith.mulf %21, %22 : vector<2x512xf32>
    %24 = arith.addf %18, %23 : vector<2x512xf32>
    %25 = vector.extract_strided_slice %11 {offsets = [0, 2], sizes = [2, 1], strides = [1, 1]} : vector<2x6xf32> to vector<2x1xf32>
    %26 = vector.extract_strided_slice %12 {offsets = [2, 0], sizes = [1, 512], strides = [1, 1]} : vector<6x512xf32> to vector<1x512xf32>
    %27 = vector.broadcast %25 : vector<2x1xf32> to vector<2x512xf32>
    %28 = vector.broadcast %26 : vector<1x512xf32> to vector<2x512xf32>
    %29 = arith.mulf %27, %28 : vector<2x512xf32>
    %30 = arith.addf %24, %29 : vector<2x512xf32>
    %31 = vector.extract_strided_slice %11 {offsets = [0, 3], sizes = [2, 1], strides = [1, 1]} : vector<2x6xf32> to vector<2x1xf32>
    %32 = vector.extract_strided_slice %12 {offsets = [3, 0], sizes = [1, 512], strides = [1, 1]} : vector<6x512xf32> to vector<1x512xf32>
    %33 = vector.broadcast %31 : vector<2x1xf32> to vector<2x512xf32>
    %34 = vector.broadcast %32 : vector<1x512xf32> to vector<2x512xf32>
    %35 = arith.mulf %33, %34 : vector<2x512xf32>
    %36 = arith.addf %30, %35 : vector<2x512xf32>
    %37 = vector.extract_strided_slice %11 {offsets = [0, 4], sizes = [2, 1], strides = [1, 1]} : vector<2x6xf32> to vector<2x1xf32>
    %38 = vector.extract_strided_slice %12 {offsets = [4, 0], sizes = [1, 512], strides = [1, 1]} : vector<6x512xf32> to vector<1x512xf32>
    %39 = vector.broadcast %37 : vector<2x1xf32> to vector<2x512xf32>
    %40 = vector.broadcast %38 : vector<1x512xf32> to vector<2x512xf32>
    %41 = arith.mulf %39, %40 : vector<2x512xf32>
    %42 = arith.addf %36, %41 : vector<2x512xf32>
    %43 = vector.extract_strided_slice %11 {offsets = [0, 5], sizes = [2, 1], strides = [1, 1]} : vector<2x6xf32> to vector<2x1xf32>
    %44 = vector.extract_strided_slice %12 {offsets = [5, 0], sizes = [1, 512], strides = [1, 1]} : vector<6x512xf32> to vector<1x512xf32>
    %45 = vector.broadcast %43 : vector<2x1xf32> to vector<2x512xf32>
    %46 = vector.broadcast %44 : vector<1x512xf32> to vector<2x512xf32>
    %47 = arith.mulf %45, %46 : vector<2x512xf32>
    %48 = arith.addf %42, %47 : vector<2x512xf32>
    %49 = vector.broadcast %13 : vector<1x512xf32> to vector<2x512xf32>
    %50 = arith.addf %48, %49 : vector<2x512xf32>
    %51 = arith.truncf %9 : vector<2x512xf32> to vector<2x512xbf16>
    %c0_13 = arith.constant 0 : index
    %c0_14 = arith.constant 0 : index
    %52 = vector.load %arg7[%c0_13, %c0_14] : memref<512x256xbf16, #tpu.memory_space<vmem>>, vector<512x256xbf16>
    %cst_15 = arith.constant dense<0.000000e+00> : vector<2x256xf32>
    %53 = tpu.matmul %51, %52, %cst_15 {dimension_numbers = #tpu.dot_dimension_numbers<[1], [0], [0], [1], [0, 0, 1, 1], [], []>} : vector<2x512xbf16>, vector<512x256xbf16>, vector<2x256xf32> -> vector<2x256xf32>
    %54 = arith.truncf %50 : vector<2x512xf32> to vector<2x512xbf16>
    %c0_16 = arith.constant 0 : index
    %c0_17 = arith.constant 0 : index
    %55 = vector.load %arg8[%c0_16, %c0_17] : memref<512x256xbf16, #tpu.memory_space<vmem>>, vector<512x256xbf16>
    %cst_18 = arith.constant dense<0.000000e+00> : vector<2x256xf32>
    %56 = tpu.matmul %54, %55, %cst_18 {dimension_numbers = #tpu.dot_dimension_numbers<[1], [0], [0], [1], [0, 0, 1, 1], [], []>} : vector<2x512xbf16>, vector<512x256xbf16>, vector<2x256xf32> -> vector<2x256xf32>
    %57 = arith.addf %53, %56 : vector<2x256xf32>
    %c0_19 = arith.constant 0 : index
    %c0_20 = arith.constant 0 : index
    %58 = vector.load %arg9[%c0_19, %c0_20] : memref<1x256xf32, #tpu.memory_space<vmem>>, vector<1x256xf32>
    %59 = vector.broadcast %58 : vector<1x256xf32> to vector<2x256xf32>
    %60 = arith.addf %57, %59 : vector<2x256xf32>
    %cst_21 = arith.constant 0.000000e+00 : f32
    %61 = vector.broadcast %cst_21 : f32 to vector<2x256xf32>
    %62 = arith.maximumf %60, %61 : vector<2x256xf32>
    %63 = arith.truncf %62 : vector<2x256xf32> to vector<2x256xbf16>
    %c0_22 = arith.constant 0 : index
    %c0_23 = arith.constant 0 : index
    %64 = vector.load %arg10[%c0_22, %c0_23] : memref<256x128xbf16, #tpu.memory_space<vmem>>, vector<256x128xbf16>
    %cst_24 = arith.constant dense<0.000000e+00> : vector<2x128xf32>
    %65 = tpu.matmul %63, %64, %cst_24 {dimension_numbers = #tpu.dot_dimension_numbers<[1], [0], [0], [1], [0, 0, 1, 1], [], []>} : vector<2x256xbf16>, vector<256x128xbf16>, vector<2x128xf32> -> vector<2x128xf32>
    %c0_25 = arith.constant 0 : index
    %c0_26 = arith.constant 0 : index
    %66 = vector.load %arg11[%c0_25, %c0_26] : memref<1x128xf32, #tpu.memory_space<vmem>>, vector<1x128xf32>
    %67 = vector.broadcast %66 : vector<1x128xf32> to vector<2x128xf32>
    %68 = arith.addf %65, %67 : vector<2x128xf32>
    %c0_27 = arith.constant 0 : index
    %c0_28 = arith.constant 0 : index
    %69 = vector.load %arg12[%c0_27, %c0_28] : memref<2x128xf32, #tpu.memory_space<vmem>>, vector<2x128xf32>
    tpu.vector_store %arg12[%c0_27, %c0_28], %68 {strides = array<i32>} : memref<2x128xf32, #tpu.memory_space<vmem>>, vector<2x128xf32>,
    return
  }
  func.func @transform_0(%arg0: i32) -> (i32, i32) {
    %c0_i32 = arith.constant 0 : i32
    %c0_i32_0 = arith.constant 0 : i32
    return %arg0, %c0_i32 : i32, i32
  }
  func.func @transform_1(%arg0: i32) -> (i32, i32, i32) {
    %c0_i32 = arith.constant 0 : i32
    %c0_i32_0 = arith.constant 0 : i32
    %c0_i32_1 = arith.constant 0 : i32
    return %arg0, %c0_i32, %c0_i32_0 : i32, i32, i32
  }
  func.func @transform_2(%arg0: i32) -> (i32, i32) {
    %c0_i32 = arith.constant 0 : i32
    %c0_i32_0 = arith.constant 0 : i32
    %c0_i32_1 = arith.constant 0 : i32
    return %c0_i32, %c0_i32_0 : i32, i32
  }
  func.func @transform_3(%arg0: i32) -> (i32, i32) {
    %c0_i32 = arith.constant 0 : i32
    %c0_i32_0 = arith.constant 0 : i32
    %c0_i32_1 = arith.constant 0 : i32
    return %c0_i32, %c0_i32_0 : i32, i32
  }
  func.func @transform_4(%arg0: i32) -> (i32, i32) {
    %c0_i32 = arith.constant 0 : i32
    %c0_i32_0 = arith.constant 0 : i32
    %c0_i32_1 = arith.constant 0 : i32
    return %c0_i32, %c0_i32_0 : i32, i32
  }
  func.func @transform_5(%arg0: i32) -> (i32, i32) {
    %c0_i32 = arith.constant 0 : i32
    %c0_i32_0 = arith.constant 0 : i32
    %c0_i32_1 = arith.constant 0 : i32
    return %c0_i32, %c0_i32_0 : i32, i32
  }
  func.func @transform_6(%arg0: i32) -> (i32, i32) {
    %c0_i32 = arith.constant 0 : i32
    %c0_i32_0 = arith.constant 0 : i32
    %c0_i32_1 = arith.constant 0 : i32
    return %c0_i32, %c0_i32_0 : i32, i32
  }
  func.func @transform_7(%arg0: i32) -> (i32, i32) {
    %c0_i32 = arith.constant 0 : i32
    %c0_i32_0 = arith.constant 0 : i32
    %c0_i32_1 = arith.constant 0 : i32
    return %c0_i32, %c0_i32_0 : i32, i32
  }
  func.func @transform_8(%arg0: i32) -> (i32, i32) {
    %c0_i32 = arith.constant 0 : i32
    %c0_i32_0 = arith.constant 0 : i32
    %c0_i32_1 = arith.constant 0 : i32
    return %c0_i32, %c0_i32_0 : i32, i32
  }
  func.func @transform_9(%arg0: i32) -> (i32, i32) {
    %c0_i32 = arith.constant 0 : i32
    %c0_i32_0 = arith.constant 0 : i32
    %c0_i32_1 = arith.constant 0 : i32
    return %c0_i32, %c0_i32_0 : i32, i32
  }
  func.func @transform_10(%arg0: i32) -> (i32, i32) {
    %c0_i32 = arith.constant 0 : i32
    %c0_i32_0 = arith.constant 0 : i32
    %c0_i32_1 = arith.constant 0 : i32
    return %c0_i32, %c0_i32_0 : i32, i32
  }
  func.func @transform_11(%arg0: i32) -> (i32, i32) {
    %c0_i32 = arith.constant 0 : i32
    %c0_i32_0 = arith.constant 0 : i32
    return %arg0, %c0_i32 : i32, i32
  }
}

</mosaic_0001>

<llo_original>
// kernel: tpu_custom_call.1
$region0: #{tpu_custom_call.1}
  #allocation0 [shape = 'u32[]', space=smem, size = 0x4, offset = 0x4, fixed_abs, tag = 'smem constant byte address 0x4 - core index']
  #allocation1 [shape = 'u32[144,128]{1,0:T(1,128)}', space=vmem, size = 0x12000, scoped, tag = 'internal scratch']
  %s0 = inlined_call_operand.vmem [shape: f32[2,256], index: 0, kind: input, shape index: {}]
  %s1 = inlined_call_operand.vmem [shape: f32[2,6,256], index: 1, kind: input, shape index: {}]
  %s2 = inlined_call_operand.vmem [shape: f32[1,512], index: 2, kind: input, shape index: {}]
  %s3 = inlined_call_operand.vmem [shape: f32[1,512], index: 3, kind: input, shape index: {}]
  %s4 = inlined_call_operand.vmem [shape: f32[6,512], index: 4, kind: input, shape index: {}]
  %s5 = inlined_call_operand.vmem [shape: f32[1,512], index: 5, kind: input, shape index: {}]
  %s6 = inlined_call_operand.hbm [shape: bf16[512,256], index: 6, kind: input, shape index: {}]
  %s7 = inlined_call_operand.hbm [shape: bf16[512,256], index: 7, kind: input, shape index: {}]
  %s8 = inlined_call_operand.vmem [shape: f32[1,256], index: 8, kind: input, shape index: {}]
  %s9 = inlined_call_operand.hbm [shape: bf16[256,128], index: 9, kind: input, shape index: {}]
  %s10 = inlined_call_operand.vmem [shape: f32[1,128], index: 10, kind: input, shape index: {}]
  %s11 = inlined_call_operand.hbm [shape: f32[2,128], index: 11, kind: output, shape index: {}]
  %s12 = sld [smem:[#allocation0]]
  $region66: #{tpu_custom_call.1} parent=0
    _
  %s14 = ssub.s32 1, %s12
  %s15 = scalar_select 0, %s14, %s12
  $region1: #{tpu_custom_call.1} parent=0
    #allocation2 [shape = 'u8[262144]{0}', space=vmem, size = 0x40000, scoped, tag = 'input window, operand 6, single buffered']
    #allocation3 [shape = 's32[1]{0}', space=sflag, size = 0x4, scoped, tag = 'scoped memory for tpu_custom_call.1']
    #allocation4 [shape = 's32[1]{0}', space=sflag, size = 0x4, scoped, tag = 'scoped memory for tpu_custom_call.1']
    #allocation5 [shape = 'u8[262144]{0}', space=vmem, size = 0x40000, scoped, tag = 'input window, operand 7, single buffered']
    #allocation6 [shape = 's32[1]{0}', space=sflag, size = 0x4, scoped, tag = 'scoped memory for tpu_custom_call.1']
    #allocation7 [shape = 'u8[65536]{0}', space=vmem, size = 0x10000, scoped, tag = 'input window, operand 9, single buffered']
    #allocation8 [shape = 'u8[1024]{0}', space=vmem, size = 0x400, scoped, tag = 'output window, operand 0, single buffered']
    %16 = vsyncpa [#allocation3], 0
    %17 = vsyncpa [#allocation6], 0
    %18 = vsyncpa [#allocation4], 0
    // Predicated region
    $region2: #{tpu_custom_call.1} parent=1 // pred_check
      _
    $region3: #{tpu_custom_call.1} parent=1 // pred_check_branch
      %20 = sbr.rel (0) target = $region5
    $region4: #{tpu_custom_call.1} parent=1 // pred_region
      _
    $region5: #{tpu_custom_call.1} parent=1 // pred_fallthru
      _
    // Predicated region
    $region6: #{tpu_custom_call.1} parent=1 // pred_check
      _
    $region7: #{tpu_custom_call.1} parent=1 // pred_check_branch
      %22 = sbr.rel (0) target = $region9
    $region8: #{tpu_custom_call.1} parent=1 // pred_region
      _
    $region9: #{tpu_custom_call.1} parent=1 // pred_fallthru
      _
    // Predicated region
    $region10: #{tpu_custom_call.1} parent=1 // pred_check
      _
    $region11: #{tpu_custom_call.1} parent=1 // pred_check_branch
      %24 = sbr.rel (0) target = $region13
    $region12: #{tpu_custom_call.1} parent=1 // pred_region
      _
    $region13: #{tpu_custom_call.1} parent=1 // pred_fallthru
      _
    // Predicated region
    $region14: #{tpu_custom_call.1} parent=1 // pred_check
      _
    $region15: #{tpu_custom_call.1} parent=1 // pred_check_branch
      %26 = sbr.rel (0) target = $region17
    $region16: #{tpu_custom_call.1} parent=1 // pred_region
      _
    $region17: #{tpu_custom_call.1} parent=1 // pred_fallthru
      _
    // Predicated region
    $region18: #{tpu_custom_call.1} parent=1 // pred_check
      _
    $region19: #{tpu_custom_call.1} parent=1 // pred_check_branch
      %28 = sbr.rel (0) target = $region21
    $region20: #{tpu_custom_call.1} parent=1 // pred_region
      _
    $region21: #{tpu_custom_call.1} parent=1 // pred_fallthru
      _
    // Predicated region
    $region22: #{tpu_custom_call.1} parent=1 // pred_check
      _
    $region23: #{tpu_custom_call.1} parent=1 // pred_check_branch
      %30 = sbr.rel (0) target = $region25
    $region24: #{tpu_custom_call.1} parent=1 // pred_region
      _
    $region25: #{tpu_custom_call.1} parent=1 // pred_fallthru
      _
    // Predicated region
    $region26: #{tpu_custom_call.1} parent=1 // pred_check
      _
    $region27: #{tpu_custom_call.1} parent=1 // pred_check_branch
      %32 = sbr.rel (0) target = $region29
    $region28: #{tpu_custom_call.1} parent=1 // pred_region
      %s34 = ssub.s32 8192, 8192
      %35 = vsyncadd [#allocation3], %s34
      %s36 = sshll.u32 [#allocation2], 4
      %s37 = int_to_ptr.vmem [resolvable:$true] %s36
      %42 = dma.hbm_to_vmem [thread:$0]  %s6, 8192, %s37, [#allocation3], 128, 128, 8
    $region29: #{tpu_custom_call.1} parent=1 // pred_fallthru
      _
    // Predicated region
    $region30: #{tpu_custom_call.1} parent=1 // pred_check
      _
    $region31: #{tpu_custom_call.1} parent=1 // pred_check_branch
      %44 = sbr.rel (0) target = $region33
    $region32: #{tpu_custom_call.1} parent=1 // pred_region
      %s46 = ssub.s32 8192, 8192
      %47 = vsyncadd [#allocation6], %s46
      %s48 = sshll.u32 [#allocation5], 4
      %s49 = int_to_ptr.vmem [resolvable:$true] %s48
      %54 = dma.hbm_to_vmem [thread:$0]  %s7, 8192, %s49, [#allocation6], 128, 128, 8
    $region33: #{tpu_custom_call.1} parent=1 // pred_fallthru
      _
    // Predicated region
    $region34: #{tpu_custom_call.1} parent=1 // pred_check
      _
    $region35: #{tpu_custom_call.1} parent=1 // pred_check_branch
      %56 = sbr.rel (0) target = $region37
    $region36: #{tpu_custom_call.1} parent=1 // pred_region
      _
    $region37: #{tpu_custom_call.1} parent=1 // pred_fallthru
      _
    // Predicated region
    $region38: #{tpu_custom_call.1} parent=1 // pred_check
      _
    $region39: #{tpu_custom_call.1} parent=1 // pred_check_branch
      %58 = sbr.rel (0) target = $region41
    $region40: #{tpu_custom_call.1} parent=1 // pred_region
      %s60 = ssub.s32 2048, 2048
      %61 = vsyncadd [#allocation6], %s60
      %s62 = sshll.u32 [#allocation7], 4
      %s63 = int_to_ptr.vmem [resolvable:$true] %s62
      %68 = dma.hbm_to_vmem [thread:$0]  %s9, 2048, %s63, [#allocation6], 64, 64, 4
    $region41: #{tpu_custom_call.1} parent=1 // pred_fallthru
      _
    // Predicated region
    $region42: #{tpu_custom_call.1} parent=1 // pred_check
      _
    $region43: #{tpu_custom_call.1} parent=1 // pred_check_branch
      %70 = sbr.rel (0) target = $region45
    $region44: #{tpu_custom_call.1} parent=1 // pred_region
      _
    $region45: #{tpu_custom_call.1} parent=1 // pred_fallthru
      _
    // Predicated region
    $region46: #{tpu_custom_call.1} parent=1 // pred_check
      _
    $region47: #{tpu_custom_call.1} parent=1 // pred_check_branch
      %72 = sbr.rel (0) target = $region49
    $region48: #{tpu_custom_call.1} parent=1 // pred_region
      %73 = dma.done [#allocation3], 8192
    $region49: #{tpu_custom_call.1} parent=1 // pred_fallthru
      _
    // Predicated region
    $region50: #{tpu_custom_call.1} parent=1 // pred_check
      _
    $region51: #{tpu_custom_call.1} parent=1 // pred_check_branch
      %75 = sbr.rel (0) target = $region53
    $region52: #{tpu_custom_call.1} parent=1 // pred_region
      %76 = dma.done [#allocation6], 8192
    $region53: #{tpu_custom_call.1} parent=1 // pred_fallthru
      _
    // Predicated region
    $region54: #{tpu_custom_call.1} parent=1 // pred_check
      _
    $region55: #{tpu_custom_call.1} parent=1 // pred_check_branch
      %78 = sbr.rel (0) target = $region57
    $region56: #{tpu_custom_call.1} parent=1 // pred_region
      %79 = dma.done [#allocation6], 2048
    $region57: #{tpu_custom_call.1} parent=1 // pred_fallthru
      _
    %v81 = vld [vmem:[%s0] sm:$0xf]
    %v84 = vunpack.c.l.s4 1983009808
    %v85 = vunpack.c.0.s8 %v84
    %v86 = vlaneseq
    %v87 = vshrl.u32 %v86, 7
    %v88 = vsub.s32 %v85, %v87
    %v89 = vrot.slane %v81, %v88
    %v90 = vcombine.high %v89, %v89
    %vm93 = vcmask 1041408
    %v94 = vsel %vm93, %v89, 0.0
    %v95 = vsel %vm93, %v90, 0.0
    %v96 = vadd.f32 %v94, %v95
    %97 = vadd.xlane.f32.xlu0 %v96
    %v98 = vpop.xlane.xlu0 %97
    %v99 = vld [vmem:[%s2] sm:$0xf]
    %v100 = vld [vmem:[%s3] sm:$0xf]
    %v102 = vlaneseq
    %v103 = vshrl.u32 %v102, 7
    %v104 = vsub.s32 0, %v103
    %v105 = vrot.slane %v99, %v104
    %v106 = vlaneseq
    %v107 = vshrl.u32 %v106, 7
    %v108 = vsub.s32 1, %v107
    %v109 = vrot.slane %v99, %v108
    %v110 = vlaneseq
    %v111 = vshrl.u32 %v110, 7
    %v112 = vsub.s32 2, %v111
    %v113 = vrot.slane %v99, %v112
    %v114 = vlaneseq
    %v115 = vshrl.u32 %v114, 7
    %v116 = vsub.s32 3, %v115
    %v117 = vrot.slane %v99, %v116
    %v122 = vmul.f32 %v98, %v105
    %v123 = vmul.f32 %v98, %v109
    %v124 = vmul.f32 %v98, %v113
    %v125 = vmul.f32 %v98, %v117
    %v127 = vlaneseq
    %v128 = vshrl.u32 %v127, 7
    %v129 = vsub.s32 0, %v128
    %v130 = vrot.slane %v100, %v129
    %v131 = vlaneseq
    %v132 = vshrl.u32 %v131, 7
    %v133 = vsub.s32 1, %v132
    %v134 = vrot.slane %v100, %v133
    %v135 = vlaneseq
    %v136 = vshrl.u32 %v135, 7
    %v137 = vsub.s32 2, %v136
    %v138 = vrot.slane %v100, %v137
    %v139 = vlaneseq
    %v140 = vshrl.u32 %v139, 7
    %v141 = vsub.s32 3, %v140
    %v142 = vrot.slane %v100, %v141
    %v147 = vadd.f32 %v122, %v130
    %v148 = vadd.f32 %v123, %v134
    %v149 = vadd.f32 %v124, %v138
    %v150 = vadd.f32 %v125, %v142
    %v151 = vld [vmem:[%s1] sm:$0x3f]
    %v152 = vld [vmem:[%s1 + $0x8] sm:$0x3f]
    %v153 = vld [vmem:[%s1 + $0x10] sm:$0x3f]
    %v154 = vld [vmem:[%s1 + $0x18] sm:$0x3f]
    %vm155 = vcmask 1045504
    %v156 = vsel %vm155, %v151, 0.0
    %v157 = vsel %vm155, %v152, 0.0
    %v158 = vadd.f32 %v156, %v157
    %159 = vadd.xlane.f32.xlu0 %v158
    %v160 = vpop.xlane.xlu0 %159
    %v161 = vsel %vm155, %v153, 0.0
    %v162 = vsel %vm155, %v154, 0.0
    %v163 = vadd.f32 %v161, %v162
    %164 = vadd.xlane.f32.xlu0 %v163
    %v165 = vpop.xlane.xlu0 %164
    %v166 = vld [vmem:[%s4] sm:$0x3f]
    %v167 = vld [vmem:[%s4 + $0x8] sm:$0x3f]
    %v168 = vld [vmem:[%s4 + $0x10] sm:$0x3f]
    %v169 = vld [vmem:[%s4 + $0x18] sm:$0x3f]
    %v170 = vld [vmem:[%s5] sm:$0xf]
    %v171 = vlaneseq
    %v172 = vshrl.u32 %v171, 7
    %v173 = vsub.s32 0, %v172
    %v174 = vrot.slane %v160, %v173
    %v175 = vlaneseq
    %v176 = vshrl.u32 %v175, 7
    %v177 = vsub.s32 0, %v176
    %v178 = vrot.slane %v165, %v177
    %v179 = vlaneseq
    %v180 = vshrl.u32 %v179, 7
    %v181 = vsub.s32 0, %v180
    %v182 = vrot.slane %v166, %v181
    %v183 = vlaneseq
    %v184 = vshrl.u32 %v183, 7
    %v185 = vsub.s32 0, %v184
    %v186 = vrot.slane %v167, %v185
    %v187 = vlaneseq
    %v188 = vshrl.u32 %v187, 7
    %v189 = vsub.s32 0, %v188
    %v190 = vrot.slane %v168, %v189
    %v191 = vlaneseq
    %v192 = vshrl.u32 %v191, 7
    %v193 = vsub.s32 0, %v192
    %v194 = vrot.slane %v169, %v193
    %200 = vbcast.lane.b32.xlu0 %v182, 256
    %v201 = vpop.permute.xlu0 %200
    %s203 = sor.u32 256, 8
    %204 = vbcast.lane.b32.xlu0 %v182, %s203
    %v205 = vpop.permute.xlu0 %204
    %s207 = sor.u32 256, 16
    %208 = vbcast.lane.b32.xlu0 %v182, %s207
    %v209 = vpop.permute.xlu0 %208
    %s211 = sor.u32 256, 24
    %212 = vbcast.lane.b32.xlu0 %v182, %s211
    %v213 = vpop.permute.xlu0 %212
    %s215 = sor.u32 256, 32
    %216 = vbcast.lane.b32.xlu0 %v182, %s215
    %v217 = vpop.permute.xlu0 %216
    %s219 = sor.u32 256, 40
    %220 = vbcast.lane.b32.xlu0 %v182, %s219
    %v221 = vpop.permute.xlu0 %220
    %s223 = sor.u32 256, 48
    %224 = vbcast.lane.b32.xlu0 %v182, %s223
    %v225 = vpop.permute.xlu0 %224
    %s227 = sor.u32 256, 56
    %228 = vbcast.lane.b32.xlu0 %v182, %s227
    %v229 = vpop.permute.xlu0 %228
    %s231 = sor.u32 256, 64
    %232 = vbcast.lane.b32.xlu0 %v182, %s231
    %v233 = vpop.permute.xlu0 %232
    %s235 = sor.u32 256, 72
    %236 = vbcast.lane.b32.xlu0 %v182, %s235
    %v237 = vpop.permute.xlu0 %236
    %s239 = sor.u32 256, 80
    %240 = vbcast.lane.b32.xlu0 %v182, %s239
    %v241 = vpop.permute.xlu0 %240
    %s243 = sor.u32 256, 88
    %244 = vbcast.lane.b32.xlu0 %v182, %s243
    %v245 = vpop.permute.xlu0 %244
    %s247 = sor.u32 256, 96
    %248 = vbcast.lane.b32.xlu0 %v182, %s247
    %v249 = vpop.permute.xlu0 %248
    %s251 = sor.u32 256, 104
    %252 = vbcast.lane.b32.xlu0 %v182, %s251
    %v253 = vpop.permute.xlu0 %252
    %s255 = sor.u32 256, 112
    %256 = vbcast.lane.b32.xlu0 %v182, %s255
    %v257 = vpop.permute.xlu0 %256
    %s259 = sor.u32 256, 120
    %260 = vbcast.lane.b32.xlu0 %v182, %s259
    %v261 = vpop.permute.xlu0 %260
    %263 = vbcast.lane.b32.xlu0 %v186, 256
    %v264 = vpop.permute.xlu0 %263
    %s266 = sor.u32 256, 8
    %267 = vbcast.lane.b32.xlu0 %v186, %s266
    %v268 = vpop.permute.xlu0 %267
    %s270 = sor.u32 256, 16
    %271 = vbcast.lane.b32.xlu0 %v186, %s270
    %v272 = vpop.permute.xlu0 %271
    %s274 = sor.u32 256, 24
    %275 = vbcast.lane.b32.xlu0 %v186, %s274
    %v276 = vpop.permute.xlu0 %275
    %s278 = sor.u32 256, 32
    %279 = vbcast.lane.b32.xlu0 %v186, %s278
    %v280 = vpop.permute.xlu0 %279
    %s282 = sor.u32 256, 40
    %283 = vbcast.lane.b32.xlu0 %v186, %s282
    %v284 = vpop.permute.xlu0 %283
    %s286 = sor.u32 256, 48
    %287 = vbcast.lane.b32.xlu0 %v186, %s286
    %v288 = vpop.permute.xlu0 %287
    %s290 = sor.u32 256, 56
    %291 = vbcast.lane.b32.xlu0 %v186, %s290
    %v292 = vpop.permute.xlu0 %291
    %s294 = sor.u32 256, 64
    %295 = vbcast.lane.b32.xlu0 %v186, %s294
    %v296 = vpop.permute.xlu0 %295
    %s298 = sor.u32 256, 72
    %299 = vbcast.lane.b32.xlu0 %v186, %s298
    %v300 = vpop.permute.xlu0 %299
    %s302 = sor.u32 256, 80
    %303 = vbcast.lane.b32.xlu0 %v186, %s302
    %v304 = vpop.permute.xlu0 %303
    %s306 = sor.u32 256, 88
    %307 = vbcast.lane.b32.xlu0 %v186, %s306
    %v308 = vpop.permute.xlu0 %307
    %s310 = sor.u32 256, 96
    %311 = vbcast.lane.b32.xlu0 %v186, %s310
    %v312 = vpop.permute.xlu0 %311
    %s314 = sor.u32 256, 104
    %315 = vbcast.lane.b32.xlu0 %v186, %s314
    %v316 = vpop.permute.xlu0 %315
    %s318 = sor.u32 256, 112
    %319 = vbcast.lane.b32.xlu0 %v186, %s318
    %v320 = vpop.permute.xlu0 %319
    %s322 = sor.u32 256, 120
    %323 = vbcast.lane.b32.xlu0 %v186, %s322
    %v324 = vpop.permute.xlu0 %323
    %326 = vbcast.lane.b32.xlu0 %v190, 256
    %v327 = vpop.permute.xlu0 %326
    %s329 = sor.u32 256, 8
    %330 = vbcast.lane.b32.xlu0 %v190, %s329
    %v331 = vpop.permute.xlu0 %330
    %s333 = sor.u32 256, 16
    %334 = vbcast.lane.b32.xlu0 %v190, %s333
    %v335 = vpop.permute.xlu0 %334
    %s337 = sor.u32 256, 24
    %338 = vbcast.lane.b32.xlu0 %v190, %s337
    %v339 = vpop.permute.xlu0 %338
    %s341 = sor.u32 256, 32
    %342 = vbcast.lane.b32.xlu0 %v190, %s341
    %v343 = vpop.permute.xlu0 %342
    %s345 = sor.u32 256, 40
    %346 = vbcast.lane.b32.xlu0 %v190, %s345
    %v347 = vpop.permute.xlu0 %346
    %s349 = sor.u32 256, 48
    %350 = vbcast.lane.b32.xlu0 %v190, %s349
    %v351 = vpop.permute.xlu0 %350
    %s353 = sor.u32 256, 56
    %354 = vbcast.lane.b32.xlu0 %v190, %s353
    %v355 = vpop.permute.xlu0 %354
    %s357 = sor.u32 256, 64
    %358 = vbcast.lane.b32.xlu0 %v190, %s357
    %v359 = vpop.permute.xlu0 %358
    %s361 = sor.u32 256, 72
    %362 = vbcast.lane.b32.xlu0 %v190, %s361
    %v363 = vpop.permute.xlu0 %362
    %s365 = sor.u32 256, 80
    %366 = vbcast.lane.b32.xlu0 %v190, %s365
    %v367 = vpop.permute.xlu0 %366
    %s369 = sor.u32 256, 88
    %370 = vbcast.lane.b32.xlu0 %v190, %s369
    %v371 = vpop.permute.xlu0 %370
    %s373 = sor.u32 256, 96
    %374 = vbcast.lane.b32.xlu0 %v190, %s373
    %v375 = vpop.permute.xlu0 %374
    %s377 = sor.u32 256, 104
    %378 = vbcast.lane.b32.xlu0 %v190, %s377
    %v379 = vpop.permute.xlu0 %378
    %s381 = sor.u32 256, 112
    %382 = vbcast.lane.b32.xlu0 %v190, %s381
    %v383 = vpop.permute.xlu0 %382
    %s385 = sor.u32 256, 120
    %386 = vbcast.lane.b32.xlu0 %v190, %s385
    %v387 = vpop.permute.xlu0 %386
    %389 = vbcast.lane.b32.xlu0 %v194, 256
    %v390 = vpop.permute.xlu0 %389
    %s392 = sor.u32 256, 8
    %393 = vbcast.lane.b32.xlu0 %v194, %s392
    %v394 = vpop.permute.xlu0 %393
    %s396 = sor.u32 256, 16
    %397 = vbcast.lane.b32.xlu0 %v194, %s396
    %v398 = vpop.permute.xlu0 %397
    %s400 = sor.u32 256, 24
    %401 = vbcast.lane.b32.xlu0 %v194, %s400
    %v402 = vpop.permute.xlu0 %401
    %s404 = sor.u32 256, 32
    %405 = vbcast.lane.b32.xlu0 %v194, %s404
    %v406 = vpop.permute.xlu0 %405
    %s408 = sor.u32 256, 40
    %409 = vbcast.lane.b32.xlu0 %v194, %s408
    %v410 = vpop.permute.xlu0 %409
    %s412 = sor.u32 256, 48
    %413 = vbcast.lane.b32.xlu0 %v194, %s412
    %v414 = vpop.permute.xlu0 %413
    %s416 = sor.u32 256, 56
    %417 = vbcast.lane.b32.xlu0 %v194, %s416
    %v418 = vpop.permute.xlu0 %417
    %s420 = sor.u32 256, 64
    %421 = vbcast.lane.b32.xlu0 %v194, %s420
    %v422 = vpop.permute.xlu0 %421
    %s424 = sor.u32 256, 72
    %425 = vbcast.lane.b32.xlu0 %v194, %s424
    %v426 = vpop.permute.xlu0 %425
    %s428 = sor.u32 256, 80
    %429 = vbcast.lane.b32.xlu0 %v194, %s428
    %v430 = vpop.permute.xlu0 %429
    %s432 = sor.u32 256, 88
    %433 = vbcast.lane.b32.xlu0 %v194, %s432
    %v434 = vpop.permute.xlu0 %433
    %s436 = sor.u32 256, 96
    %437 = vbcast.lane.b32.xlu0 %v194, %s436
    %v438 = vpop.permute.xlu0 %437
    %s440 = sor.u32 256, 104
    %441 = vbcast.lane.b32.xlu0 %v194, %s440
    %v442 = vpop.permute.xlu0 %441
    %s444 = sor.u32 256, 112
    %445 = vbcast.lane.b32.xlu0 %v194, %s444
    %v446 = vpop.permute.xlu0 %445
    %s448 = sor.u32 256, 120
    %449 = vbcast.lane.b32.xlu0 %v194, %s448
    %v450 = vpop.permute.xlu0 %449
    %v515 = vmul.f32 %v174, %v201
    %v516 = vmul.f32 %v174, %v205
    %v517 = vmul.f32 %v174, %v209
    %v518 = vmul.f32 %v174, %v213
    %v519 = vmul.f32 %v174, %v217
    %v520 = vmul.f32 %v174, %v221
    %v521 = vmul.f32 %v174, %v225
    %v522 = vmul.f32 %v174, %v229
    %v523 = vmul.f32 %v174, %v233
    %v524 = vmul.f32 %v174, %v237
    %v525 = vmul.f32 %v174, %v241
    %v526 = vmul.f32 %v174, %v245
    %v527 = vmul.f32 %v174, %v249
    %v528 = vmul.f32 %v174, %v253
    %v529 = vmul.f32 %v174, %v257
    %v530 = vmul.f32 %v174, %v261
    %v531 = vmul.f32 %v174, %v264
    %v532 = vmul.f32 %v174, %v268
    %v533 = vmul.f32 %v174, %v272
    %v534 = vmul.f32 %v174, %v276
    %v535 = vmul.f32 %v174, %v280
    %v536 = vmul.f32 %v174, %v284
    %v537 = vmul.f32 %v174, %v288
    %v538 = vmul.f32 %v174, %v292
    %v539 = vmul.f32 %v174, %v296
    %v540 = vmul.f32 %v174, %v300
    %v541 = vmul.f32 %v174, %v304
    %v542 = vmul.f32 %v174, %v308
    %v543 = vmul.f32 %v174, %v312
    %v544 = vmul.f32 %v174, %v316
    %v545 = vmul.f32 %v174, %v320
    %v546 = vmul.f32 %v174, %v324
    %v547 = vmul.f32 %v174, %v327
    %v548 = vmul.f32 %v174, %v331
    %v549 = vmul.f32 %v174, %v335
    %v550 = vmul.f32 %v174, %v339
    %v551 = vmul.f32 %v174, %v343
    %v552 = vmul.f32 %v174, %v347
    %v553 = vmul.f32 %v174, %v351
    %v554 = vmul.f32 %v174, %v355
    %v555 = vmul.f32 %v174, %v359
    %v556 = vmul.f32 %v174, %v363
    %v557 = vmul.f32 %v174, %v367
    %v558 = vmul.f32 %v174, %v371
    %v559 = vmul.f32 %v174, %v375
    %v560 = vmul.f32 %v174, %v379
    %v561 = vmul.f32 %v174, %v383
    %v562 = vmul.f32 %v174, %v387
    %v563 = vmul.f32 %v174, %v390
    %v564 = vmul.f32 %v174, %v394
    %v565 = vmul.f32 %v174, %v398
    %v566 = vmul.f32 %v174, %v402
    %v567 = vmul.f32 %v174, %v406
    %v568 = vmul.f32 %v174, %v410
    %v569 = vmul.f32 %v174, %v414
    %v570 = vmul.f32 %v174, %v418
    %v571 = vmul.f32 %v174, %v422
    %v572 = vmul.f32 %v174, %v426
    %v573 = vmul.f32 %v174, %v430
    %v574 = vmul.f32 %v174, %v434
    %v575 = vmul.f32 %v174, %v438
    %v576 = vmul.f32 %v174, %v442
    %v577 = vmul.f32 %v174, %v446
    %v578 = vmul.f32 %v174, %v450
    %v579 = vmul.f32 %v178, %v201
    %v580 = vmul.f32 %v178, %v205
    %v581 = vmul.f32 %v178, %v209
    %v582 = vmul.f32 %v178, %v213
    %v583 = vmul.f32 %v178, %v217
    %v584 = vmul.f32 %v178, %v221
    %v585 = vmul.f32 %v178, %v225
    %v586 = vmul.f32 %v178, %v229
    %v587 = vmul.f32 %v178, %v233
    %v588 = vmul.f32 %v178, %v237
    %v589 = vmul.f32 %v178, %v241
    %v590 = vmul.f32 %v178, %v245
    %v591 = vmul.f32 %v178, %v249
    %v592 = vmul.f32 %v178, %v253
    %v593 = vmul.f32 %v178, %v257
    %v594 = vmul.f32 %v178, %v261
    %v595 = vmul.f32 %v178, %v264
    %v596 = vmul.f32 %v178, %v268
    %v597 = vmul.f32 %v178, %v272
    %v598 = vmul.f32 %v178, %v276
    %v599 = vmul.f32 %v178, %v280
    %v600 = vmul.f32 %v178, %v284
    %v601 = vmul.f32 %v178, %v288
    %v602 = vmul.f32 %v178, %v292
    %v603 = vmul.f32 %v178, %v296
    %v604 = vmul.f32 %v178, %v300
    %v605 = vmul.f32 %v178, %v304
    %v606 = vmul.f32 %v178, %v308
    %v607 = vmul.f32 %v178, %v312
    %v608 = vmul.f32 %v178, %v316
    %v609 = vmul.f32 %v178, %v320
    %v610 = vmul.f32 %v178, %v324
    %v611 = vmul.f32 %v178, %v327
    %v612 = vmul.f32 %v178, %v331
    %v613 = vmul.f32 %v178, %v335
    %v614 = vmul.f32 %v178, %v339
    %v615 = vmul.f32 %v178, %v343
    %v616 = vmul.f32 %v178, %v347
    %v617 = vmul.f32 %v178, %v351
    %v618 = vmul.f32 %v178, %v355
    %v619 = vmul.f32 %v178, %v359
    %v620 = vmul.f32 %v178, %v363
    %v621 = vmul.f32 %v178, %v367
    %v622 = vmul.f32 %v178, %v371
    %v623 = vmul.f32 %v178, %v375
    %v624 = vmul.f32 %v178, %v379
    %v625 = vmul.f32 %v178, %v383
    %v626 = vmul.f32 %v178, %v387
    %v627 = vmul.f32 %v178, %v390
    %v628 = vmul.f32 %v178, %v394
    %v629 = vmul.f32 %v178, %v398
    %v630 = vmul.f32 %v178, %v402
    %v631 = vmul.f32 %v178, %v406
    %v632 = vmul.f32 %v178, %v410
    %v633 = vmul.f32 %v178, %v414
    %v634 = vmul.f32 %v178, %v418
    %v635 = vmul.f32 %v178, %v422
    %v636 = vmul.f32 %v178, %v426
    %v637 = vmul.f32 %v178, %v430
    %v638 = vmul.f32 %v178, %v434
    %v639 = vmul.f32 %v178, %v438
    %v640 = vmul.f32 %v178, %v442
    %v641 = vmul.f32 %v178, %v446
    %v642 = vmul.f32 %v178, %v450
    %v643 = vlaneseq
    %v644 = vshrl.u32 %v643, 7
    %v645 = vsub.s32 1, %v644
    %v646 = vrot.slane %v160, %v645
    %v647 = vlaneseq
    %v648 = vshrl.u32 %v647, 7
    %v649 = vsub.s32 1, %v648
    %v650 = vrot.slane %v165, %v649
    %v651 = vlaneseq
    %v652 = vshrl.u32 %v651, 7
    %v653 = vsub.s32 1, %v652
    %v654 = vrot.slane %v166, %v653
    %v655 = vlaneseq
    %v656 = vshrl.u32 %v655, 7
    %v657 = vsub.s32 1, %v656
    %v658 = vrot.slane %v167, %v657
    %v659 = vlaneseq
    %v660 = vshrl.u32 %v659, 7
    %v661 = vsub.s32 1, %v660
    %v662 = vrot.slane %v168, %v661
    %v663 = vlaneseq
    %v664 = vshrl.u32 %v663, 7
    %v665 = vsub.s32 1, %v664
    %v666 = vrot.slane %v169, %v665
    %672 = vbcast.lane.b32.xlu0 %v654, 256
    %v673 = vpop.permute.xlu0 %672
    %s675 = sor.u32 256, 8
    %676 = vbcast.lane.b32.xlu0 %v654, %s675
    %v677 = vpop.permute.xlu0 %676
    %s679 = sor.u32 256, 16
    %680 = vbcast.lane.b32.xlu0 %v654, %s679
    %v681 = vpop.permute.xlu0 %680
    %s683 = sor.u32 256, 24
    %684 = vbcast.lane.b32.xlu0 %v654, %s683
    %v685 = vpop.permute.xlu0 %684
    %s687 = sor.u32 256, 32
    %688 = vbcast.lane.b32.xlu0 %v654, %s687
    %v689 = vpop.permute.xlu0 %688
    %s691 = sor.u32 256, 40
    %692 = vbcast.lane.b32.xlu0 %v654, %s691
    %v693 = vpop.permute.xlu0 %692
    %s695 = sor.u32 256, 48
    %696 = vbcast.lane.b32.xlu0 %v654, %s695
    %v697 = vpop.permute.xlu0 %696
    %s699 = sor.u32 256, 56
    %700 = vbcast.lane.b32.xlu0 %v654, %s699
    %v701 = vpop.permute.xlu0 %700
    %s703 = sor.u32 256, 64
    %704 = vbcast.lane.b32.xlu0 %v654, %s703
    %v705 = vpop.permute.xlu0 %704
    %s707 = sor.u32 256, 72
    %708 = vbcast.lane.b32.xlu0 %v654, %s707
    %v709 = vpop.permute.xlu0 %708
    %s711 = sor.u32 256, 80
    %712 = vbcast.lane.b32.xlu0 %v654, %s711
    %v713 = vpop.permute.xlu0 %712
    %s715 = sor.u32 256, 88
    %716 = vbcast.lane.b32.xlu0 %v654, %s715
    %v717 = vpop.permute.xlu0 %716
    %s719 = sor.u32 256, 96
    %720 = vbcast.lane.b32.xlu0 %v654, %s719
    %v721 = vpop.permute.xlu0 %720
    %s723 = sor.u32 256, 104
    %724 = vbcast.lane.b32.xlu0 %v654, %s723
    %v725 = vpop.permute.xlu0 %724
    %s727 = sor.u32 256, 112
    %728 = vbcast.lane.b32.xlu0 %v654, %s727
    %v729 = vpop.permute.xlu0 %728
    %s731 = sor.u32 256, 120
    %732 = vbcast.lane.b32.xlu0 %v654, %s731
    %v733 = vpop.permute.xlu0 %732
    %735 = vbcast.lane.b32.xlu0 %v658, 256
    %v736 = vpop.permute.xlu0 %735
    %s738 = sor.u32 256, 8
    %739 = vbcast.lane.b32.xlu0 %v658, %s738
    %v740 = vpop.permute.xlu0 %739
    %s742 = sor.u32 256, 16
    %743 = vbcast.lane.b32.xlu0 %v658, %s742
    %v744 = vpop.permute.xlu0 %743
    %s746 = sor.u32 256, 24
    %747 = vbcast.lane.b32.xlu0 %v658, %s746
    %v748 = vpop.permute.xlu0 %747
    %s750 = sor.u32 256, 32
    %751 = vbcast.lane.b32.xlu0 %v658, %s750
    %v752 = vpop.permute.xlu0 %751
    %s754 = sor.u32 256, 40
    %755 = vbcast.lane.b32.xlu0 %v658, %s754
    %v756 = vpop.permute.xlu0 %755
    %s758 = sor.u32 256, 48
    %759 = vbcast.lane.b32.xlu0 %v658, %s758
    %v760 = vpop.permute.xlu0 %759
    %s762 = sor.u32 256, 56
    %763 = vbcast.lane.b32.xlu0 %v658, %s762
    %v764 = vpop.permute.xlu0 %763
    %s766 = sor.u32 256, 64
    %767 = vbcast.lane.b32.xlu0 %v658, %s766
    %v768 = vpop.permute.xlu0 %767
    %s770 = sor.u32 256, 72
    %771 = vbcast.lane.b32.xlu0 %v658, %s770
    %v772 = vpop.permute.xlu0 %771
    %s774 = sor.u32 256, 80
    %775 = vbcast.lane.b32.xlu0 %v658, %s774
    %v776 = vpop.permute.xlu0 %775
    %s778 = sor.u32 256, 88
    %779 = vbcast.lane.b32.xlu0 %v658, %s778
    %v780 = vpop.permute.xlu0 %779
    %s782 = sor.u32 256, 96
    %783 = vbcast.lane.b32.xlu0 %v658, %s782
    %v784 = vpop.permute.xlu0 %783
    %s786 = sor.u32 256, 104
    %787 = vbcast.lane.b32.xlu0 %v658, %s786
    %v788 = vpop.permute.xlu0 %787
    %s790 = sor.u32 256, 112
    %791 = vbcast.lane.b32.xlu0 %v658, %s790
    %v792 = vpop.permute.xlu0 %791
    %s794 = sor.u32 256, 120
    %795 = vbcast.lane.b32.xlu0 %v658, %s794
    %v796 = vpop.permute.xlu0 %795
    %798 = vbcast.lane.b32.xlu0 %v662, 256
    %v799 = vpop.permute.xlu0 %798
    %s801 = sor.u32 256, 8
    %802 = vbcast.lane.b32.xlu0 %v662, %s801
    %v803 = vpop.permute.xlu0 %802
    %s805 = sor.u32 256, 16
    %806 = vbcast.lane.b32.xlu0 %v662, %s805
    %v807 = vpop.permute.xlu0 %806
    %s809 = sor.u32 256, 24
    %810 = vbcast.lane.b32.xlu0 %v662, %s809
    %v811 = vpop.permute.xlu0 %810
    %s813 = sor.u32 256, 32
    %814 = vbcast.lane.b32.xlu0 %v662, %s813
    %v815 = vpop.permute.xlu0 %814
    %s817 = sor.u32 256, 40
    %818 = vbcast.lane.b32.xlu0 %v662, %s817
    %v819 = vpop.permute.xlu0 %818
    %s821 = sor.u32 256, 48
    %822 = vbcast.lane.b32.xlu0 %v662, %s821
    %v823 = vpop.permute.xlu0 %822
    %s825 = sor.u32 256, 56
    %826 = vbcast.lane.b32.xlu0 %v662, %s825
    %v827 = vpop.permute.xlu0 %826
    %s829 = sor.u32 256, 64
    %830 = vbcast.lane.b32.xlu0 %v662, %s829
    %v831 = vpop.permute.xlu0 %830
    %s833 = sor.u32 256, 72
    %834 = vbcast.lane.b32.xlu0 %v662, %s833
    %v835 = vpop.permute.xlu0 %834
    %s837 = sor.u32 256, 80
    %838 = vbcast.lane.b32.xlu0 %v662, %s837
    %v839 = vpop.permute.xlu0 %838
    %s841 = sor.u32 256, 88
    %842 = vbcast.lane.b32.xlu0 %v662, %s841
    %v843 = vpop.permute.xlu0 %842
    %s845 = sor.u32 256, 96
    %846 = vbcast.lane.b32.xlu0 %v662, %s845
    %v847 = vpop.permute.xlu0 %846
    %s849 = sor.u32 256, 104
    %850 = vbcast.lane.b32.xlu0 %v662, %s849
    %v851 = vpop.permute.xlu0 %850
    %s853 = sor.u32 256, 112
    %854 = vbcast.lane.b32.xlu0 %v662, %s853
    %v855 = vpop.permute.xlu0 %854
    %s857 = sor.u32 256, 120
    %858 = vbcast.lane.b32.xlu0 %v662, %s857
    %v859 = vpop.permute.xlu0 %858
    %861 = vbcast.lane.b32.xlu0 %v666, 256
    %v862 = vpop.permute.xlu0 %861
    %s864 = sor.u32 256, 8
    %865 = vbcast.lane.b32.xlu0 %v666, %s864
    %v866 = vpop.permute.xlu0 %865
    %s868 = sor.u32 256, 16
    %869 = vbcast.lane.b32.xlu0 %v666, %s868
    %v870 = vpop.permute.xlu0 %869
    %s872 = sor.u32 256, 24
    %873 = vbcast.lane.b32.xlu0 %v666, %s872
    %v874 = vpop.permute.xlu0 %873
    %s876 = sor.u32 256, 32
    %877 = vbcast.lane.b32.xlu0 %v666, %s876
    %v878 = vpop.permute.xlu0 %877
    %s880 = sor.u32 256, 40
    %881 = vbcast.lane.b32.xlu0 %v666, %s880
    %v882 = vpop.permute.xlu0 %881
    %s884 = sor.u32 256, 48
    %885 = vbcast.lane.b32.xlu0 %v666, %s884
    %v886 = vpop.permute.xlu0 %885
    %s888 = sor.u32 256, 56
    %889 = vbcast.lane.b32.xlu0 %v666, %s888
    %v890 = vpop.permute.xlu0 %889
    %s892 = sor.u32 256, 64
    %893 = vbcast.lane.b32.xlu0 %v666, %s892
    %v894 = vpop.permute.xlu0 %893
    %s896 = sor.u32 256, 72
    %897 = vbcast.lane.b32.xlu0 %v666, %s896
    %v898 = vpop.permute.xlu0 %897
    %s900 = sor.u32 256, 80
    %901 = vbcast.lane.b32.xlu0 %v666, %s900
    %v902 = vpop.permute.xlu0 %901
    %s904 = sor.u32 256, 88
    %905 = vbcast.lane.b32.xlu0 %v666, %s904
    %v906 = vpop.permute.xlu0 %905
    %s908 = sor.u32 256, 96
    %909 = vbcast.lane.b32.xlu0 %v666, %s908
    %v910 = vpop.permute.xlu0 %909
    %s912 = sor.u32 256, 104
    %913 = vbcast.lane.b32.xlu0 %v666, %s912
    %v914 = vpop.permute.xlu0 %913
    %s916 = sor.u32 256, 112
    %917 = vbcast.lane.b32.xlu0 %v666, %s916
    %v918 = vpop.permute.xlu0 %917
    %s920 = sor.u32 256, 120
    %921 = vbcast.lane.b32.xlu0 %v666, %s920
    %v922 = vpop.permute.xlu0 %921
    %v987 = vmul.f32 %v646, %v673
    %v988 = vmul.f32 %v646, %v677
    %v989 = vmul.f32 %v646, %v681
    %v990 = vmul.f32 %v646, %v685
    %v991 = vmul.f32 %v646, %v689
    %v992 = vmul.f32 %v646, %v693
    %v993 = vmul.f32 %v646, %v697
    %v994 = vmul.f32 %v646, %v701
    %v995 = vmul.f32 %v646, %v705
    %v996 = vmul.f32 %v646, %v709
    %v997 = vmul.f32 %v646, %v713
    %v998 = vmul.f32 %v646, %v717
    %v999 = vmul.f32 %v646, %v721
    %v1000 = vmul.f32 %v646, %v725
    %v1001 = vmul.f32 %v646, %v729
    %v1002 = vmul.f32 %v646, %v733
    %v1003 = vmul.f32 %v646, %v736
    %v1004 = vmul.f32 %v646, %v740
    %v1005 = vmul.f32 %v646, %v744
    %v1006 = vmul.f32 %v646, %v748
    %v1007 = vmul.f32 %v646, %v752
    %v1008 = vmul.f32 %v646, %v756
    %v1009 = vmul.f32 %v646, %v760
    %v1010 = vmul.f32 %v646, %v764
    %v1011 = vmul.f32 %v646, %v768
    %v1012 = vmul.f32 %v646, %v772
    %v1013 = vmul.f32 %v646, %v776
    %v1014 = vmul.f32 %v646, %v780
    %v1015 = vmul.f32 %v646, %v784
    %v1016 = vmul.f32 %v646, %v788
    %v1017 = vmul.f32 %v646, %v792
    %v1018 = vmul.f32 %v646, %v796
    %v1019 = vmul.f32 %v646, %v799
    %v1020 = vmul.f32 %v646, %v803
    %v1021 = vmul.f32 %v646, %v807
    %v1022 = vmul.f32 %v646, %v811
    %v1023 = vmul.f32 %v646, %v815
    %v1024 = vmul.f32 %v646, %v819
    %v1025 = vmul.f32 %v646, %v823
    %v1026 = vmul.f32 %v646, %v827
    %v1027 = vmul.f32 %v646, %v831
    %v1028 = vmul.f32 %v646, %v835
    %v1029 = vmul.f32 %v646, %v839
    %v1030 = vmul.f32 %v646, %v843
    %v1031 = vmul.f32 %v646, %v847
    %v1032 = vmul.f32 %v646, %v851
    %v1033 = vmul.f32 %v646, %v855
    %v1034 = vmul.f32 %v646, %v859
    %v1035 = vmul.f32 %v646, %v862
    %v1036 = vmul.f32 %v646, %v866
    %v1037 = vmul.f32 %v646, %v870
    %v1038 = vmul.f32 %v646, %v874
    %v1039 = vmul.f32 %v646, %v878
    %v1040 = vmul.f32 %v646, %v882
    %v1041 = vmul.f32 %v646, %v886
    %v1042 = vmul.f32 %v646, %v890
    %v1043 = vmul.f32 %v646, %v894
    %v1044 = vmul.f32 %v646, %v898
    %v1045 = vmul.f32 %v646, %v902
    %v1046 = vmul.f32 %v646, %v906
    %v1047 = vmul.f32 %v646, %v910
    %v1048 = vmul.f32 %v646, %v914
    %v1049 = vmul.f32 %v646, %v918
    %v1050 = vmul.f32 %v646, %v922
    %v1051 = vmul.f32 %v650, %v673
    %v1052 = vmul.f32 %v650, %v677
    %v1053 = vmul.f32 %v650, %v681
    %v1054 = vmul.f32 %v650, %v685
    %v1055 = vmul.f32 %v650, %v689
    %v1056 = vmul.f32 %v650, %v693
    %v1057 = vmul.f32 %v650, %v697
    %v1058 = vmul.f32 %v650, %v701
    %v1059 = vmul.f32 %v650, %v705
    %v1060 = vmul.f32 %v650, %v709
    %v1061 = vmul.f32 %v650, %v713
    %v1062 = vmul.f32 %v650, %v717
    %v1063 = vmul.f32 %v650, %v721
    %v1064 = vmul.f32 %v650, %v725
    %v1065 = vmul.f32 %v650, %v729
    %v1066 = vmul.f32 %v650, %v733
    %v1067 = vmul.f32 %v650, %v736
    %v1068 = vmul.f32 %v650, %v740
    %v1069 = vmul.f32 %v650, %v744
    %v1070 = vmul.f32 %v650, %v748
    %v1071 = vmul.f32 %v650, %v752
    %v1072 = vmul.f32 %v650, %v756
    %v1073 = vmul.f32 %v650, %v760
    %v1074 = vmul.f32 %v650, %v764
    %v1075 = vmul.f32 %v650, %v768
    %v1076 = vmul.f32 %v650, %v772
    %v1077 = vmul.f32 %v650, %v776
    %v1078 = vmul.f32 %v650, %v780
    %v1079 = vmul.f32 %v650, %v784
    %v1080 = vmul.f32 %v650, %v788
    %v1081 = vmul.f32 %v650, %v792
    %v1082 = vmul.f32 %v650, %v796
    %v1083 = vmul.f32 %v650, %v799
    %v1084 = vmul.f32 %v650, %v803
    %v1085 = vmul.f32 %v650, %v807
    %v1086 = vmul.f32 %v650, %v811
    %v1087 = vmul.f32 %v650, %v815
    %v1088 = vmul.f32 %v650, %v819
    %v1089 = vmul.f32 %v650, %v823
    %v1090 = vmul.f32 %v650, %v827
    %v1091 = vmul.f32 %v650, %v831
    %v1092 = vmul.f32 %v650, %v835
    %v1093 = vmul.f32 %v650, %v839
    %v1094 = vmul.f32 %v650, %v843
    %v1095 = vmul.f32 %v650, %v847
    %v1096 = vmul.f32 %v650, %v851
    %v1097 = vmul.f32 %v650, %v855
    %v1098 = vmul.f32 %v650, %v859
    %v1099 = vmul.f32 %v650, %v862
    %v1100 = vmul.f32 %v650, %v866
    %v1101 = vmul.f32 %v650, %v870
    %v1102 = vmul.f32 %v650, %v874
    %v1103 = vmul.f32 %v650, %v878
    %v1104 = vmul.f32 %v650, %v882
    %v1105 = vmul.f32 %v650, %v886
    %v1106 = vmul.f32 %v650, %v890
    %v1107 = vmul.f32 %v650, %v894
    %v1108 = vmul.f32 %v650, %v898
    %v1109 = vmul.f32 %v650, %v902
    %v1110 = vmul.f32 %v650, %v906
    %v1111 = vmul.f32 %v650, %v910
    %v1112 = vmul.f32 %v650, %v914
    %v1113 = vmul.f32 %v650, %v918
    %v1114 = vmul.f32 %v650, %v922
    %v1115 = vadd.f32 %v515, %v987
    %v1116 = vadd.f32 %v516, %v988
    %v1117 = vadd.f32 %v517, %v989
    %v1118 = vadd.f32 %v518, %v990
    %v1119 = vadd.f32 %v519, %v991
    %v1120 = vadd.f32 %v520, %v992
    %v1121 = vadd.f32 %v521, %v993
    %v1122 = vadd.f32 %v522, %v994
    %v1123 = vadd.f32 %v523, %v995
    %v1124 = vadd.f32 %v524, %v996
    %v1125 = vadd.f32 %v525, %v997
    %v1126 = vadd.f32 %v526, %v998
    %v1127 = vadd.f32 %v527, %v999
    %v1128 = vadd.f32 %v528, %v1000
    %v1129 = vadd.f32 %v529, %v1001
    %v1130 = vadd.f32 %v530, %v1002
    %v1131 = vadd.f32 %v531, %v1003
    %v1132 = vadd.f32 %v532, %v1004
    %v1133 = vadd.f32 %v533, %v1005
    %v1134 = vadd.f32 %v534, %v1006
    %v1135 = vadd.f32 %v535, %v1007
    %v1136 = vadd.f32 %v536, %v1008
    %v1137 = vadd.f32 %v537, %v1009
    %v1138 = vadd.f32 %v538, %v1010
    %v1139 = vadd.f32 %v539, %v1011
    %v1140 = vadd.f32 %v540, %v1012
    %v1141 = vadd.f32 %v541, %v1013
    %v1142 = vadd.f32 %v542, %v1014
    %v1143 = vadd.f32 %v543, %v1015
    %v1144 = vadd.f32 %v544, %v1016
    %v1145 = vadd.f32 %v545, %v1017
    %v1146 = vadd.f32 %v546, %v1018
    %v1147 = vadd.f32 %v547, %v1019
    %v1148 = vadd.f32 %v548, %v1020
    %v1149 = vadd.f32 %v549, %v1021
    %v1150 = vadd.f32 %v550, %v1022
    %v1151 = vadd.f32 %v551, %v1023
    %v1152 = vadd.f32 %v552, %v1024
    %v1153 = vadd.f32 %v553, %v1025
    %v1154 = vadd.f32 %v554, %v1026
    %v1155 = vadd.f32 %v555, %v1027
    %v1156 = vadd.f32 %v556, %v1028
    %v1157 = vadd.f32 %v557, %v1029
    %v1158 = vadd.f32 %v558, %v1030
    %v1159 = vadd.f32 %v559, %v1031
    %v1160 = vadd.f32 %v560, %v1032
    %v1161 = vadd.f32 %v561, %v1033
    %v1162 = vadd.f32 %v562, %v1034
    %v1163 = vadd.f32 %v563, %v1035
    %v1164 = vadd.f32 %v564, %v1036
    %v1165 = vadd.f32 %v565, %v1037
    %v1166 = vadd.f32 %v566, %v1038
    %v1167 = vadd.f32 %v567, %v1039
    %v1168 = vadd.f32 %v568, %v1040
    %v1169 = vadd.f32 %v569, %v1041
    %v1170 = vadd.f32 %v570, %v1042
    %v1171 = vadd.f32 %v571, %v1043
    %v1172 = vadd.f32 %v572, %v1044
    %v1173 = vadd.f32 %v573, %v1045
    %v1174 = vadd.f32 %v574, %v1046
    %v1175 = vadd.f32 %v575, %v1047
    %v1176 = vadd.f32 %v576, %v1048
    %v1177 = vadd.f32 %v577, %v1049
    %v1178 = vadd.f32 %v578, %v1050
    %v1179 = vadd.f32 %v579, %v1051
    %v1180 = vadd.f32 %v580, %v1052
    %v1181 = vadd.f32 %v581, %v1053
    %v1182 = vadd.f32 %v582, %v1054
    %v1183 = vadd.f32 %v583, %v1055
    %v1184 = vadd.f32 %v584, %v1056
    %v1185 = vadd.f32 %v585, %v1057
    %v1186 = vadd.f32 %v586, %v1058
    %v1187 = vadd.f32 %v587, %v1059
    %v1188 = vadd.f32 %v588, %v1060
    %v1189 = vadd.f32 %v589, %v1061
    %v1190 = vadd.f32 %v590, %v1062
    %v1191 = vadd.f32 %v591, %v1063
    %v1192 = vadd.f32 %v592, %v1064
    %v1193 = vadd.f32 %v593, %v1065
    %v1194 = vadd.f32 %v594, %v1066
    %v1195 = vadd.f32 %v595, %v1067
    %v1196 = vadd.f32 %v596, %v1068
    %v1197 = vadd.f32 %v597, %v1069
    %v1198 = vadd.f32 %v598, %v1070
    %v1199 = vadd.f32 %v599, %v1071
    %v1200 = vadd.f32 %v600, %v1072
    %v1201 = vadd.f32 %v601, %v1073
    %v1202 = vadd.f32 %v602, %v1074
    %v1203 = vadd.f32 %v603, %v1075
    %v1204 = vadd.f32 %v604, %v1076
    %v1205 = vadd.f32 %v605, %v1077
    %v1206 = vadd.f32 %v606, %v1078
    %v1207 = vadd.f32 %v607, %v1079
    %v1208 = vadd.f32 %v608, %v1080
    %v1209 = vadd.f32 %v609, %v1081
    %v1210 = vadd.f32 %v610, %v1082
    %v1211 = vadd.f32 %v611, %v1083
    %v1212 = vadd.f32 %v612, %v1084
    %v1213 = vadd.f32 %v613, %v1085
    %v1214 = vadd.f32 %v614, %v1086
    %v1215 = vadd.f32 %v615, %v1087
    %v1216 = vadd.f32 %v616, %v1088
    %v1217 = vadd.f32 %v617, %v1089
    %v1218 = vadd.f32 %v618, %v1090
    %v1219 = vadd.f32 %v619, %v1091
    %v1220 = vadd.f32 %v620, %v1092
    %v1221 = vadd.f32 %v621, %v1093
    %v1222 = vadd.f32 %v622, %v1094
    %v1223 = vadd.f32 %v623, %v1095
    %v1224 = vadd.f32 %v624, %v1096
    %v1225 = vadd.f32 %v625, %v1097
    %v1226 = vadd.f32 %v626, %v1098
    %v1227 = vadd.f32 %v627, %v1099
    %v1228 = vadd.f32 %v628, %v1100
    %v1229 = vadd.f32 %v629, %v1101
    %v1230 = vadd.f32 %v630, %v1102
    %v1231 = vadd.f32 %v631, %v1103
    %v1232 = vadd.f32 %v632, %v1104
    %v1233 = vadd.f32 %v633, %v1105
    %v1234 = vadd.f32 %v634, %v1106
    %v1235 = vadd.f32 %v635, %v1107
    %v1236 = vadd.f32 %v636, %v1108
    %v1237 = vadd.f32 %v637, %v1109
    %v1238 = vadd.f32 %v638, %v1110
    %v1239 = vadd.f32 %v639, %v1111
    %v1240 = vadd.f32 %v640, %v1112
    %v1241 = vadd.f32 %v641, %v1113
    %v1242 = vadd.f32 %v642, %v1114
    %v1243 = vlaneseq
    %v1244 = vshrl.u32 %v1243, 7
    %v1245 = vsub.s32 2, %v1244
    %v1246 = vrot.slane %v160, %v1245
    %v1247 = vlaneseq
    %v1248 = vshrl.u32 %v1247, 7
    %v1249 = vsub.s32 2, %v1248
    %v1250 = vrot.slane %v165, %v1249
    %v1251 = vlaneseq
    %v1252 = vshrl.u32 %v1251, 7
    %v1253 = vsub.s32 2, %v1252
    %v1254 = vrot.slane %v166, %v1253
    %v1255 = vlaneseq
    %v1256 = vshrl.u32 %v1255, 7
    %v1257 = vsub.s32 2, %v1256
    %v1258 = vrot.slane %v167, %v1257
    %v1259 = vlaneseq
    %v1260 = vshrl.u32 %v1259, 7
    %v1261 = vsub.s32 2, %v1260
    %v1262 = vrot.slane %v168, %v1261
    %v1263 = vlaneseq
    %v1264 = vshrl.u32 %v1263, 7
    %v1265 = vsub.s32 2, %v1264
    %v1266 = vrot.slane %v169, %v1265
    %1272 = vbcast.lane.b32.xlu0 %v1254, 256
    %v1273 = vpop.permute.xlu0 %1272
    %s1275 = sor.u32 256, 8
    %1276 = vbcast.lane.b32.xlu0 %v1254, %s1275
    %v1277 = vpop.permute.xlu0 %1276
    %s1279 = sor.u32 256, 16
    %1280 = vbcast.lane.b32.xlu0 %v1254, %s1279
    %v1281 = vpop.permute.xlu0 %1280
    %s1283 = sor.u32 256, 24
    %1284 = vbcast.lane.b32.xlu0 %v1254, %s1283
    %v1285 = vpop.permute.xlu0 %1284
    %s1287 = sor.u32 256, 32
    %1288 = vbcast.lane.b32.xlu0 %v1254, %s1287
    %v1289 = vpop.permute.xlu0 %1288
    %s1291 = sor.u32 256, 40
    %1292 = vbcast.lane.b32.xlu0 %v1254, %s1291
    %v1293 = vpop.permute.xlu0 %1292
    %s1295 = sor.u32 256, 48
    %1296 = vbcast.lane.b32.xlu0 %v1254, %s1295
    %v1297 = vpop.permute.xlu0 %1296
    %s1299 = sor.u32 256, 56
    %1300 = vbcast.lane.b32.xlu0 %v1254, %s1299
    %v1301 = vpop.permute.xlu0 %1300
    %s1303 = sor.u32 256, 64
    %1304 = vbcast.lane.b32.xlu0 %v1254, %s1303
    %v1305 = vpop.permute.xlu0 %1304
    %s1307 = sor.u32 256, 72
    %1308 = vbcast.lane.b32.xlu0 %v1254, %s1307
    %v1309 = vpop.permute.xlu0 %1308
    %s1311 = sor.u32 256, 80
    %1312 = vbcast.lane.b32.xlu0 %v1254, %s1311
    %v1313 = vpop.permute.xlu0 %1312
    %s1315 = sor.u32 256, 88
    %1316 = vbcast.lane.b32.xlu0 %v1254, %s1315
    %v1317 = vpop.permute.xlu0 %1316
    %s1319 = sor.u32 256, 96
    %1320 = vbcast.lane.b32.xlu0 %v1254, %s1319
    %v1321 = vpop.permute.xlu0 %1320
    %s1323 = sor.u32 256, 104
    %1324 = vbcast.lane.b32.xlu0 %v1254, %s1323
    %v1325 = vpop.permute.xlu0 %1324
    %s1327 = sor.u32 256, 112
    %1328 = vbcast.lane.b32.xlu0 %v1254, %s1327
    %v1329 = vpop.permute.xlu0 %1328
    %s1331 = sor.u32 256, 120
    %1332 = vbcast.lane.b32.xlu0 %v1254, %s1331
    %v1333 = vpop.permute.xlu0 %1332
    %1335 = vbcast.lane.b32.xlu0 %v1258, 256
    %v1336 = vpop.permute.xlu0 %1335
    %s1338 = sor.u32 256, 8
    %1339 = vbcast.lane.b32.xlu0 %v1258, %s1338
    %v1340 = vpop.permute.xlu0 %1339
    %s1342 = sor.u32 256, 16
    %1343 = vbcast.lane.b32.xlu0 %v1258, %s1342
    %v1344 = vpop.permute.xlu0 %1343
    %s1346 = sor.u32 256, 24
    %1347 = vbcast.lane.b32.xlu0 %v1258, %s1346
    %v1348 = vpop.permute.xlu0 %1347
    %s1350 = sor.u32 256, 32
    %1351 = vbcast.lane.b32.xlu0 %v1258, %s1350
    %v1352 = vpop.permute.xlu0 %1351
    %s1354 = sor.u32 256, 40
    %1355 = vbcast.lane.b32.xlu0 %v1258, %s1354
    %v1356 = vpop.permute.xlu0 %1355
    %s1358 = sor.u32 256, 48
    %1359 = vbcast.lane.b32.xlu0 %v1258, %s1358
    %v1360 = vpop.permute.xlu0 %1359
    %s1362 = sor.u32 256, 56
    %1363 = vbcast.lane.b32.xlu0 %v1258, %s1362
    %v1364 = vpop.permute.xlu0 %1363
    %s1366 = sor.u32 256, 64
    %1367 = vbcast.lane.b32.xlu0 %v1258, %s1366
    %v1368 = vpop.permute.xlu0 %1367
    %s1370 = sor.u32 256, 72
    %1371 = vbcast.lane.b32.xlu0 %v1258, %s1370
    %v1372 = vpop.permute.xlu0 %1371
    %s1374 = sor.u32 256, 80
    %1375 = vbcast.lane.b32.xlu0 %v1258, %s1374
    %v1376 = vpop.permute.xlu0 %1375
    %s1378 = sor.u32 256, 88
    %1379 = vbcast.lane.b32.xlu0 %v1258, %s1378
    %v1380 = vpop.permute.xlu0 %1379
    %s1382 = sor.u32 256, 96
    %1383 = vbcast.lane.b32.xlu0 %v1258, %s1382
    %v1384 = vpop.permute.xlu0 %1383
    %s1386 = sor.u32 256, 104
    %1387 = vbcast.lane.b32.xlu0 %v1258, %s1386
    %v1388 = vpop.permute.xlu0 %1387
    %s1390 = sor.u32 256, 112
    %1391 = vbcast.lane.b32.xlu0 %v1258, %s1390
    %v1392 = vpop.permute.xlu0 %1391
    %s1394 = sor.u32 256, 120
    %1395 = vbcast.lane.b32.xlu0 %v1258, %s1394
    %v1396 = vpop.permute.xlu0 %1395
    %1398 = vbcast.lane.b32.xlu0 %v1262, 256
    %v1399 = vpop.permute.xlu0 %1398
    %s1401 = sor.u32 256, 8
    %1402 = vbcast.lane.b32.xlu0 %v1262, %s1401
    %v1403 = vpop.permute.xlu0 %1402
    %s1405 = sor.u32 256, 16
    %1406 = vbcast.lane.b32.xlu0 %v1262, %s1405
    %v1407 = vpop.permute.xlu0 %1406
    %s1409 = sor.u32 256, 24
    %1410 = vbcast.lane.b32.xlu0 %v1262, %s1409
    %v1411 = vpop.permute.xlu0 %1410
    %s1413 = sor.u32 256, 32
    %1414 = vbcast.lane.b32.xlu0 %v1262, %s1413
    %v1415 = vpop.permute.xlu0 %1414
    %s1417 = sor.u32 256, 40
    %1418 = vbcast.lane.b32.xlu0 %v1262, %s1417
    %v1419 = vpop.permute.xlu0 %1418
    %s1421 = sor.u32 256, 48
    %1422 = vbcast.lane.b32.xlu0 %v1262, %s1421
    %v1423 = vpop.permute.xlu0 %1422
    %s1425 = sor.u32 256, 56
    %1426 = vbcast.lane.b32.xlu0 %v1262, %s1425
    %v1427 = vpop.permute.xlu0 %1426
    %s1429 = sor.u32 256, 64
    %1430 = vbcast.lane.b32.xlu0 %v1262, %s1429
    %v1431 = vpop.permute.xlu0 %1430
    %s1433 = sor.u32 256, 72
    %1434 = vbcast.lane.b32.xlu0 %v1262, %s1433
    %v1435 = vpop.permute.xlu0 %1434
    %s1437 = sor.u32 256, 80
    %1438 = vbcast.lane.b32.xlu0 %v1262, %s1437
    %v1439 = vpop.permute.xlu0 %1438
    %s1441 = sor.u32 256, 88
    %1442 = vbcast.lane.b32.xlu0 %v1262, %s1441
    %v1443 = vpop.permute.xlu0 %1442
    %s1445 = sor.u32 256, 96
    %1446 = vbcast.lane.b32.xlu0 %v1262, %s1445
    %v1447 = vpop.permute.xlu0 %1446
    %s1449 = sor.u32 256, 104
    %1450 = vbcast.lane.b32.xlu0 %v1262, %s1449
    %v1451 = vpop.permute.xlu0 %1450
    %s1453 = sor.u32 256, 112
    %1454 = vbcast.lane.b32.xlu0 %v1262, %s1453
    %v1455 = vpop.permute.xlu0 %1454
    %s1457 = sor.u32 256, 120
    %1458 = vbcast.lane.b32.xlu0 %v1262, %s1457
    %v1459 = vpop.permute.xlu0 %1458
    %1461 = vbcast.lane.b32.xlu0 %v1266, 256
    %v1462 = vpop.permute.xlu0 %1461
    %s1464 = sor.u32 256, 8
    %1465 = vbcast.lane.b32.xlu0 %v1266, %s1464
    %v1466 = vpop.permute.xlu0 %1465
    %s1468 = sor.u32 256, 16
    %1469 = vbcast.lane.b32.xlu0 %v1266, %s1468
    %v1470 = vpop.permute.xlu0 %1469
    %s1472 = sor.u32 256, 24
    %1473 = vbcast.lane.b32.xlu0 %v1266, %s1472
    %v1474 = vpop.permute.xlu0 %1473
    %s1476 = sor.u32 256, 32
    %1477 = vbcast.lane.b32.xlu0 %v1266, %s1476
    %v1478 = vpop.permute.xlu0 %1477
    %s1480 = sor.u32 256, 40
    %1481 = vbcast.lane.b32.xlu0 %v1266, %s1480
    %v1482 = vpop.permute.xlu0 %1481
    %s1484 = sor.u32 256, 48
    %1485 = vbcast.lane.b32.xlu0 %v1266, %s1484
    %v1486 = vpop.permute.xlu0 %1485
    %s1488 = sor.u32 256, 56
    %1489 = vbcast.lane.b32.xlu0 %v1266, %s1488
    %v1490 = vpop.permute.xlu0 %1489
    %s1492 = sor.u32 256, 64
    %1493 = vbcast.lane.b32.xlu0 %v1266, %s1492
    %v1494 = vpop.permute.xlu0 %1493
    %s1496 = sor.u32 256, 72
    %1497 = vbcast.lane.b32.xlu0 %v1266, %s1496
    %v1498 = vpop.permute.xlu0 %1497
    %s1500 = sor.u32 256, 80
    %1501 = vbcast.lane.b32.xlu0 %v1266, %s1500
    %v1502 = vpop.permute.xlu0 %1501
    %s1504 = sor.u32 256, 88
    %1505 = vbcast.lane.b32.xlu0 %v1266, %s1504
    %v1506 = vpop.permute.xlu0 %1505
    %s1508 = sor.u32 256, 96
    %1509 = vbcast.lane.b32.xlu0 %v1266, %s1508
    %v1510 = vpop.permute.xlu0 %1509
    %s1512 = sor.u32 256, 104
    %1513 = vbcast.lane.b32.xlu0 %v1266, %s1512
    %v1514 = vpop.permute.xlu0 %1513
    %s1516 = sor.u32 256, 112
    %1517 = vbcast.lane.b32.xlu0 %v1266, %s1516
    %v1518 = vpop.permute.xlu0 %1517
    %s1520 = sor.u32 256, 120
    %1521 = vbcast.lane.b32.xlu0 %v1266, %s1520
    %v1522 = vpop.permute.xlu0 %1521
    %v1587 = vmul.f32 %v1246, %v1273
    %v1588 = vmul.f32 %v1246, %v1277
    %v1589 = vmul.f32 %v1246, %v1281
    %v1590 = vmul.f32 %v1246, %v1285
    %v1591 = vmul.f32 %v1246, %v1289
    %v1592 = vmul.f32 %v1246, %v1293
    %v1593 = vmul.f32 %v1246, %v1297
    %v1594 = vmul.f32 %v1246, %v1301
    %v1595 = vmul.f32 %v1246, %v1305
    %v1596 = vmul.f32 %v1246, %v1309
    %v1597 = vmul.f32 %v1246, %v1313
    %v1598 = vmul.f32 %v1246, %v1317
    %v1599 = vmul.f32 %v1246, %v1321
    %v1600 = vmul.f32 %v1246, %v1325
    %v1601 = vmul.f32 %v1246, %v1329
    %v1602 = vmul.f32 %v1246, %v1333
    %v1603 = vmul.f32 %v1246, %v1336
    %v1604 = vmul.f32 %v1246, %v1340
    %v1605 = vmul.f32 %v1246, %v1344
    %v1606 = vmul.f32 %v1246, %v1348
    %v1607 = vmul.f32 %v1246, %v1352
    %v1608 = vmul.f32 %v1246, %v1356
    %v1609 = vmul.f32 %v1246, %v1360
    %v1610 = vmul.f32 %v1246, %v1364
    %v1611 = vmul.f32 %v1246, %v1368
    %v1612 = vmul.f32 %v1246, %v1372
    %v1613 = vmul.f32 %v1246, %v1376
    %v1614 = vmul.f32 %v1246, %v1380
    %v1615 = vmul.f32 %v1246, %v1384
    %v1616 = vmul.f32 %v1246, %v1388
    %v1617 = vmul.f32 %v1246, %v1392
    %v1618 = vmul.f32 %v1246, %v1396
    %v1619 = vmul.f32 %v1246, %v1399
    %v1620 = vmul.f32 %v1246, %v1403
    %v1621 = vmul.f32 %v1246, %v1407
    %v1622 = vmul.f32 %v1246, %v1411
    %v1623 = vmul.f32 %v1246, %v1415
    %v1624 = vmul.f32 %v1246, %v1419
    %v1625 = vmul.f32 %v1246, %v1423
    %v1626 = vmul.f32 %v1246, %v1427
    %v1627 = vmul.f32 %v1246, %v1431
    %v1628 = vmul.f32 %v1246, %v1435
    %v1629 = vmul.f32 %v1246, %v1439
    %v1630 = vmul.f32 %v1246, %v1443
    %v1631 = vmul.f32 %v1246, %v1447
    %v1632 = vmul.f32 %v1246, %v1451
    %v1633 = vmul.f32 %v1246, %v1455
    %v1634 = vmul.f32 %v1246, %v1459
    %v1635 = vmul.f32 %v1246, %v1462
    %v1636 = vmul.f32 %v1246, %v1466
    %v1637 = vmul.f32 %v1246, %v1470
    %v1638 = vmul.f32 %v1246, %v1474
    %v1639 = vmul.f32 %v1246, %v1478
    %v1640 = vmul.f32 %v1246, %v1482
    %v1641 = vmul.f32 %v1246, %v1486
    %v1642 = vmul.f32 %v1246, %v1490
    %v1643 = vmul.f32 %v1246, %v1494
    %v1644 = vmul.f32 %v1246, %v1498
    %v1645 = vmul.f32 %v1246, %v1502
    %v1646 = vmul.f32 %v1246, %v1506
    %v1647 = vmul.f32 %v1246, %v1510
    %v1648 = vmul.f32 %v1246, %v1514
    %v1649 = vmul.f32 %v1246, %v1518
    %v1650 = vmul.f32 %v1246, %v1522
    %v1651 = vmul.f32 %v1250, %v1273
    %v1652 = vmul.f32 %v1250, %v1277
    %v1653 = vmul.f32 %v1250, %v1281
    %v1654 = vmul.f32 %v1250, %v1285
    %v1655 = vmul.f32 %v1250, %v1289
    %v1656 = vmul.f32 %v1250, %v1293
    %v1657 = vmul.f32 %v1250, %v1297
    %v1658 = vmul.f32 %v1250, %v1301
    %v1659 = vmul.f32 %v1250, %v1305
    %v1660 = vmul.f32 %v1250, %v1309
    %v1661 = vmul.f32 %v1250, %v1313
    %v1662 = vmul.f32 %v1250, %v1317
    %v1663 = vmul.f32 %v1250, %v1321
    %v1664 = vmul.f32 %v1250, %v1325
    %v1665 = vmul.f32 %v1250, %v1329
    %v1666 = vmul.f32 %v1250, %v1333
    %v1667 = vmul.f32 %v1250, %v1336
    %v1668 = vmul.f32 %v1250, %v1340
    %v1669 = vmul.f32 %v1250, %v1344
    %v1670 = vmul.f32 %v1250, %v1348
    %v1671 = vmul.f32 %v1250, %v1352
    %v1672 = vmul.f32 %v1250, %v1356
    %v1673 = vmul.f32 %v1250, %v1360
    %v1674 = vmul.f32 %v1250, %v1364
    %v1675 = vmul.f32 %v1250, %v1368
    %v1676 = vmul.f32 %v1250, %v1372
    %v1677 = vmul.f32 %v1250, %v1376
    %v1678 = vmul.f32 %v1250, %v1380
    %v1679 = vmul.f32 %v1250, %v1384
    %v1680 = vmul.f32 %v1250, %v1388
    %v1681 = vmul.f32 %v1250, %v1392
    %v1682 = vmul.f32 %v1250, %v1396
    %v1683 = vmul.f32 %v1250, %v1399
    %v1684 = vmul.f32 %v1250, %v1403
    %v1685 = vmul.f32 %v1250, %v1407
    %v1686 = vmul.f32 %v1250, %v1411
    %v1687 = vmul.f32 %v1250, %v1415
    %v1688 = vmul.f32 %v1250, %v1419
    %v1689 = vmul.f32 %v1250, %v1423
    %v1690 = vmul.f32 %v1250, %v1427
    %v1691 = vmul.f32 %v1250, %v1431
    %v1692 = vmul.f32 %v1250, %v1435
    %v1693 = vmul.f32 %v1250, %v1439
    %v1694 = vmul.f32 %v1250, %v1443
    %v1695 = vmul.f32 %v1250, %v1447
    %v1696 = vmul.f32 %v1250, %v1451
    %v1697 = vmul.f32 %v1250, %v1455
    %v1698 = vmul.f32 %v1250, %v1459
    %v1699 = vmul.f32 %v1250, %v1462
    %v1700 = vmul.f32 %v1250, %v1466
    %v1701 = vmul.f32 %v1250, %v1470
    %v1702 = vmul.f32 %v1250, %v1474
    %v1703 = vmul.f32 %v1250, %v1478
    %v1704 = vmul.f32 %v1250, %v1482
    %v1705 = vmul.f32 %v1250, %v1486
    %v1706 = vmul.f32 %v1250, %v1490
    %v1707 = vmul.f32 %v1250, %v1494
    %v1708 = vmul.f32 %v1250, %v1498
    %v1709 = vmul.f32 %v1250, %v1502
    %v1710 = vmul.f32 %v1250, %v1506
    %v1711 = vmul.f32 %v1250, %v1510
    %v1712 = vmul.f32 %v1250, %v1514
    %v1713 = vmul.f32 %v1250, %v1518
    %v1714 = vmul.f32 %v1250, %v1522
    %v1715 = vadd.f32 %v1115, %v1587
    %v1716 = vadd.f32 %v1116, %v1588
    %v1717 = vadd.f32 %v1117, %v1589
    %v1718 = vadd.f32 %v1118, %v1590
    %v1719 = vadd.f32 %v1119, %v1591
    %v1720 = vadd.f32 %v1120, %v1592
    %v1721 = vadd.f32 %v1121, %v1593
    %v1722 = vadd.f32 %v1122, %v1594
    %v1723 = vadd.f32 %v1123, %v1595
    %v1724 = vadd.f32 %v1124, %v1596
    %v1725 = vadd.f32 %v1125, %v1597
    %v1726 = vadd.f32 %v1126, %v1598
    %v1727 = vadd.f32 %v1127, %v1599
    %v1728 = vadd.f32 %v1128, %v1600
    %v1729 = vadd.f32 %v1129, %v1601
    %v1730 = vadd.f32 %v1130, %v1602
    %v1731 = vadd.f32 %v1131, %v1603
    %v1732 = vadd.f32 %v1132, %v1604
    %v1733 = vadd.f32 %v1133, %v1605
    %v1734 = vadd.f32 %v1134, %v1606
    %v1735 = vadd.f32 %v1135, %v1607
    %v1736 = vadd.f32 %v1136, %v1608
    %v1737 = vadd.f32 %v1137, %v1609
    %v1738 = vadd.f32 %v1138, %v1610
    %v1739 = vadd.f32 %v1139, %v1611
    %v1740 = vadd.f32 %v1140, %v1612
    %v1741 = vadd.f32 %v1141, %v1613
    %v1742 = vadd.f32 %v1142, %v1614
    %v1743 = vadd.f32 %v1143, %v1615
    %v1744 = vadd.f32 %v1144, %v1616
    %v1745 = vadd.f32 %v1145, %v1617
    %v1746 = vadd.f32 %v1146, %v1618
    %v1747 = vadd.f32 %v1147, %v1619
    %v1748 = vadd.f32 %v1148, %v1620
    %v1749 = vadd.f32 %v1149, %v1621
    %v1750 = vadd.f32 %v1150, %v1622
    %v1751 = vadd.f32 %v1151, %v1623
    %v1752 = vadd.f32 %v1152, %v1624
    %v1753 = vadd.f32 %v1153, %v1625
    %v1754 = vadd.f32 %v1154, %v1626
    %v1755 = vadd.f32 %v1155, %v1627
    %v1756 = vadd.f32 %v1156, %v1628
    %v1757 = vadd.f32 %v1157, %v1629
    %v1758 = vadd.f32 %v1158, %v1630
    %v1759 = vadd.f32 %v1159, %v1631
    %v1760 = vadd.f32 %v1160, %v1632
    %v1761 = vadd.f32 %v1161, %v1633
    %v1762 = vadd.f32 %v1162, %v1634
    %v1763 = vadd.f32 %v1163, %v1635
    %v1764 = vadd.f32 %v1164, %v1636
    %v1765 = vadd.f32 %v1165, %v1637
    %v1766 = vadd.f32 %v1166, %v1638
    %v1767 = vadd.f32 %v1167, %v1639
    %v1768 = vadd.f32 %v1168, %v1640
    %v1769 = vadd.f32 %v1169, %v1641
    %v1770 = vadd.f32 %v1170, %v1642
    %v1771 = vadd.f32 %v1171, %v1643
    %v1772 = vadd.f32 %v1172, %v1644
    %v1773 = vadd.f32 %v1173, %v1645
    %v1774 = vadd.f32 %v1174, %v1646
    %v1775 = vadd.f32 %v1175, %v1647
    %v1776 = vadd.f32 %v1176, %v1648
    %v1777 = vadd.f32 %v1177, %v1649
    %v1778 = vadd.f32 %v1178, %v1650
    %v1779 = vadd.f32 %v1179, %v1651
    %v1780 = vadd.f32 %v1180, %v1652
    %v1781 = vadd.f32 %v1181, %v1653
    %v1782 = vadd.f32 %v1182, %v1654
    %v1783 = vadd.f32 %v1183, %v1655
    %v1784 = vadd.f32 %v1184, %v1656
    %v1785 = vadd.f32 %v1185, %v1657
    %v1786 = vadd.f32 %v1186, %v1658
    %v1787 = vadd.f32 %v1187, %v1659
    %v1788 = vadd.f32 %v1188, %v1660
    %v1789 = vadd.f32 %v1189, %v1661
    %v1790 = vadd.f32 %v1190, %v1662
    %v1791 = vadd.f32 %v1191, %v1663
    %v1792 = vadd.f32 %v1192, %v1664
    %v1793 = vadd.f32 %v1193, %v1665
    %v1794 = vadd.f32 %v1194, %v1666
    %v1795 = vadd.f32 %v1195, %v1667
    %v1796 = vadd.f32 %v1196, %v1668
    %v1797 = vadd.f32 %v1197, %v1669
    %v1798 = vadd.f32 %v1198, %v1670
    %v1799 = vadd.f32 %v1199, %v1671
    %v1800 = vadd.f32 %v1200, %v1672
    %v1801 = vadd.f32 %v1201, %v1673
    %v1802 = vadd.f32 %v1202, %v1674
    %v1803 = vadd.f32 %v1203, %v1675
    %v1804 = vadd.f32 %v1204, %v1676
    %v1805 = vadd.f32 %v1205, %v1677
    %v1806 = vadd.f32 %v1206, %v1678
    %v1807 = vadd.f32 %v1207, %v1679
    %v1808 = vadd.f32 %v1208, %v1680
    %v1809 = vadd.f32 %v1209, %v1681
    %v1810 = vadd.f32 %v1210, %v1682
    %v1811 = vadd.f32 %v1211, %v1683
    %v1812 = vadd.f32 %v1212, %v1684
    %v1813 = vadd.f32 %v1213, %v1685
    %v1814 = vadd.f32 %v1214, %v1686
    %v1815 = vadd.f32 %v1215, %v1687
    %v1816 = vadd.f32 %v1216, %v1688
    %v1817 = vadd.f32 %v1217, %v1689
    %v1818 = vadd.f32 %v1218, %v1690
    %v1819 = vadd.f32 %v1219, %v1691
    %v1820 = vadd.f32 %v1220, %v1692
    %v1821 = vadd.f32 %v1221, %v1693
    %v1822 = vadd.f32 %v1222, %v1694
    %v1823 = vadd.f32 %v1223, %v1695
    %v1824 = vadd.f32 %v1224, %v1696
    %v1825 = vadd.f32 %v1225, %v1697
    %v1826 = vadd.f32 %v1226, %v1698
    %v1827 = vadd.f32 %v1227, %v1699
    %v1828 = vadd.f32 %v1228, %v1700
    %v1829 = vadd.f32 %v1229, %v1701
    %v1830 = vadd.f32 %v1230, %v1702
    %v1831 = vadd.f32 %v1231, %v1703
    %v1832 = vadd.f32 %v1232, %v1704
    %v1833 = vadd.f32 %v1233, %v1705
    %v1834 = vadd.f32 %v1234, %v1706
    %v1835 = vadd.f32 %v1235, %v1707
    %v1836 = vadd.f32 %v1236, %v1708
    %v1837 = vadd.f32 %v1237, %v1709
    %v1838 = vadd.f32 %v1238, %v1710
    %v1839 = vadd.f32 %v1239, %v1711
    %v1840 = vadd.f32 %v1240, %v1712
    %v1841 = vadd.f32 %v1241, %v1713
    %v1842 = vadd.f32 %v1242, %v1714
    %v1843 = vlaneseq
    %v1844 = vshrl.u32 %v1843, 7
    %v1845 = vsub.s32 3, %v1844
    %v1846 = vrot.slane %v160, %v1845
    %v1847 = vlaneseq
    %v1848 = vshrl.u32 %v1847, 7
    %v1849 = vsub.s32 3, %v1848
    %v1850 = vrot.slane %v165, %v1849
    %v1851 = vlaneseq
    %v1852 = vshrl.u32 %v1851, 7
    %v1853 = vsub.s32 3, %v1852
    %v1854 = vrot.slane %v166, %v1853
    %v1855 = vlaneseq
    %v1856 = vshrl.u32 %v1855, 7
    %v1857 = vsub.s32 3, %v1856
    %v1858 = vrot.slane %v167, %v1857
    %v1859 = vlaneseq
    %v1860 = vshrl.u32 %v1859, 7
    %v1861 = vsub.s32 3, %v1860
    %v1862 = vrot.slane %v168, %v1861
    %v1863 = vlaneseq
    %v1864 = vshrl.u32 %v1863, 7
    %v1865 = vsub.s32 3, %v1864
    %v1866 = vrot.slane %v169, %v1865
    %1872 = vbcast.lane.b32.xlu0 %v1854, 256
    %v1873 = vpop.permute.xlu0 %1872
    %s1875 = sor.u32 256, 8
    %1876 = vbcast.lane.b32.xlu0 %v1854, %s1875
    %v1877 = vpop.permute.xlu0 %1876
    %s1879 = sor.u32 256, 16
    %1880 = vbcast.lane.b32.xlu0 %v1854, %s1879
    %v1881 = vpop.permute.xlu0 %1880
    %s1883 = sor.u32 256, 24
    %1884 = vbcast.lane.b32.xlu0 %v1854, %s1883
    %v1885 = vpop.permute.xlu0 %1884
    %s1887 = sor.u32 256, 32
    %1888 = vbcast.lane.b32.xlu0 %v1854, %s1887
    %v1889 = vpop.permute.xlu0 %1888
    %s1891 = sor.u32 256, 40
    %1892 = vbcast.lane.b32.xlu0 %v1854, %s1891
    %v1893 = vpop.permute.xlu0 %1892
    %s1895 = sor.u32 256, 48
    %1896 = vbcast.lane.b32.xlu0 %v1854, %s1895
    %v1897 = vpop.permute.xlu0 %1896
    %s1899 = sor.u32 256, 56
    %1900 = vbcast.lane.b32.xlu0 %v1854, %s1899
    %v1901 = vpop.permute.xlu0 %1900
    %s1903 = sor.u32 256, 64
    %1904 = vbcast.lane.b32.xlu0 %v1854, %s1903
    %v1905 = vpop.permute.xlu0 %1904
    %s1907 = sor.u32 256, 72
    %1908 = vbcast.lane.b32.xlu0 %v1854, %s1907
    %v1909 = vpop.permute.xlu0 %1908
    %s1911 = sor.u32 256, 80
    %1912 = vbcast.lane.b32.xlu0 %v1854, %s1911
    %v1913 = vpop.permute.xlu0 %1912
    %s1915 = sor.u32 256, 88
    %1916 = vbcast.lane.b32.xlu0 %v1854, %s1915
    %v1917 = vpop.permute.xlu0 %1916
    %s1919 = sor.u32 256, 96
    %1920 = vbcast.lane.b32.xlu0 %v1854, %s1919
    %v1921 = vpop.permute.xlu0 %1920
    %s1923 = sor.u32 256, 104
    %1924 = vbcast.lane.b32.xlu0 %v1854, %s1923
    %v1925 = vpop.permute.xlu0 %1924
    %s1927 = sor.u32 256, 112
    %1928 = vbcast.lane.b32.xlu0 %v1854, %s1927
    %v1929 = vpop.permute.xlu0 %1928
    %s1931 = sor.u32 256, 120
    %1932 = vbcast.lane.b32.xlu0 %v1854, %s1931
    %v1933 = vpop.permute.xlu0 %1932
    %1935 = vbcast.lane.b32.xlu0 %v1858, 256
    %v1936 = vpop.permute.xlu0 %1935
    %s1938 = sor.u32 256, 8
    %1939 = vbcast.lane.b32.xlu0 %v1858, %s1938
    %v1940 = vpop.permute.xlu0 %1939
    %s1942 = sor.u32 256, 16
    %1943 = vbcast.lane.b32.xlu0 %v1858, %s1942
    %v1944 = vpop.permute.xlu0 %1943
    %s1946 = sor.u32 256, 24
    %1947 = vbcast.lane.b32.xlu0 %v1858, %s1946
    %v1948 = vpop.permute.xlu0 %1947
    %s1950 = sor.u32 256, 32
    %1951 = vbcast.lane.b32.xlu0 %v1858, %s1950
    %v1952 = vpop.permute.xlu0 %1951
    %s1954 = sor.u32 256, 40
    %1955 = vbcast.lane.b32.xlu0 %v1858, %s1954
    %v1956 = vpop.permute.xlu0 %1955
    %s1958 = sor.u32 256, 48
    %1959 = vbcast.lane.b32.xlu0 %v1858, %s1958
    %v1960 = vpop.permute.xlu0 %1959
    %s1962 = sor.u32 256, 56
    %1963 = vbcast.lane.b32.xlu0 %v1858, %s1962
    %v1964 = vpop.permute.xlu0 %1963
    %s1966 = sor.u32 256, 64
    %1967 = vbcast.lane.b32.xlu0 %v1858, %s1966
    %v1968 = vpop.permute.xlu0 %1967
    %s1970 = sor.u32 256, 72
    %1971 = vbcast.lane.b32.xlu0 %v1858, %s1970
    %v1972 = vpop.permute.xlu0 %1971
    %s1974 = sor.u32 256, 80
    %1975 = vbcast.lane.b32.xlu0 %v1858, %s1974
    %v1976 = vpop.permute.xlu0 %1975
    %s1978 = sor.u32 256, 88
    %1979 = vbcast.lane.b32.xlu0 %v1858, %s1978
    %v1980 = vpop.permute.xlu0 %1979
    %s1982 = sor.u32 256, 96
    %1983 = vbcast.lane.b32.xlu0 %v1858, %s1982
    %v1984 = vpop.permute.xlu0 %1983
    %s1986 = sor.u32 256, 104
    %1987 = vbcast.lane.b32.xlu0 %v1858, %s1986
    %v1988 = vpop.permute.xlu0 %1987
    %s1990 = sor.u32 256, 112
    %1991 = vbcast.lane.b32.xlu0 %v1858, %s1990
    %v1992 = vpop.permute.xlu0 %1991
    %s1994 = sor.u32 256, 120
    %1995 = vbcast.lane.b32.xlu0 %v1858, %s1994
    %v1996 = vpop.permute.xlu0 %1995
    %1998 = vbcast.lane.b32.xlu0 %v1862, 256
    %v1999 = vpop.permute.xlu0 %1998
    %s2001 = sor.u32 256, 8
    %2002 = vbcast.lane.b32.xlu0 %v1862, %s2001
    %v2003 = vpop.permute.xlu0 %2002
    %s2005 = sor.u32 256, 16
    %2006 = vbcast.lane.b32.xlu0 %v1862, %s2005
    %v2007 = vpop.permute.xlu0 %2006
    %s2009 = sor.u32 256, 24
    %2010 = vbcast.lane.b32.xlu0 %v1862, %s2009
    %v2011 = vpop.permute.xlu0 %2010
    %s2013 = sor.u32 256, 32
    %2014 = vbcast.lane.b32.xlu0 %v1862, %s2013
    %v2015 = vpop.permute.xlu0 %2014
    %s2017 = sor.u32 256, 40
    %2018 = vbcast.lane.b32.xlu0 %v1862, %s2017
    %v2019 = vpop.permute.xlu0 %2018
    %s2021 = sor.u32 256, 48
    %2022 = vbcast.lane.b32.xlu0 %v1862, %s2021
    %v2023 = vpop.permute.xlu0 %2022
    %s2025 = sor.u32 256, 56
    %2026 = vbcast.lane.b32.xlu0 %v1862, %s2025
    %v2027 = vpop.permute.xlu0 %2026
    %s2029 = sor.u32 256, 64
    %2030 = vbcast.lane.b32.xlu0 %v1862, %s2029
    %v2031 = vpop.permute.xlu0 %2030
    %s2033 = sor.u32 256, 72
    %2034 = vbcast.lane.b32.xlu0 %v1862, %s2033
    %v2035 = vpop.permute.xlu0 %2034
    %s2037 = sor.u32 256, 80
    %2038 = vbcast.lane.b32.xlu0 %v1862, %s2037
    %v2039 = vpop.permute.xlu0 %2038
    %s2041 = sor.u32 256, 88
    %2042 = vbcast.lane.b32.xlu0 %v1862, %s2041
    %v2043 = vpop.permute.xlu0 %2042
    %s2045 = sor.u32 256, 96
    %2046 = vbcast.lane.b32.xlu0 %v1862, %s2045
    %v2047 = vpop.permute.xlu0 %2046
    %s2049 = sor.u32 256, 104
    %2050 = vbcast.lane.b32.xlu0 %v1862, %s2049
    %v2051 = vpop.permute.xlu0 %2050
    %s2053 = sor.u32 256, 112
    %2054 = vbcast.lane.b32.xlu0 %v1862, %s2053
    %v2055 = vpop.permute.xlu0 %2054
    %s2057 = sor.u32 256, 120
    %2058 = vbcast.lane.b32.xlu0 %v1862, %s2057
    %v2059 = vpop.permute.xlu0 %2058
    %2061 = vbcast.lane.b32.xlu0 %v1866, 256
    %v2062 = vpop.permute.xlu0 %2061
    %s2064 = sor.u32 256, 8
    %2065 = vbcast.lane.b32.xlu0 %v1866, %s2064
    %v2066 = vpop.permute.xlu0 %2065
    %s2068 = sor.u32 256, 16
    %2069 = vbcast.lane.b32.xlu0 %v1866, %s2068
    %v2070 = vpop.permute.xlu0 %2069
    %s2072 = sor.u32 256, 24
    %2073 = vbcast.lane.b32.xlu0 %v1866, %s2072
    %v2074 = vpop.permute.xlu0 %2073
    %s2076 = sor.u32 256, 32
    %2077 = vbcast.lane.b32.xlu0 %v1866, %s2076
    %v2078 = vpop.permute.xlu0 %2077
    %s2080 = sor.u32 256, 40
    %2081 = vbcast.lane.b32.xlu0 %v1866, %s2080
    %v2082 = vpop.permute.xlu0 %2081
    %s2084 = sor.u32 256, 48
    %2085 = vbcast.lane.b32.xlu0 %v1866, %s2084
    %v2086 = vpop.permute.xlu0 %2085
    %s2088 = sor.u32 256, 56
    %2089 = vbcast.lane.b32.xlu0 %v1866, %s2088
    %v2090 = vpop.permute.xlu0 %2089
    %s2092 = sor.u32 256, 64
    %2093 = vbcast.lane.b32.xlu0 %v1866, %s2092
    %v2094 = vpop.permute.xlu0 %2093
    %s2096 = sor.u32 256, 72
    %2097 = vbcast.lane.b32.xlu0 %v1866, %s2096
    %v2098 = vpop.permute.xlu0 %2097
    %s2100 = sor.u32 256, 80
    %2101 = vbcast.lane.b32.xlu0 %v1866, %s2100
    %v2102 = vpop.permute.xlu0 %2101
    %s2104 = sor.u32 256, 88
    %2105 = vbcast.lane.b32.xlu0 %v1866, %s2104
    %v2106 = vpop.permute.xlu0 %2105
    %s2108 = sor.u32 256, 96
    %2109 = vbcast.lane.b32.xlu0 %v1866, %s2108
    %v2110 = vpop.permute.xlu0 %2109
    %s2112 = sor.u32 256, 104
    %2113 = vbcast.lane.b32.xlu0 %v1866, %s2112
    %v2114 = vpop.permute.xlu0 %2113
    %s2116 = sor.u32 256, 112
    %2117 = vbcast.lane.b32.xlu0 %v1866, %s2116
    %v2118 = vpop.permute.xlu0 %2117
    %s2120 = sor.u32 256, 120
    %2121 = vbcast.lane.b32.xlu0 %v1866, %s2120
    %v2122 = vpop.permute.xlu0 %2121
    %v2187 = vmul.f32 %v1846, %v1873
    %v2188 = vmul.f32 %v1846, %v1877
    %v2189 = vmul.f32 %v1846, %v1881
    %v2190 = vmul.f32 %v1846, %v1885
    %v2191 = vmul.f32 %v1846, %v1889
    %v2192 = vmul.f32 %v1846, %v1893
    %v2193 = vmul.f32 %v1846, %v1897
    %v2194 = vmul.f32 %v1846, %v1901
    %v2195 = vmul.f32 %v1846, %v1905
    %v2196 = vmul.f32 %v1846, %v1909
    %v2197 = vmul.f32 %v1846, %v1913
    %v2198 = vmul.f32 %v1846, %v1917
    %v2199 = vmul.f32 %v1846, %v1921
    %v2200 = vmul.f32 %v1846, %v1925
    %v2201 = vmul.f32 %v1846, %v1929
    %v2202 = vmul.f32 %v1846, %v1933
    %v2203 = vmul.f32 %v1846, %v1936
    %v2204 = vmul.f32 %v1846, %v1940
    %v2205 = vmul.f32 %v1846, %v1944
    %v2206 = vmul.f32 %v1846, %v1948
    %v2207 = vmul.f32 %v1846, %v1952
    %v2208 = vmul.f32 %v1846, %v1956
    %v2209 = vmul.f32 %v1846, %v1960
    %v2210 = vmul.f32 %v1846, %v1964
    %v2211 = vmul.f32 %v1846, %v1968
    %v2212 = vmul.f32 %v1846, %v1972
    %v2213 = vmul.f32 %v1846, %v1976
    %v2214 = vmul.f32 %v1846, %v1980
    %v2215 = vmul.f32 %v1846, %v1984
    %v2216 = vmul.f32 %v1846, %v1988
    %v2217 = vmul.f32 %v1846, %v1992
    %v2218 = vmul.f32 %v1846, %v1996
    %v2219 = vmul.f32 %v1846, %v1999
    %v2220 = vmul.f32 %v1846, %v2003
    %v2221 = vmul.f32 %v1846, %v2007
    %v2222 = vmul.f32 %v1846, %v2011
    %v2223 = vmul.f32 %v1846, %v2015
    %v2224 = vmul.f32 %v1846, %v2019
    %v2225 = vmul.f32 %v1846, %v2023
    %v2226 = vmul.f32 %v1846, %v2027
    %v2227 = vmul.f32 %v1846, %v2031
    %v2228 = vmul.f32 %v1846, %v2035
    %v2229 = vmul.f32 %v1846, %v2039
    %v2230 = vmul.f32 %v1846, %v2043
    %v2231 = vmul.f32 %v1846, %v2047
    %v2232 = vmul.f32 %v1846, %v2051
    %v2233 = vmul.f32 %v1846, %v2055
    %v2234 = vmul.f32 %v1846, %v2059
    %v2235 = vmul.f32 %v1846, %v2062
    %v2236 = vmul.f32 %v1846, %v2066
    %v2237 = vmul.f32 %v1846, %v2070
    %v2238 = vmul.f32 %v1846, %v2074
    %v2239 = vmul.f32 %v1846, %v2078
    %v2240 = vmul.f32 %v1846, %v2082
    %v2241 = vmul.f32 %v1846, %v2086
    %v2242 = vmul.f32 %v1846, %v2090
    %v2243 = vmul.f32 %v1846, %v2094
    %v2244 = vmul.f32 %v1846, %v2098
    %v2245 = vmul.f32 %v1846, %v2102
    %v2246 = vmul.f32 %v1846, %v2106
    %v2247 = vmul.f32 %v1846, %v2110
    %v2248 = vmul.f32 %v1846, %v2114
    %v2249 = vmul.f32 %v1846, %v2118
    %v2250 = vmul.f32 %v1846, %v2122
    %v2251 = vmul.f32 %v1850, %v1873
    %v2252 = vmul.f32 %v1850, %v1877
    %v2253 = vmul.f32 %v1850, %v1881
    %v2254 = vmul.f32 %v1850, %v1885
    %v2255 = vmul.f32 %v1850, %v1889
    %v2256 = vmul.f32 %v1850, %v1893
    %v2257 = vmul.f32 %v1850, %v1897
    %v2258 = vmul.f32 %v1850, %v1901
    %v2259 = vmul.f32 %v1850, %v1905
    %v2260 = vmul.f32 %v1850, %v1909
    %v2261 = vmul.f32 %v1850, %v1913
    %v2262 = vmul.f32 %v1850, %v1917
    %v2263 = vmul.f32 %v1850, %v1921
    %v2264 = vmul.f32 %v1850, %v1925
    %v2265 = vmul.f32 %v1850, %v1929
    %v2266 = vmul.f32 %v1850, %v1933
    %v2267 = vmul.f32 %v1850, %v1936
    %v2268 = vmul.f32 %v1850, %v1940
    %v2269 = vmul.f32 %v1850, %v1944
    %v2270 = vmul.f32 %v1850, %v1948
    %v2271 = vmul.f32 %v1850, %v1952
    %v2272 = vmul.f32 %v1850, %v1956
    %v2273 = vmul.f32 %v1850, %v1960
    %v2274 = vmul.f32 %v1850, %v1964
    %v2275 = vmul.f32 %v1850, %v1968
    %v2276 = vmul.f32 %v1850, %v1972
    %v2277 = vmul.f32 %v1850, %v1976
    %v2278 = vmul.f32 %v1850, %v1980
    %v2279 = vmul.f32 %v1850, %v1984
    %v2280 = vmul.f32 %v1850, %v1988
    %v2281 = vmul.f32 %v1850, %v1992
    %v2282 = vmul.f32 %v1850, %v1996
    %v2283 = vmul.f32 %v1850, %v1999
    %v2284 = vmul.f32 %v1850, %v2003
    %v2285 = vmul.f32 %v1850, %v2007
    %v2286 = vmul.f32 %v1850, %v2011
    %v2287 = vmul.f32 %v1850, %v2015
    %v2288 = vmul.f32 %v1850, %v2019
    %v2289 = vmul.f32 %v1850, %v2023
    %v2290 = vmul.f32 %v1850, %v2027
    %v2291 = vmul.f32 %v1850, %v2031
    %v2292 = vmul.f32 %v1850, %v2035
    %v2293 = vmul.f32 %v1850, %v2039
    %v2294 = vmul.f32 %v1850, %v2043
    %v2295 = vmul.f32 %v1850, %v2047
    %v2296 = vmul.f32 %v1850, %v2051
    %v2297 = vmul.f32 %v1850, %v2055
    %v2298 = vmul.f32 %v1850, %v2059
    %v2299 = vmul.f32 %v1850, %v2062
    %v2300 = vmul.f32 %v1850, %v2066
    %v2301 = vmul.f32 %v1850, %v2070
    %v2302 = vmul.f32 %v1850, %v2074
    %v2303 = vmul.f32 %v1850, %v2078
    %v2304 = vmul.f32 %v1850, %v2082
    %v2305 = vmul.f32 %v1850, %v2086
    %v2306 = vmul.f32 %v1850, %v2090
    %v2307 = vmul.f32 %v1850, %v2094
    %v2308 = vmul.f32 %v1850, %v2098
    %v2309 = vmul.f32 %v1850, %v2102
    %v2310 = vmul.f32 %v1850, %v2106
    %v2311 = vmul.f32 %v1850, %v2110
    %v2312 = vmul.f32 %v1850, %v2114
    %v2313 = vmul.f32 %v1850, %v2118
    %v2314 = vmul.f32 %v1850, %v2122
    %v2315 = vadd.f32 %v1715, %v2187
    %v2316 = vadd.f32 %v1716, %v2188
    %v2317 = vadd.f32 %v1717, %v2189
    %v2318 = vadd.f32 %v1718, %v2190
    %v2319 = vadd.f32 %v1719, %v2191
    %v2320 = vadd.f32 %v1720, %v2192
    %v2321 = vadd.f32 %v1721, %v2193
    %v2322 = vadd.f32 %v1722, %v2194
    %v2323 = vadd.f32 %v1723, %v2195
    %v2324 = vadd.f32 %v1724, %v2196
    %v2325 = vadd.f32 %v1725, %v2197
    %v2326 = vadd.f32 %v1726, %v2198
    %v2327 = vadd.f32 %v1727, %v2199
    %v2328 = vadd.f32 %v1728, %v2200
    %v2329 = vadd.f32 %v1729, %v2201
    %v2330 = vadd.f32 %v1730, %v2202
    %v2331 = vadd.f32 %v1731, %v2203
    %v2332 = vadd.f32 %v1732, %v2204
    %v2333 = vadd.f32 %v1733, %v2205
    %v2334 = vadd.f32 %v1734, %v2206
    %v2335 = vadd.f32 %v1735, %v2207
    %v2336 = vadd.f32 %v1736, %v2208
    %v2337 = vadd.f32 %v1737, %v2209
    %v2338 = vadd.f32 %v1738, %v2210
    %v2339 = vadd.f32 %v1739, %v2211
    %v2340 = vadd.f32 %v1740, %v2212
    %v2341 = vadd.f32 %v1741, %v2213
    %v2342 = vadd.f32 %v1742, %v2214
    %v2343 = vadd.f32 %v1743, %v2215
    %v2344 = vadd.f32 %v1744, %v2216
    %v2345 = vadd.f32 %v1745, %v2217
    %v2346 = vadd.f32 %v1746, %v2218
    %v2347 = vadd.f32 %v1747, %v2219
    %v2348 = vadd.f32 %v1748, %v2220
    %v2349 = vadd.f32 %v1749, %v2221
    %v2350 = vadd.f32 %v1750, %v2222
    %v2351 = vadd.f32 %v1751, %v2223
    %v2352 = vadd.f32 %v1752, %v2224
    %v2353 = vadd.f32 %v1753, %v2225
    %v2354 = vadd.f32 %v1754, %v2226
    %v2355 = vadd.f32 %v1755, %v2227
    %v2356 = vadd.f32 %v1756, %v2228
    %v2357 = vadd.f32 %v1757, %v2229
    %v2358 = vadd.f32 %v1758, %v2230
    %v2359 = vadd.f32 %v1759, %v2231
    %v2360 = vadd.f32 %v1760, %v2232
    %v2361 = vadd.f32 %v1761, %v2233
    %v2362 = vadd.f32 %v1762, %v2234
    %v2363 = vadd.f32 %v1763, %v2235
    %v2364 = vadd.f32 %v1764, %v2236
    %v2365 = vadd.f32 %v1765, %v2237
    %v2366 = vadd.f32 %v1766, %v2238
    %v2367 = vadd.f32 %v1767, %v2239
    %v2368 = vadd.f32 %v1768, %v2240
    %v2369 = vadd.f32 %v1769, %v2241
    %v2370 = vadd.f32 %v1770, %v2242
    %v2371 = vadd.f32 %v1771, %v2243
    %v2372 = vadd.f32 %v1772, %v2244
    %v2373 = vadd.f32 %v1773, %v2245
    %v2374 = vadd.f32 %v1774, %v2246
    %v2375 = vadd.f32 %v1775, %v2247
    %v2376 = vadd.f32 %v1776, %v2248
    %v2377 = vadd.f32 %v1777, %v2249
    %v2378 = vadd.f32 %v1778, %v2250
    %v2379 = vadd.f32 %v1779, %v2251
    %v2380 = vadd.f32 %v1780, %v2252
    %v2381 = vadd.f32 %v1781, %v2253
    %v2382 = vadd.f32 %v1782, %v2254
    %v2383 = vadd.f32 %v1783, %v2255
    %v2384 = vadd.f32 %v1784, %v2256
    %v2385 = vadd.f32 %v1785, %v2257
    %v2386 = vadd.f32 %v1786, %v2258
    %v2387 = vadd.f32 %v1787, %v2259
    %v2388 = vadd.f32 %v1788, %v2260
    %v2389 = vadd.f32 %v1789, %v2261
    %v2390 = vadd.f32 %v1790, %v2262
    %v2391 = vadd.f32 %v1791, %v2263
    %v2392 = vadd.f32 %v1792, %v2264
    %v2393 = vadd.f32 %v1793, %v2265
    %v2394 = vadd.f32 %v1794, %v2266
    %v2395 = vadd.f32 %v1795, %v2267
    %v2396 = vadd.f32 %v1796, %v2268
    %v2397 = vadd.f32 %v1797, %v2269
    %v2398 = vadd.f32 %v1798, %v2270
    %v2399 = vadd.f32 %v1799, %v2271
    %v2400 = vadd.f32 %v1800, %v2272
    %v2401 = vadd.f32 %v1801, %v2273
    %v2402 = vadd.f32 %v1802, %v2274
    %v2403 = vadd.f32 %v1803, %v2275
    %v2404 = vadd.f32 %v1804, %v2276
    %v2405 = vadd.f32 %v1805, %v2277
    %v2406 = vadd.f32 %v1806, %v2278
    %v2407 = vadd.f32 %v1807, %v2279
    %v2408 = vadd.f32 %v1808, %v2280
    %v2409 = vadd.f32 %v1809, %v2281
    %v2410 = vadd.f32 %v1810, %v2282
    %v2411 = vadd.f32 %v1811, %v2283
    %v2412 = vadd.f32 %v1812, %v2284
    %v2413 = vadd.f32 %v1813, %v2285
    %v2414 = vadd.f32 %v1814, %v2286
    %v2415 = vadd.f32 %v1815, %v2287
    %v2416 = vadd.f32 %v1816, %v2288
    %v2417 = vadd.f32 %v1817, %v2289
    %v2418 = vadd.f32 %v1818, %v2290
    %v2419 = vadd.f32 %v1819, %v2291
    %v2420 = vadd.f32 %v1820, %v2292
    %v2421 = vadd.f32 %v1821, %v2293
    %v2422 = vadd.f32 %v1822, %v2294
    %v2423 = vadd.f32 %v1823, %v2295
    %v2424 = vadd.f32 %v1824, %v2296
    %v2425 = vadd.f32 %v1825, %v2297
    %v2426 = vadd.f32 %v1826, %v2298
    %v2427 = vadd.f32 %v1827, %v2299
    %v2428 = vadd.f32 %v1828, %v2300
    %v2429 = vadd.f32 %v1829, %v2301
    %v2430 = vadd.f32 %v1830, %v2302
    %v2431 = vadd.f32 %v1831, %v2303
    %v2432 = vadd.f32 %v1832, %v2304
    %v2433 = vadd.f32 %v1833, %v2305
    %v2434 = vadd.f32 %v1834, %v2306
    %v2435 = vadd.f32 %v1835, %v2307
    %v2436 = vadd.f32 %v1836, %v2308
    %v2437 = vadd.f32 %v1837, %v2309
    %v2438 = vadd.f32 %v1838, %v2310
    %v2439 = vadd.f32 %v1839, %v2311
    %v2440 = vadd.f32 %v1840, %v2312
    %v2441 = vadd.f32 %v1841, %v2313
    %v2442 = vadd.f32 %v1842, %v2314
    %v2443 = vlaneseq
    %v2444 = vshrl.u32 %v2443, 7
    %v2445 = vsub.s32 4, %v2444
    %v2446 = vrot.slane %v160, %v2445
    %v2447 = vlaneseq
    %v2448 = vshrl.u32 %v2447, 7
    %v2449 = vsub.s32 4, %v2448
    %v2450 = vrot.slane %v165, %v2449
    %v2451 = vlaneseq
    %v2452 = vshrl.u32 %v2451, 7
    %v2453 = vsub.s32 4, %v2452
    %v2454 = vrot.slane %v166, %v2453
    %v2455 = vlaneseq
    %v2456 = vshrl.u32 %v2455, 7
    %v2457 = vsub.s32 4, %v2456
    %v2458 = vrot.slane %v167, %v2457
    %v2459 = vlaneseq
    %v2460 = vshrl.u32 %v2459, 7
    %v2461 = vsub.s32 4, %v2460
    %v2462 = vrot.slane %v168, %v2461
    %v2463 = vlaneseq
    %v2464 = vshrl.u32 %v2463, 7
    %v2465 = vsub.s32 4, %v2464
    %v2466 = vrot.slane %v169, %v2465
    %2472 = vbcast.lane.b32.xlu0 %v2454, 256
    %v2473 = vpop.permute.xlu0 %2472
    %s2475 = sor.u32 256, 8
    %2476 = vbcast.lane.b32.xlu0 %v2454, %s2475
    %v2477 = vpop.permute.xlu0 %2476
    %s2479 = sor.u32 256, 16
    %2480 = vbcast.lane.b32.xlu0 %v2454, %s2479
    %v2481 = vpop.permute.xlu0 %2480
    %s2483 = sor.u32 256, 24
    %2484 = vbcast.lane.b32.xlu0 %v2454, %s2483
    %v2485 = vpop.permute.xlu0 %2484
    %s2487 = sor.u32 256, 32
    %2488 = vbcast.lane.b32.xlu0 %v2454, %s2487
    %v2489 = vpop.permute.xlu0 %2488
    %s2491 = sor.u32 256, 40
    %2492 = vbcast.lane.b32.xlu0 %v2454, %s2491
    %v2493 = vpop.permute.xlu0 %2492
    %s2495 = sor.u32 256, 48
    %2496 = vbcast.lane.b32.xlu0 %v2454, %s2495
    %v2497 = vpop.permute.xlu0 %2496
    %s2499 = sor.u32 256, 56
    %2500 = vbcast.lane.b32.xlu0 %v2454, %s2499
    %v2501 = vpop.permute.xlu0 %2500
    %s2503 = sor.u32 256, 64
    %2504 = vbcast.lane.b32.xlu0 %v2454, %s2503
    %v2505 = vpop.permute.xlu0 %2504
    %s2507 = sor.u32 256, 72
    %2508 = vbcast.lane.b32.xlu0 %v2454, %s2507
    %v2509 = vpop.permute.xlu0 %2508
    %s2511 = sor.u32 256, 80
    %2512 = vbcast.lane.b32.xlu0 %v2454, %s2511
    %v2513 = vpop.permute.xlu0 %2512
    %s2515 = sor.u32 256, 88
    %2516 = vbcast.lane.b32.xlu0 %v2454, %s2515
    %v2517 = vpop.permute.xlu0 %2516
    %s2519 = sor.u32 256, 96
    %2520 = vbcast.lane.b32.xlu0 %v2454, %s2519
    %v2521 = vpop.permute.xlu0 %2520
    %s2523 = sor.u32 256, 104
    %2524 = vbcast.lane.b32.xlu0 %v2454, %s2523
    %v2525 = vpop.permute.xlu0 %2524
    %s2527 = sor.u32 256, 112
    %2528 = vbcast.lane.b32.xlu0 %v2454, %s2527
    %v2529 = vpop.permute.xlu0 %2528
    %s2531 = sor.u32 256, 120
    %2532 = vbcast.lane.b32.xlu0 %v2454, %s2531
    %v2533 = vpop.permute.xlu0 %2532
    %2535 = vbcast.lane.b32.xlu0 %v2458, 256
    %v2536 = vpop.permute.xlu0 %2535
    %s2538 = sor.u32 256, 8
    %2539 = vbcast.lane.b32.xlu0 %v2458, %s2538
    %v2540 = vpop.permute.xlu0 %2539
    %s2542 = sor.u32 256, 16
    %2543 = vbcast.lane.b32.xlu0 %v2458, %s2542
    %v2544 = vpop.permute.xlu0 %2543
    %s2546 = sor.u32 256, 24
    %2547 = vbcast.lane.b32.xlu0 %v2458, %s2546
    %v2548 = vpop.permute.xlu0 %2547
    %s2550 = sor.u32 256, 32
    %2551 = vbcast.lane.b32.xlu0 %v2458, %s2550
    %v2552 = vpop.permute.xlu0 %2551
    %s2554 = sor.u32 256, 40
    %2555 = vbcast.lane.b32.xlu0 %v2458, %s2554
    %v2556 = vpop.permute.xlu0 %2555
    %s2558 = sor.u32 256, 48
    %2559 = vbcast.lane.b32.xlu0 %v2458, %s2558
    %v2560 = vpop.permute.xlu0 %2559
    %s2562 = sor.u32 256, 56
    %2563 = vbcast.lane.b32.xlu0 %v2458, %s2562
    %v2564 = vpop.permute.xlu0 %2563
    %s2566 = sor.u32 256, 64
    %2567 = vbcast.lane.b32.xlu0 %v2458, %s2566
    %v2568 = vpop.permute.xlu0 %2567
    %s2570 = sor.u32 256, 72
    %2571 = vbcast.lane.b32.xlu0 %v2458, %s2570
    %v2572 = vpop.permute.xlu0 %2571
    %s2574 = sor.u32 256, 80
    %2575 = vbcast.lane.b32.xlu0 %v2458, %s2574
    %v2576 = vpop.permute.xlu0 %2575
    %s2578 = sor.u32 256, 88
    %2579 = vbcast.lane.b32.xlu0 %v2458, %s2578
    %v2580 = vpop.permute.xlu0 %2579
    %s2582 = sor.u32 256, 96
    %2583 = vbcast.lane.b32.xlu0 %v2458, %s2582
    %v2584 = vpop.permute.xlu0 %2583
    %s2586 = sor.u32 256, 104
    %2587 = vbcast.lane.b32.xlu0 %v2458, %s2586
    %v2588 = vpop.permute.xlu0 %2587
    %s2590 = sor.u32 256, 112
    %2591 = vbcast.lane.b32.xlu0 %v2458, %s2590
    %v2592 = vpop.permute.xlu0 %2591
    %s2594 = sor.u32 256, 120
    %2595 = vbcast.lane.b32.xlu0 %v2458, %s2594
    %v2596 = vpop.permute.xlu0 %2595
    %2598 = vbcast.lane.b32.xlu0 %v2462, 256
    %v2599 = vpop.permute.xlu0 %2598
    %s2601 = sor.u32 256, 8
    %2602 = vbcast.lane.b32.xlu0 %v2462, %s2601
    %v2603 = vpop.permute.xlu0 %2602
    %s2605 = sor.u32 256, 16
    %2606 = vbcast.lane.b32.xlu0 %v2462, %s2605
    %v2607 = vpop.permute.xlu0 %2606
    %s2609 = sor.u32 256, 24
    %2610 = vbcast.lane.b32.xlu0 %v2462, %s2609
    %v2611 = vpop.permute.xlu0 %2610
    %s2613 = sor.u32 256, 32
    %2614 = vbcast.lane.b32.xlu0 %v2462, %s2613
    %v2615 = vpop.permute.xlu0 %2614
    %s2617 = sor.u32 256, 40
    %2618 = vbcast.lane.b32.xlu0 %v2462, %s2617
    %v2619 = vpop.permute.xlu0 %2618
    %s2621 = sor.u32 256, 48
    %2622 = vbcast.lane.b32.xlu0 %v2462, %s2621
    %v2623 = vpop.permute.xlu0 %2622
    %s2625 = sor.u32 256, 56
    %2626 = vbcast.lane.b32.xlu0 %v2462, %s2625
    %v2627 = vpop.permute.xlu0 %2626
    %s2629 = sor.u32 256, 64
    %2630 = vbcast.lane.b32.xlu0 %v2462, %s2629
    %v2631 = vpop.permute.xlu0 %2630
    %s2633 = sor.u32 256, 72
    %2634 = vbcast.lane.b32.xlu0 %v2462, %s2633
    %v2635 = vpop.permute.xlu0 %2634
    %s2637 = sor.u32 256, 80
    %2638 = vbcast.lane.b32.xlu0 %v2462, %s2637
    %v2639 = vpop.permute.xlu0 %2638
    %s2641 = sor.u32 256, 88
    %2642 = vbcast.lane.b32.xlu0 %v2462, %s2641
    %v2643 = vpop.permute.xlu0 %2642
    %s2645 = sor.u32 256, 96
    %2646 = vbcast.lane.b32.xlu0 %v2462, %s2645
    %v2647 = vpop.permute.xlu0 %2646
    %s2649 = sor.u32 256, 104
    %2650 = vbcast.lane.b32.xlu0 %v2462, %s2649
    %v2651 = vpop.permute.xlu0 %2650
    %s2653 = sor.u32 256, 112
    %2654 = vbcast.lane.b32.xlu0 %v2462, %s2653
    %v2655 = vpop.permute.xlu0 %2654
    %s2657 = sor.u32 256, 120
    %2658 = vbcast.lane.b32.xlu0 %v2462, %s2657
    %v2659 = vpop.permute.xlu0 %2658
    %2661 = vbcast.lane.b32.xlu0 %v2466, 256
    %v2662 = vpop.permute.xlu0 %2661
    %s2664 = sor.u32 256, 8
    %2665 = vbcast.lane.b32.xlu0 %v2466, %s2664
    %v2666 = vpop.permute.xlu0 %2665
    %s2668 = sor.u32 256, 16
    %2669 = vbcast.lane.b32.xlu0 %v2466, %s2668
    %v2670 = vpop.permute.xlu0 %2669
    %s2672 = sor.u32 256, 24
    %2673 = vbcast.lane.b32.xlu0 %v2466, %s2672
    %v2674 = vpop.permute.xlu0 %2673
    %s2676 = sor.u32 256, 32
    %2677 = vbcast.lane.b32.xlu0 %v2466, %s2676
    %v2678 = vpop.permute.xlu0 %2677
    %s2680 = sor.u32 256, 40
    %2681 = vbcast.lane.b32.xlu0 %v2466, %s2680
    %v2682 = vpop.permute.xlu0 %2681
    %s2684 = sor.u32 256, 48
    %2685 = vbcast.lane.b32.xlu0 %v2466, %s2684
    %v2686 = vpop.permute.xlu0 %2685
    %s2688 = sor.u32 256, 56
    %2689 = vbcast.lane.b32.xlu0 %v2466, %s2688
    %v2690 = vpop.permute.xlu0 %2689
    %s2692 = sor.u32 256, 64
    %2693 = vbcast.lane.b32.xlu0 %v2466, %s2692
    %v2694 = vpop.permute.xlu0 %2693
    %s2696 = sor.u32 256, 72
    %2697 = vbcast.lane.b32.xlu0 %v2466, %s2696
    %v2698 = vpop.permute.xlu0 %2697
    %s2700 = sor.u32 256, 80
    %2701 = vbcast.lane.b32.xlu0 %v2466, %s2700
    %v2702 = vpop.permute.xlu0 %2701
    %s2704 = sor.u32 256, 88
    %2705 = vbcast.lane.b32.xlu0 %v2466, %s2704
    %v2706 = vpop.permute.xlu0 %2705
    %s2708 = sor.u32 256, 96
    %2709 = vbcast.lane.b32.xlu0 %v2466, %s2708
    %v2710 = vpop.permute.xlu0 %2709
    %s2712 = sor.u32 256, 104
    %2713 = vbcast.lane.b32.xlu0 %v2466, %s2712
    %v2714 = vpop.permute.xlu0 %2713
    %s2716 = sor.u32 256, 112
    %2717 = vbcast.lane.b32.xlu0 %v2466, %s2716
    %v2718 = vpop.permute.xlu0 %2717
    %s2720 = sor.u32 256, 120
    %2721 = vbcast.lane.b32.xlu0 %v2466, %s2720
    %v2722 = vpop.permute.xlu0 %2721
    %v2787 = vmul.f32 %v2446, %v2473
    %v2788 = vmul.f32 %v2446, %v2477
    %v2789 = vmul.f32 %v2446, %v2481
    %v2790 = vmul.f32 %v2446, %v2485
    %v2791 = vmul.f32 %v2446, %v2489
    %v2792 = vmul.f32 %v2446, %v2493
    %v2793 = vmul.f32 %v2446, %v2497
    %v2794 = vmul.f32 %v2446, %v2501
    %v2795 = vmul.f32 %v2446, %v2505
    %v2796 = vmul.f32 %v2446, %v2509
    %v2797 = vmul.f32 %v2446, %v2513
    %v2798 = vmul.f32 %v2446, %v2517
    %v2799 = vmul.f32 %v2446, %v2521
    %v2800 = vmul.f32 %v2446, %v2525
    %v2801 = vmul.f32 %v2446, %v2529
    %v2802 = vmul.f32 %v2446, %v2533
    %v2803 = vmul.f32 %v2446, %v2536
    %v2804 = vmul.f32 %v2446, %v2540
    %v2805 = vmul.f32 %v2446, %v2544
    %v2806 = vmul.f32 %v2446, %v2548
    %v2807 = vmul.f32 %v2446, %v2552
    %v2808 = vmul.f32 %v2446, %v2556
    %v2809 = vmul.f32 %v2446, %v2560
    %v2810 = vmul.f32 %v2446, %v2564
    %v2811 = vmul.f32 %v2446, %v2568
    %v2812 = vmul.f32 %v2446, %v2572
    %v2813 = vmul.f32 %v2446, %v2576
    %v2814 = vmul.f32 %v2446, %v2580
    %v2815 = vmul.f32 %v2446, %v2584
    %v2816 = vmul.f32 %v2446, %v2588
    %v2817 = vmul.f32 %v2446, %v2592
    %v2818 = vmul.f32 %v2446, %v2596
    %v2819 = vmul.f32 %v2446, %v2599
    %v2820 = vmul.f32 %v2446, %v2603
    %v2821 = vmul.f32 %v2446, %v2607
    %v2822 = vmul.f32 %v2446, %v2611
    %v2823 = vmul.f32 %v2446, %v2615
    %v2824 = vmul.f32 %v2446, %v2619
    %v2825 = vmul.f32 %v2446, %v2623
    %v2826 = vmul.f32 %v2446, %v2627
    %v2827 = vmul.f32 %v2446, %v2631
    %v2828 = vmul.f32 %v2446, %v2635
    %v2829 = vmul.f32 %v2446, %v2639
    %v2830 = vmul.f32 %v2446, %v2643
    %v2831 = vmul.f32 %v2446, %v2647
    %v2832 = vmul.f32 %v2446, %v2651
    %v2833 = vmul.f32 %v2446, %v2655
    %v2834 = vmul.f32 %v2446, %v2659
    %v2835 = vmul.f32 %v2446, %v2662
    %v2836 = vmul.f32 %v2446, %v2666
    %v2837 = vmul.f32 %v2446, %v2670
    %v2838 = vmul.f32 %v2446, %v2674
    %v2839 = vmul.f32 %v2446, %v2678
    %v2840 = vmul.f32 %v2446, %v2682
    %v2841 = vmul.f32 %v2446, %v2686
    %v2842 = vmul.f32 %v2446, %v2690
    %v2843 = vmul.f32 %v2446, %v2694
    %v2844 = vmul.f32 %v2446, %v2698
    %v2845 = vmul.f32 %v2446, %v2702
    %v2846 = vmul.f32 %v2446, %v2706
    %v2847 = vmul.f32 %v2446, %v2710
    %v2848 = vmul.f32 %v2446, %v2714
    %v2849 = vmul.f32 %v2446, %v2718
    %v2850 = vmul.f32 %v2446, %v2722
    %v2851 = vmul.f32 %v2450, %v2473
    %v2852 = vmul.f32 %v2450, %v2477
    %v2853 = vmul.f32 %v2450, %v2481
    %v2854 = vmul.f32 %v2450, %v2485
    %v2855 = vmul.f32 %v2450, %v2489
    %v2856 = vmul.f32 %v2450, %v2493
    %v2857 = vmul.f32 %v2450, %v2497
    %v2858 = vmul.f32 %v2450, %v2501
    %v2859 = vmul.f32 %v2450, %v2505
    %v2860 = vmul.f32 %v2450, %v2509
    %v2861 = vmul.f32 %v2450, %v2513
    %v2862 = vmul.f32 %v2450, %v2517
    %v2863 = vmul.f32 %v2450, %v2521
    %v2864 = vmul.f32 %v2450, %v2525
    %v2865 = vmul.f32 %v2450, %v2529
    %v2866 = vmul.f32 %v2450, %v2533
    %v2867 = vmul.f32 %v2450, %v2536
    %v2868 = vmul.f32 %v2450, %v2540
    %v2869 = vmul.f32 %v2450, %v2544
    %v2870 = vmul.f32 %v2450, %v2548
    %v2871 = vmul.f32 %v2450, %v2552
    %v2872 = vmul.f32 %v2450, %v2556
    %v2873 = vmul.f32 %v2450, %v2560
    %v2874 = vmul.f32 %v2450, %v2564
    %v2875 = vmul.f32 %v2450, %v2568
    %v2876 = vmul.f32 %v2450, %v2572
    %v2877 = vmul.f32 %v2450, %v2576
    %v2878 = vmul.f32 %v2450, %v2580
    %v2879 = vmul.f32 %v2450, %v2584
    %v2880 = vmul.f32 %v2450, %v2588
    %v2881 = vmul.f32 %v2450, %v2592
    %v2882 = vmul.f32 %v2450, %v2596
    %v2883 = vmul.f32 %v2450, %v2599
    %v2884 = vmul.f32 %v2450, %v2603
    %v2885 = vmul.f32 %v2450, %v2607
    %v2886 = vmul.f32 %v2450, %v2611
    %v2887 = vmul.f32 %v2450, %v2615
    %v2888 = vmul.f32 %v2450, %v2619
    %v2889 = vmul.f32 %v2450, %v2623
    %v2890 = vmul.f32 %v2450, %v2627
    %v2891 = vmul.f32 %v2450, %v2631
    %v2892 = vmul.f32 %v2450, %v2635
    %v2893 = vmul.f32 %v2450, %v2639
    %v2894 = vmul.f32 %v2450, %v2643
    %v2895 = vmul.f32 %v2450, %v2647
    %v2896 = vmul.f32 %v2450, %v2651
    %v2897 = vmul.f32 %v2450, %v2655
    %v2898 = vmul.f32 %v2450, %v2659
    %v2899 = vmul.f32 %v2450, %v2662
    %v2900 = vmul.f32 %v2450, %v2666
    %v2901 = vmul.f32 %v2450, %v2670
    %v2902 = vmul.f32 %v2450, %v2674
    %v2903 = vmul.f32 %v2450, %v2678
    %v2904 = vmul.f32 %v2450, %v2682
    %v2905 = vmul.f32 %v2450, %v2686
    %v2906 = vmul.f32 %v2450, %v2690
    %v2907 = vmul.f32 %v2450, %v2694
    %v2908 = vmul.f32 %v2450, %v2698
    %v2909 = vmul.f32 %v2450, %v2702
    %v2910 = vmul.f32 %v2450, %v2706
    %v2911 = vmul.f32 %v2450, %v2710
    %v2912 = vmul.f32 %v2450, %v2714
    %v2913 = vmul.f32 %v2450, %v2718
    %v2914 = vmul.f32 %v2450, %v2722
    %v2915 = vadd.f32 %v2315, %v2787
    %v2916 = vadd.f32 %v2316, %v2788
    %v2917 = vadd.f32 %v2317, %v2789
    %v2918 = vadd.f32 %v2318, %v2790
    %v2919 = vadd.f32 %v2319, %v2791
    %v2920 = vadd.f32 %v2320, %v2792
    %v2921 = vadd.f32 %v2321, %v2793
    %v2922 = vadd.f32 %v2322, %v2794
    %v2923 = vadd.f32 %v2323, %v2795
    %v2924 = vadd.f32 %v2324, %v2796
    %v2925 = vadd.f32 %v2325, %v2797
    %v2926 = vadd.f32 %v2326, %v2798
    %v2927 = vadd.f32 %v2327, %v2799
    %v2928 = vadd.f32 %v2328, %v2800
    %v2929 = vadd.f32 %v2329, %v2801
    %v2930 = vadd.f32 %v2330, %v2802
    %v2931 = vadd.f32 %v2331, %v2803
    %v2932 = vadd.f32 %v2332, %v2804
    %v2933 = vadd.f32 %v2333, %v2805
    %v2934 = vadd.f32 %v2334, %v2806
    %v2935 = vadd.f32 %v2335, %v2807
    %v2936 = vadd.f32 %v2336, %v2808
    %v2937 = vadd.f32 %v2337, %v2809
    %v2938 = vadd.f32 %v2338, %v2810
    %v2939 = vadd.f32 %v2339, %v2811
    %v2940 = vadd.f32 %v2340, %v2812
    %v2941 = vadd.f32 %v2341, %v2813
    %v2942 = vadd.f32 %v2342, %v2814
    %v2943 = vadd.f32 %v2343, %v2815
    %v2944 = vadd.f32 %v2344, %v2816
    %v2945 = vadd.f32 %v2345, %v2817
    %v2946 = vadd.f32 %v2346, %v2818
    %v2947 = vadd.f32 %v2347, %v2819
    %v2948 = vadd.f32 %v2348, %v2820
    %v2949 = vadd.f32 %v2349, %v2821
    %v2950 = vadd.f32 %v2350, %v2822
    %v2951 = vadd.f32 %v2351, %v2823
    %v2952 = vadd.f32 %v2352, %v2824
    %v2953 = vadd.f32 %v2353, %v2825
    %v2954 = vadd.f32 %v2354, %v2826
    %v2955 = vadd.f32 %v2355, %v2827
    %v2956 = vadd.f32 %v2356, %v2828
    %v2957 = vadd.f32 %v2357, %v2829
    %v2958 = vadd.f32 %v2358, %v2830
    %v2959 = vadd.f32 %v2359, %v2831
    %v2960 = vadd.f32 %v2360, %v2832
    %v2961 = vadd.f32 %v2361, %v2833
    %v2962 = vadd.f32 %v2362, %v2834
    %v2963 = vadd.f32 %v2363, %v2835
    %v2964 = vadd.f32 %v2364, %v2836
    %v2965 = vadd.f32 %v2365, %v2837
    %v2966 = vadd.f32 %v2366, %v2838
    %v2967 = vadd.f32 %v2367, %v2839
    %v2968 = vadd.f32 %v2368, %v2840
    %v2969 = vadd.f32 %v2369, %v2841
    %v2970 = vadd.f32 %v2370, %v2842
    %v2971 = vadd.f32 %v2371, %v2843
    %v2972 = vadd.f32 %v2372, %v2844
    %v2973 = vadd.f32 %v2373, %v2845
    %v2974 = vadd.f32 %v2374, %v2846
    %v2975 = vadd.f32 %v2375, %v2847
    %v2976 = vadd.f32 %v2376, %v2848
    %v2977 = vadd.f32 %v2377, %v2849
    %v2978 = vadd.f32 %v2378, %v2850
    %v2979 = vadd.f32 %v2379, %v2851
    %v2980 = vadd.f32 %v2380, %v2852
    %v2981 = vadd.f32 %v2381, %v2853
    %v2982 = vadd.f32 %v2382, %v2854
    %v2983 = vadd.f32 %v2383, %v2855
    %v2984 = vadd.f32 %v2384, %v2856
    %v2985 = vadd.f32 %v2385, %v2857
    %v2986 = vadd.f32 %v2386, %v2858
    %v2987 = vadd.f32 %v2387, %v2859
    %v2988 = vadd.f32 %v2388, %v2860
    %v2989 = vadd.f32 %v2389, %v2861
    %v2990 = vadd.f32 %v2390, %v2862
    %v2991 = vadd.f32 %v2391, %v2863
    %v2992 = vadd.f32 %v2392, %v2864
    %v2993 = vadd.f32 %v2393, %v2865
    %v2994 = vadd.f32 %v2394, %v2866
    %v2995 = vadd.f32 %v2395, %v2867
    %v2996 = vadd.f32 %v2396, %v2868
    %v2997 = vadd.f32 %v2397, %v2869
    %v2998 = vadd.f32 %v2398, %v2870
    %v2999 = vadd.f32 %v2399, %v2871
    %v3000 = vadd.f32 %v2400, %v2872
    %v3001 = vadd.f32 %v2401, %v2873
    %v3002 = vadd.f32 %v2402, %v2874
    %v3003 = vadd.f32 %v2403, %v2875
    %v3004 = vadd.f32 %v2404, %v2876
    %v3005 = vadd.f32 %v2405, %v2877
    %v3006 = vadd.f32 %v2406, %v2878
    %v3007 = vadd.f32 %v2407, %v2879
    %v3008 = vadd.f32 %v2408, %v2880
    %v3009 = vadd.f32 %v2409, %v2881
    %v3010 = vadd.f32 %v2410, %v2882
    %v3011 = vadd.f32 %v2411, %v2883
    %v3012 = vadd.f32 %v2412, %v2884
    %v3013 = vadd.f32 %v2413, %v2885
    %v3014 = vadd.f32 %v2414, %v2886
    %v3015 = vadd.f32 %v2415, %v2887
    %v3016 = vadd.f32 %v2416, %v2888
    %v3017 = vadd.f32 %v2417, %v2889
    %v3018 = vadd.f32 %v2418, %v2890
    %v3019 = vadd.f32 %v2419, %v2891
    %v3020 = vadd.f32 %v2420, %v2892
    %v3021 = vadd.f32 %v2421, %v2893
    %v3022 = vadd.f32 %v2422, %v2894
    %v3023 = vadd.f32 %v2423, %v2895
    %v3024 = vadd.f32 %v2424, %v2896
    %v3025 = vadd.f32 %v2425, %v2897
    %v3026 = vadd.f32 %v2426, %v2898
    %v3027 = vadd.f32 %v2427, %v2899
    %v3028 = vadd.f32 %v2428, %v2900
    %v3029 = vadd.f32 %v2429, %v2901
    %v3030 = vadd.f32 %v2430, %v2902
    %v3031 = vadd.f32 %v2431, %v2903
    %v3032 = vadd.f32 %v2432, %v2904
    %v3033 = vadd.f32 %v2433, %v2905
    %v3034 = vadd.f32 %v2434, %v2906
    %v3035 = vadd.f32 %v2435, %v2907
    %v3036 = vadd.f32 %v2436, %v2908
    %v3037 = vadd.f32 %v2437, %v2909
    %v3038 = vadd.f32 %v2438, %v2910
    %v3039 = vadd.f32 %v2439, %v2911
    %v3040 = vadd.f32 %v2440, %v2912
    %v3041 = vadd.f32 %v2441, %v2913
    %v3042 = vadd.f32 %v2442, %v2914
    %v3043 = vlaneseq
    %v3044 = vshrl.u32 %v3043, 7
    %v3045 = vsub.s32 5, %v3044
    %v3046 = vrot.slane %v160, %v3045
    %v3047 = vlaneseq
    %v3048 = vshrl.u32 %v3047, 7
    %v3049 = vsub.s32 5, %v3048
    %v3050 = vrot.slane %v165, %v3049
    %v3051 = vlaneseq
    %v3052 = vshrl.u32 %v3051, 7
    %v3053 = vsub.s32 5, %v3052
    %v3054 = vrot.slane %v166, %v3053
    %v3055 = vlaneseq
    %v3056 = vshrl.u32 %v3055, 7
    %v3057 = vsub.s32 5, %v3056
    %v3058 = vrot.slane %v167, %v3057
    %v3059 = vlaneseq
    %v3060 = vshrl.u32 %v3059, 7
    %v3061 = vsub.s32 5, %v3060
    %v3062 = vrot.slane %v168, %v3061
    %v3063 = vlaneseq
    %v3064 = vshrl.u32 %v3063, 7
    %v3065 = vsub.s32 5, %v3064
    %v3066 = vrot.slane %v169, %v3065
    %3072 = vbcast.lane.b32.xlu0 %v3054, 256
    %v3073 = vpop.permute.xlu0 %3072
    %s3075 = sor.u32 256, 8
    %3076 = vbcast.lane.b32.xlu0 %v3054, %s3075
    %v3077 = vpop.permute.xlu0 %3076
    %s3079 = sor.u32 256, 16
    %3080 = vbcast.lane.b32.xlu0 %v3054, %s3079
    %v3081 = vpop.permute.xlu0 %3080
    %s3083 = sor.u32 256, 24
    %3084 = vbcast.lane.b32.xlu0 %v3054, %s3083
    %v3085 = vpop.permute.xlu0 %3084
    %s3087 = sor.u32 256, 32
    %3088 = vbcast.lane.b32.xlu0 %v3054, %s3087
    %v3089 = vpop.permute.xlu0 %3088
    %s3091 = sor.u32 256, 40
    %3092 = vbcast.lane.b32.xlu0 %v3054, %s3091
    %v3093 = vpop.permute.xlu0 %3092
    %s3095 = sor.u32 256, 48
    %3096 = vbcast.lane.b32.xlu0 %v3054, %s3095
    %v3097 = vpop.permute.xlu0 %3096
    %s3099 = sor.u32 256, 56
    %3100 = vbcast.lane.b32.xlu0 %v3054, %s3099
    %v3101 = vpop.permute.xlu0 %3100
    %s3103 = sor.u32 256, 64
    %3104 = vbcast.lane.b32.xlu0 %v3054, %s3103
    %v3105 = vpop.permute.xlu0 %3104
    %s3107 = sor.u32 256, 72
    %3108 = vbcast.lane.b32.xlu0 %v3054, %s3107
    %v3109 = vpop.permute.xlu0 %3108
    %s3111 = sor.u32 256, 80
    %3112 = vbcast.lane.b32.xlu0 %v3054, %s3111
    %v3113 = vpop.permute.xlu0 %3112
    %s3115 = sor.u32 256, 88
    %3116 = vbcast.lane.b32.xlu0 %v3054, %s3115
    %v3117 = vpop.permute.xlu0 %3116
    %s3119 = sor.u32 256, 96
    %3120 = vbcast.lane.b32.xlu0 %v3054, %s3119
    %v3121 = vpop.permute.xlu0 %3120
    %s3123 = sor.u32 256, 104
    %3124 = vbcast.lane.b32.xlu0 %v3054, %s3123
    %v3125 = vpop.permute.xlu0 %3124
    %s3127 = sor.u32 256, 112
    %3128 = vbcast.lane.b32.xlu0 %v3054, %s3127
    %v3129 = vpop.permute.xlu0 %3128
    %s3131 = sor.u32 256, 120
    %3132 = vbcast.lane.b32.xlu0 %v3054, %s3131
    %v3133 = vpop.permute.xlu0 %3132
    %3135 = vbcast.lane.b32.xlu0 %v3058, 256
    %v3136 = vpop.permute.xlu0 %3135
    %s3138 = sor.u32 256, 8
    %3139 = vbcast.lane.b32.xlu0 %v3058, %s3138
    %v3140 = vpop.permute.xlu0 %3139
    %s3142 = sor.u32 256, 16
    %3143 = vbcast.lane.b32.xlu0 %v3058, %s3142
    %v3144 = vpop.permute.xlu0 %3143
    %s3146 = sor.u32 256, 24
    %3147 = vbcast.lane.b32.xlu0 %v3058, %s3146
    %v3148 = vpop.permute.xlu0 %3147
    %s3150 = sor.u32 256, 32
    %3151 = vbcast.lane.b32.xlu0 %v3058, %s3150
    %v3152 = vpop.permute.xlu0 %3151
    %s3154 = sor.u32 256, 40
    %3155 = vbcast.lane.b32.xlu0 %v3058, %s3154
    %v3156 = vpop.permute.xlu0 %3155
    %s3158 = sor.u32 256, 48
    %3159 = vbcast.lane.b32.xlu0 %v3058, %s3158
    %v3160 = vpop.permute.xlu0 %3159
    %s3162 = sor.u32 256, 56
    %3163 = vbcast.lane.b32.xlu0 %v3058, %s3162
    %v3164 = vpop.permute.xlu0 %3163
    %s3166 = sor.u32 256, 64
    %3167 = vbcast.lane.b32.xlu0 %v3058, %s3166
    %v3168 = vpop.permute.xlu0 %3167
    %s3170 = sor.u32 256, 72
    %3171 = vbcast.lane.b32.xlu0 %v3058, %s3170
    %v3172 = vpop.permute.xlu0 %3171
    %s3174 = sor.u32 256, 80
    %3175 = vbcast.lane.b32.xlu0 %v3058, %s3174
    %v3176 = vpop.permute.xlu0 %3175
    %s3178 = sor.u32 256, 88
    %3179 = vbcast.lane.b32.xlu0 %v3058, %s3178
    %v3180 = vpop.permute.xlu0 %3179
    %s3182 = sor.u32 256, 96
    %3183 = vbcast.lane.b32.xlu0 %v3058, %s3182
    %v3184 = vpop.permute.xlu0 %3183
    %s3186 = sor.u32 256, 104
    %3187 = vbcast.lane.b32.xlu0 %v3058, %s3186
    %v3188 = vpop.permute.xlu0 %3187
    %s3190 = sor.u32 256, 112
    %3191 = vbcast.lane.b32.xlu0 %v3058, %s3190
    %v3192 = vpop.permute.xlu0 %3191
    %s3194 = sor.u32 256, 120
    %3195 = vbcast.lane.b32.xlu0 %v3058, %s3194
    %v3196 = vpop.permute.xlu0 %3195
    %3198 = vbcast.lane.b32.xlu0 %v3062, 256
    %v3199 = vpop.permute.xlu0 %3198
    %s3201 = sor.u32 256, 8
    %3202 = vbcast.lane.b32.xlu0 %v3062, %s3201
    %v3203 = vpop.permute.xlu0 %3202
    %s3205 = sor.u32 256, 16
    %3206 = vbcast.lane.b32.xlu0 %v3062, %s3205
    %v3207 = vpop.permute.xlu0 %3206
    %s3209 = sor.u32 256, 24
    %3210 = vbcast.lane.b32.xlu0 %v3062, %s3209
    %v3211 = vpop.permute.xlu0 %3210
    %s3213 = sor.u32 256, 32
    %3214 = vbcast.lane.b32.xlu0 %v3062, %s3213
    %v3215 = vpop.permute.xlu0 %3214
    %s3217 = sor.u32 256, 40
    %3218 = vbcast.lane.b32.xlu0 %v3062, %s3217
    %v3219 = vpop.permute.xlu0 %3218
    %s3221 = sor.u32 256, 48
    %3222 = vbcast.lane.b32.xlu0 %v3062, %s3221
    %v3223 = vpop.permute.xlu0 %3222
    %s3225 = sor.u32 256, 56
    %3226 = vbcast.lane.b32.xlu0 %v3062, %s3225
    %v3227 = vpop.permute.xlu0 %3226
    %s3229 = sor.u32 256, 64
    %3230 = vbcast.lane.b32.xlu0 %v3062, %s3229
    %v3231 = vpop.permute.xlu0 %3230
    %s3233 = sor.u32 256, 72
    %3234 = vbcast.lane.b32.xlu0 %v3062, %s3233
    %v3235 = vpop.permute.xlu0 %3234
    %s3237 = sor.u32 256, 80
    %3238 = vbcast.lane.b32.xlu0 %v3062, %s3237
    %v3239 = vpop.permute.xlu0 %3238
    %s3241 = sor.u32 256, 88
    %3242 = vbcast.lane.b32.xlu0 %v3062, %s3241
    %v3243 = vpop.permute.xlu0 %3242
    %s3245 = sor.u32 256, 96
    %3246 = vbcast.lane.b32.xlu0 %v3062, %s3245
    %v3247 = vpop.permute.xlu0 %3246
    %s3249 = sor.u32 256, 104
    %3250 = vbcast.lane.b32.xlu0 %v3062, %s3249
    %v3251 = vpop.permute.xlu0 %3250
    %s3253 = sor.u32 256, 112
    %3254 = vbcast.lane.b32.xlu0 %v3062, %s3253
    %v3255 = vpop.permute.xlu0 %3254
    %s3257 = sor.u32 256, 120
    %3258 = vbcast.lane.b32.xlu0 %v3062, %s3257
    %v3259 = vpop.permute.xlu0 %3258
    %3261 = vbcast.lane.b32.xlu0 %v3066, 256
    %v3262 = vpop.permute.xlu0 %3261
    %s3264 = sor.u32 256, 8
    %3265 = vbcast.lane.b32.xlu0 %v3066, %s3264
    %v3266 = vpop.permute.xlu0 %3265
    %s3268 = sor.u32 256, 16
    %3269 = vbcast.lane.b32.xlu0 %v3066, %s3268
    %v3270 = vpop.permute.xlu0 %3269
    %s3272 = sor.u32 256, 24
    %3273 = vbcast.lane.b32.xlu0 %v3066, %s3272
    %v3274 = vpop.permute.xlu0 %3273
    %s3276 = sor.u32 256, 32
    %3277 = vbcast.lane.b32.xlu0 %v3066, %s3276
    %v3278 = vpop.permute.xlu0 %3277
    %s3280 = sor.u32 256, 40
    %3281 = vbcast.lane.b32.xlu0 %v3066, %s3280
    %v3282 = vpop.permute.xlu0 %3281
    %s3284 = sor.u32 256, 48
    %3285 = vbcast.lane.b32.xlu0 %v3066, %s3284
    %v3286 = vpop.permute.xlu0 %3285
    %s3288 = sor.u32 256, 56
    %3289 = vbcast.lane.b32.xlu0 %v3066, %s3288
    %v3290 = vpop.permute.xlu0 %3289
    %s3292 = sor.u32 256, 64
    %3293 = vbcast.lane.b32.xlu0 %v3066, %s3292
    %v3294 = vpop.permute.xlu0 %3293
    %s3296 = sor.u32 256, 72
    %3297 = vbcast.lane.b32.xlu0 %v3066, %s3296
    %v3298 = vpop.permute.xlu0 %3297
    %s3300 = sor.u32 256, 80
    %3301 = vbcast.lane.b32.xlu0 %v3066, %s3300
    %v3302 = vpop.permute.xlu0 %3301
    %s3304 = sor.u32 256, 88
    %3305 = vbcast.lane.b32.xlu0 %v3066, %s3304
    %v3306 = vpop.permute.xlu0 %3305
    %s3308 = sor.u32 256, 96
    %3309 = vbcast.lane.b32.xlu0 %v3066, %s3308
    %v3310 = vpop.permute.xlu0 %3309
    %s3312 = sor.u32 256, 104
    %3313 = vbcast.lane.b32.xlu0 %v3066, %s3312
    %v3314 = vpop.permute.xlu0 %3313
    %s3316 = sor.u32 256, 112
    %3317 = vbcast.lane.b32.xlu0 %v3066, %s3316
    %v3318 = vpop.permute.xlu0 %3317
    %s3320 = sor.u32 256, 120
    %3321 = vbcast.lane.b32.xlu0 %v3066, %s3320
    %v3322 = vpop.permute.xlu0 %3321
    %v3387 = vmul.f32 %v3046, %v3073
    %v3388 = vmul.f32 %v3046, %v3077
    %v3389 = vmul.f32 %v3046, %v3081
    %v3390 = vmul.f32 %v3046, %v3085
    %v3391 = vmul.f32 %v3046, %v3089
    %v3392 = vmul.f32 %v3046, %v3093
    %v3393 = vmul.f32 %v3046, %v3097
    %v3394 = vmul.f32 %v3046, %v3101
    %v3395 = vmul.f32 %v3046, %v3105
    %v3396 = vmul.f32 %v3046, %v3109
    %v3397 = vmul.f32 %v3046, %v3113
    %v3398 = vmul.f32 %v3046, %v3117
    %v3399 = vmul.f32 %v3046, %v3121
    %v3400 = vmul.f32 %v3046, %v3125
    %v3401 = vmul.f32 %v3046, %v3129
    %v3402 = vmul.f32 %v3046, %v3133
    %v3403 = vmul.f32 %v3046, %v3136
    %v3404 = vmul.f32 %v3046, %v3140
    %v3405 = vmul.f32 %v3046, %v3144
    %v3406 = vmul.f32 %v3046, %v3148
    %v3407 = vmul.f32 %v3046, %v3152
    %v3408 = vmul.f32 %v3046, %v3156
    %v3409 = vmul.f32 %v3046, %v3160
    %v3410 = vmul.f32 %v3046, %v3164
    %v3411 = vmul.f32 %v3046, %v3168
    %v3412 = vmul.f32 %v3046, %v3172
    %v3413 = vmul.f32 %v3046, %v3176
    %v3414 = vmul.f32 %v3046, %v3180
    %v3415 = vmul.f32 %v3046, %v3184
    %v3416 = vmul.f32 %v3046, %v3188
    %v3417 = vmul.f32 %v3046, %v3192
    %v3418 = vmul.f32 %v3046, %v3196
    %v3419 = vmul.f32 %v3046, %v3199
    %v3420 = vmul.f32 %v3046, %v3203
    %v3421 = vmul.f32 %v3046, %v3207
    %v3422 = vmul.f32 %v3046, %v3211
    %v3423 = vmul.f32 %v3046, %v3215
    %v3424 = vmul.f32 %v3046, %v3219
    %v3425 = vmul.f32 %v3046, %v3223
    %v3426 = vmul.f32 %v3046, %v3227
    %v3427 = vmul.f32 %v3046, %v3231
    %v3428 = vmul.f32 %v3046, %v3235
    %v3429 = vmul.f32 %v3046, %v3239
    %v3430 = vmul.f32 %v3046, %v3243
    %v3431 = vmul.f32 %v3046, %v3247
    %v3432 = vmul.f32 %v3046, %v3251
    %v3433 = vmul.f32 %v3046, %v3255
    %v3434 = vmul.f32 %v3046, %v3259
    %v3435 = vmul.f32 %v3046, %v3262
    %v3436 = vmul.f32 %v3046, %v3266
    %v3437 = vmul.f32 %v3046, %v3270
    %v3438 = vmul.f32 %v3046, %v3274
    %v3439 = vmul.f32 %v3046, %v3278
    %v3440 = vmul.f32 %v3046, %v3282
    %v3441 = vmul.f32 %v3046, %v3286
    %v3442 = vmul.f32 %v3046, %v3290
    %v3443 = vmul.f32 %v3046, %v3294
    %v3444 = vmul.f32 %v3046, %v3298
    %v3445 = vmul.f32 %v3046, %v3302
    %v3446 = vmul.f32 %v3046, %v3306
    %v3447 = vmul.f32 %v3046, %v3310
    %v3448 = vmul.f32 %v3046, %v3314
    %v3449 = vmul.f32 %v3046, %v3318
    %v3450 = vmul.f32 %v3046, %v3322
    %v3451 = vmul.f32 %v3050, %v3073
    %v3452 = vmul.f32 %v3050, %v3077
    %v3453 = vmul.f32 %v3050, %v3081
    %v3454 = vmul.f32 %v3050, %v3085
    %v3455 = vmul.f32 %v3050, %v3089
    %v3456 = vmul.f32 %v3050, %v3093
    %v3457 = vmul.f32 %v3050, %v3097
    %v3458 = vmul.f32 %v3050, %v3101
    %v3459 = vmul.f32 %v3050, %v3105
    %v3460 = vmul.f32 %v3050, %v3109
    %v3461 = vmul.f32 %v3050, %v3113
    %v3462 = vmul.f32 %v3050, %v3117
    %v3463 = vmul.f32 %v3050, %v3121
    %v3464 = vmul.f32 %v3050, %v3125
    %v3465 = vmul.f32 %v3050, %v3129
    %v3466 = vmul.f32 %v3050, %v3133
    %v3467 = vmul.f32 %v3050, %v3136
    %v3468 = vmul.f32 %v3050, %v3140
    %v3469 = vmul.f32 %v3050, %v3144
    %v3470 = vmul.f32 %v3050, %v3148
    %v3471 = vmul.f32 %v3050, %v3152
    %v3472 = vmul.f32 %v3050, %v3156
    %v3473 = vmul.f32 %v3050, %v3160
    %v3474 = vmul.f32 %v3050, %v3164
    %v3475 = vmul.f32 %v3050, %v3168
    %v3476 = vmul.f32 %v3050, %v3172
    %v3477 = vmul.f32 %v3050, %v3176
    %v3478 = vmul.f32 %v3050, %v3180
    %v3479 = vmul.f32 %v3050, %v3184
    %v3480 = vmul.f32 %v3050, %v3188
    %v3481 = vmul.f32 %v3050, %v3192
    %v3482 = vmul.f32 %v3050, %v3196
    %v3483 = vmul.f32 %v3050, %v3199
    %v3484 = vmul.f32 %v3050, %v3203
    %v3485 = vmul.f32 %v3050, %v3207
    %v3486 = vmul.f32 %v3050, %v3211
    %v3487 = vmul.f32 %v3050, %v3215
    %v3488 = vmul.f32 %v3050, %v3219
    %v3489 = vmul.f32 %v3050, %v3223
    %v3490 = vmul.f32 %v3050, %v3227
    %v3491 = vmul.f32 %v3050, %v3231
    %v3492 = vmul.f32 %v3050, %v3235
    %v3493 = vmul.f32 %v3050, %v3239
    %v3494 = vmul.f32 %v3050, %v3243
    %v3495 = vmul.f32 %v3050, %v3247
    %v3496 = vmul.f32 %v3050, %v3251
    %v3497 = vmul.f32 %v3050, %v3255
    %v3498 = vmul.f32 %v3050, %v3259
    %v3499 = vmul.f32 %v3050, %v3262
    %v3500 = vmul.f32 %v3050, %v3266
    %v3501 = vmul.f32 %v3050, %v3270
    %v3502 = vmul.f32 %v3050, %v3274
    %v3503 = vmul.f32 %v3050, %v3278
    %v3504 = vmul.f32 %v3050, %v3282
    %v3505 = vmul.f32 %v3050, %v3286
    %v3506 = vmul.f32 %v3050, %v3290
    %v3507 = vmul.f32 %v3050, %v3294
    %v3508 = vmul.f32 %v3050, %v3298
    %v3509 = vmul.f32 %v3050, %v3302
    %v3510 = vmul.f32 %v3050, %v3306
    %v3511 = vmul.f32 %v3050, %v3310
    %v3512 = vmul.f32 %v3050, %v3314
    %v3513 = vmul.f32 %v3050, %v3318
    %v3514 = vmul.f32 %v3050, %v3322
    %v3515 = vadd.f32 %v2915, %v3387
    %v3516 = vadd.f32 %v2916, %v3388
    %v3517 = vadd.f32 %v2917, %v3389
    %v3518 = vadd.f32 %v2918, %v3390
    %v3519 = vadd.f32 %v2919, %v3391
    %v3520 = vadd.f32 %v2920, %v3392
    %v3521 = vadd.f32 %v2921, %v3393
    %v3522 = vadd.f32 %v2922, %v3394
    %v3523 = vadd.f32 %v2923, %v3395
    %v3524 = vadd.f32 %v2924, %v3396
    %v3525 = vadd.f32 %v2925, %v3397
    %v3526 = vadd.f32 %v2926, %v3398
    %v3527 = vadd.f32 %v2927, %v3399
    %v3528 = vadd.f32 %v2928, %v3400
    %v3529 = vadd.f32 %v2929, %v3401
    %v3530 = vadd.f32 %v2930, %v3402
    %v3531 = vadd.f32 %v2931, %v3403
    %v3532 = vadd.f32 %v2932, %v3404
    %v3533 = vadd.f32 %v2933, %v3405
    %v3534 = vadd.f32 %v2934, %v3406
    %v3535 = vadd.f32 %v2935, %v3407
    %v3536 = vadd.f32 %v2936, %v3408
    %v3537 = vadd.f32 %v2937, %v3409
    %v3538 = vadd.f32 %v2938, %v3410
    %v3539 = vadd.f32 %v2939, %v3411
    %v3540 = vadd.f32 %v2940, %v3412
    %v3541 = vadd.f32 %v2941, %v3413
    %v3542 = vadd.f32 %v2942, %v3414
    %v3543 = vadd.f32 %v2943, %v3415
    %v3544 = vadd.f32 %v2944, %v3416
    %v3545 = vadd.f32 %v2945, %v3417
    %v3546 = vadd.f32 %v2946, %v3418
    %v3547 = vadd.f32 %v2947, %v3419
    %v3548 = vadd.f32 %v2948, %v3420
    %v3549 = vadd.f32 %v2949, %v3421
    %v3550 = vadd.f32 %v2950, %v3422
    %v3551 = vadd.f32 %v2951, %v3423
    %v3552 = vadd.f32 %v2952, %v3424
    %v3553 = vadd.f32 %v2953, %v3425
    %v3554 = vadd.f32 %v2954, %v3426
    %v3555 = vadd.f32 %v2955, %v3427
    %v3556 = vadd.f32 %v2956, %v3428
    %v3557 = vadd.f32 %v2957, %v3429
    %v3558 = vadd.f32 %v2958, %v3430
    %v3559 = vadd.f32 %v2959, %v3431
    %v3560 = vadd.f32 %v2960, %v3432
    %v3561 = vadd.f32 %v2961, %v3433
    %v3562 = vadd.f32 %v2962, %v3434
    %v3563 = vadd.f32 %v2963, %v3435
    %v3564 = vadd.f32 %v2964, %v3436
    %v3565 = vadd.f32 %v2965, %v3437
    %v3566 = vadd.f32 %v2966, %v3438
    %v3567 = vadd.f32 %v2967, %v3439
    %v3568 = vadd.f32 %v2968, %v3440
    %v3569 = vadd.f32 %v2969, %v3441
    %v3570 = vadd.f32 %v2970, %v3442
    %v3571 = vadd.f32 %v2971, %v3443
    %v3572 = vadd.f32 %v2972, %v3444
    %v3573 = vadd.f32 %v2973, %v3445
    %v3574 = vadd.f32 %v2974, %v3446
    %v3575 = vadd.f32 %v2975, %v3447
    %v3576 = vadd.f32 %v2976, %v3448
    %v3577 = vadd.f32 %v2977, %v3449
    %v3578 = vadd.f32 %v2978, %v3450
    %v3579 = vadd.f32 %v2979, %v3451
    %v3580 = vadd.f32 %v2980, %v3452
    %v3581 = vadd.f32 %v2981, %v3453
    %v3582 = vadd.f32 %v2982, %v3454
    %v3583 = vadd.f32 %v2983, %v3455
    %v3584 = vadd.f32 %v2984, %v3456
    %v3585 = vadd.f32 %v2985, %v3457
    %v3586 = vadd.f32 %v2986, %v3458
    %v3587 = vadd.f32 %v2987, %v3459
    %v3588 = vadd.f32 %v2988, %v3460
    %v3589 = vadd.f32 %v2989, %v3461
    %v3590 = vadd.f32 %v2990, %v3462
    %v3591 = vadd.f32 %v2991, %v3463
    %v3592 = vadd.f32 %v2992, %v3464
    %v3593 = vadd.f32 %v2993, %v3465
    %v3594 = vadd.f32 %v2994, %v3466
    %v3595 = vadd.f32 %v2995, %v3467
    %v3596 = vadd.f32 %v2996, %v3468
    %v3597 = vadd.f32 %v2997, %v3469
    %v3598 = vadd.f32 %v2998, %v3470
    %v3599 = vadd.f32 %v2999, %v3471
    %v3600 = vadd.f32 %v3000, %v3472
    %v3601 = vadd.f32 %v3001, %v3473
    %v3602 = vadd.f32 %v3002, %v3474
    %v3603 = vadd.f32 %v3003, %v3475
    %v3604 = vadd.f32 %v3004, %v3476
    %v3605 = vadd.f32 %v3005, %v3477
    %v3606 = vadd.f32 %v3006, %v3478
    %v3607 = vadd.f32 %v3007, %v3479
    %v3608 = vadd.f32 %v3008, %v3480
    %v3609 = vadd.f32 %v3009, %v3481
    %v3610 = vadd.f32 %v3010, %v3482
    %v3611 = vadd.f32 %v3011, %v3483
    %v3612 = vadd.f32 %v3012, %v3484
    %v3613 = vadd.f32 %v3013, %v3485
    %v3614 = vadd.f32 %v3014, %v3486
    %v3615 = vadd.f32 %v3015, %v3487
    %v3616 = vadd.f32 %v3016, %v3488
    %v3617 = vadd.f32 %v3017, %v3489
    %v3618 = vadd.f32 %v3018, %v3490
    %v3619 = vadd.f32 %v3019, %v3491
    %v3620 = vadd.f32 %v3020, %v3492
    %v3621 = vadd.f32 %v3021, %v3493
    %v3622 = vadd.f32 %v3022, %v3494
    %v3623 = vadd.f32 %v3023, %v3495
    %v3624 = vadd.f32 %v3024, %v3496
    %v3625 = vadd.f32 %v3025, %v3497
    %v3626 = vadd.f32 %v3026, %v3498
    %v3627 = vadd.f32 %v3027, %v3499
    %v3628 = vadd.f32 %v3028, %v3500
    %v3629 = vadd.f32 %v3029, %v3501
    %v3630 = vadd.f32 %v3030, %v3502
    %v3631 = vadd.f32 %v3031, %v3503
    %v3632 = vadd.f32 %v3032, %v3504
    %v3633 = vadd.f32 %v3033, %v3505
    %v3634 = vadd.f32 %v3034, %v3506
    %v3635 = vadd.f32 %v3035, %v3507
    %v3636 = vadd.f32 %v3036, %v3508
    %v3637 = vadd.f32 %v3037, %v3509
    %v3638 = vadd.f32 %v3038, %v3510
    %v3639 = vadd.f32 %v3039, %v3511
    %v3640 = vadd.f32 %v3040, %v3512
    %v3641 = vadd.f32 %v3041, %v3513
    %v3642 = vadd.f32 %v3042, %v3514
    %v3644 = vlaneseq
    %v3645 = vshrl.u32 %v3644, 7
    %v3646 = vsub.s32 0, %v3645
    %v3647 = vrot.slane %v170, %v3646
    %v3648 = vlaneseq
    %v3649 = vshrl.u32 %v3648, 7
    %v3650 = vsub.s32 1, %v3649
    %v3651 = vrot.slane %v170, %v3650
    %v3652 = vlaneseq
    %v3653 = vshrl.u32 %v3652, 7
    %v3654 = vsub.s32 2, %v3653
    %v3655 = vrot.slane %v170, %v3654
    %v3656 = vlaneseq
    %v3657 = vshrl.u32 %v3656, 7
    %v3658 = vsub.s32 3, %v3657
    %v3659 = vrot.slane %v170, %v3658
    %3661 = vbcast.lane.b32.xlu0 %v3647, 256
    %v3662 = vpop.permute.xlu0 %3661
    %s3664 = sor.u32 256, 8
    %3665 = vbcast.lane.b32.xlu0 %v3647, %s3664
    %v3666 = vpop.permute.xlu0 %3665
    %s3668 = sor.u32 256, 16
    %3669 = vbcast.lane.b32.xlu0 %v3647, %s3668
    %v3670 = vpop.permute.xlu0 %3669
    %s3672 = sor.u32 256, 24
    %3673 = vbcast.lane.b32.xlu0 %v3647, %s3672
    %v3674 = vpop.permute.xlu0 %3673
    %s3676 = sor.u32 256, 32
    %3677 = vbcast.lane.b32.xlu0 %v3647, %s3676
    %v3678 = vpop.permute.xlu0 %3677
    %s3680 = sor.u32 256, 40
    %3681 = vbcast.lane.b32.xlu0 %v3647, %s3680
    %v3682 = vpop.permute.xlu0 %3681
    %s3684 = sor.u32 256, 48
    %3685 = vbcast.lane.b32.xlu0 %v3647, %s3684
    %v3686 = vpop.permute.xlu0 %3685
    %s3688 = sor.u32 256, 56
    %3689 = vbcast.lane.b32.xlu0 %v3647, %s3688
    %v3690 = vpop.permute.xlu0 %3689
    %s3692 = sor.u32 256, 64
    %3693 = vbcast.lane.b32.xlu0 %v3647, %s3692
    %v3694 = vpop.permute.xlu0 %3693
    %s3696 = sor.u32 256, 72
    %3697 = vbcast.lane.b32.xlu0 %v3647, %s3696
    %v3698 = vpop.permute.xlu0 %3697
    %s3700 = sor.u32 256, 80
    %3701 = vbcast.lane.b32.xlu0 %v3647, %s3700
    %v3702 = vpop.permute.xlu0 %3701
    %s3704 = sor.u32 256, 88
    %3705 = vbcast.lane.b32.xlu0 %v3647, %s3704
    %v3706 = vpop.permute.xlu0 %3705
    %s3708 = sor.u32 256, 96
    %3709 = vbcast.lane.b32.xlu0 %v3647, %s3708
    %v3710 = vpop.permute.xlu0 %3709
    %s3712 = sor.u32 256, 104
    %3713 = vbcast.lane.b32.xlu0 %v3647, %s3712
    %v3714 = vpop.permute.xlu0 %3713
    %s3716 = sor.u32 256, 112
    %3717 = vbcast.lane.b32.xlu0 %v3647, %s3716
    %v3718 = vpop.permute.xlu0 %3717
    %s3720 = sor.u32 256, 120
    %3721 = vbcast.lane.b32.xlu0 %v3647, %s3720
    %v3722 = vpop.permute.xlu0 %3721
    %3724 = vbcast.lane.b32.xlu0 %v3651, 256
    %v3725 = vpop.permute.xlu0 %3724
    %s3727 = sor.u32 256, 8
    %3728 = vbcast.lane.b32.xlu0 %v3651, %s3727
    %v3729 = vpop.permute.xlu0 %3728
    %s3731 = sor.u32 256, 16
    %3732 = vbcast.lane.b32.xlu0 %v3651, %s3731
    %v3733 = vpop.permute.xlu0 %3732
    %s3735 = sor.u32 256, 24
    %3736 = vbcast.lane.b32.xlu0 %v3651, %s3735
    %v3737 = vpop.permute.xlu0 %3736
    %s3739 = sor.u32 256, 32
    %3740 = vbcast.lane.b32.xlu0 %v3651, %s3739
    %v3741 = vpop.permute.xlu0 %3740
    %s3743 = sor.u32 256, 40
    %3744 = vbcast.lane.b32.xlu0 %v3651, %s3743
    %v3745 = vpop.permute.xlu0 %3744
    %s3747 = sor.u32 256, 48
    %3748 = vbcast.lane.b32.xlu0 %v3651, %s3747
    %v3749 = vpop.permute.xlu0 %3748
    %s3751 = sor.u32 256, 56
    %3752 = vbcast.lane.b32.xlu0 %v3651, %s3751
    %v3753 = vpop.permute.xlu0 %3752
    %s3755 = sor.u32 256, 64
    %3756 = vbcast.lane.b32.xlu0 %v3651, %s3755
    %v3757 = vpop.permute.xlu0 %3756
    %s3759 = sor.u32 256, 72
    %3760 = vbcast.lane.b32.xlu0 %v3651, %s3759
    %v3761 = vpop.permute.xlu0 %3760
    %s3763 = sor.u32 256, 80
    %3764 = vbcast.lane.b32.xlu0 %v3651, %s3763
    %v3765 = vpop.permute.xlu0 %3764
    %s3767 = sor.u32 256, 88
    %3768 = vbcast.lane.b32.xlu0 %v3651, %s3767
    %v3769 = vpop.permute.xlu0 %3768
    %s3771 = sor.u32 256, 96
    %3772 = vbcast.lane.b32.xlu0 %v3651, %s3771
    %v3773 = vpop.permute.xlu0 %3772
    %s3775 = sor.u32 256, 104
    %3776 = vbcast.lane.b32.xlu0 %v3651, %s3775
    %v3777 = vpop.permute.xlu0 %3776
    %s3779 = sor.u32 256, 112
    %3780 = vbcast.lane.b32.xlu0 %v3651, %s3779
    %v3781 = vpop.permute.xlu0 %3780
    %s3783 = sor.u32 256, 120
    %3784 = vbcast.lane.b32.xlu0 %v3651, %s3783
    %v3785 = vpop.permute.xlu0 %3784
    %3787 = vbcast.lane.b32.xlu0 %v3655, 256
    %v3788 = vpop.permute.xlu0 %3787
    %s3790 = sor.u32 256, 8
    %3791 = vbcast.lane.b32.xlu0 %v3655, %s3790
    %v3792 = vpop.permute.xlu0 %3791
    %s3794 = sor.u32 256, 16
    %3795 = vbcast.lane.b32.xlu0 %v3655, %s3794
    %v3796 = vpop.permute.xlu0 %3795
    %s3798 = sor.u32 256, 24
    %3799 = vbcast.lane.b32.xlu0 %v3655, %s3798
    %v3800 = vpop.permute.xlu0 %3799
    %s3802 = sor.u32 256, 32
    %3803 = vbcast.lane.b32.xlu0 %v3655, %s3802
    %v3804 = vpop.permute.xlu0 %3803
    %s3806 = sor.u32 256, 40
    %3807 = vbcast.lane.b32.xlu0 %v3655, %s3806
    %v3808 = vpop.permute.xlu0 %3807
    %s3810 = sor.u32 256, 48
    %3811 = vbcast.lane.b32.xlu0 %v3655, %s3810
    %v3812 = vpop.permute.xlu0 %3811
    %s3814 = sor.u32 256, 56
    %3815 = vbcast.lane.b32.xlu0 %v3655, %s3814
    %v3816 = vpop.permute.xlu0 %3815
    %s3818 = sor.u32 256, 64
    %3819 = vbcast.lane.b32.xlu0 %v3655, %s3818
    %v3820 = vpop.permute.xlu0 %3819
    %s3822 = sor.u32 256, 72
    %3823 = vbcast.lane.b32.xlu0 %v3655, %s3822
    %v3824 = vpop.permute.xlu0 %3823
    %s3826 = sor.u32 256, 80
    %3827 = vbcast.lane.b32.xlu0 %v3655, %s3826
    %v3828 = vpop.permute.xlu0 %3827
    %s3830 = sor.u32 256, 88
    %3831 = vbcast.lane.b32.xlu0 %v3655, %s3830
    %v3832 = vpop.permute.xlu0 %3831
    %s3834 = sor.u32 256, 96
    %3835 = vbcast.lane.b32.xlu0 %v3655, %s3834
    %v3836 = vpop.permute.xlu0 %3835
    %s3838 = sor.u32 256, 104
    %3839 = vbcast.lane.b32.xlu0 %v3655, %s3838
    %v3840 = vpop.permute.xlu0 %3839
    %s3842 = sor.u32 256, 112
    %3843 = vbcast.lane.b32.xlu0 %v3655, %s3842
    %v3844 = vpop.permute.xlu0 %3843
    %s3846 = sor.u32 256, 120
    %3847 = vbcast.lane.b32.xlu0 %v3655, %s3846
    %v3848 = vpop.permute.xlu0 %3847
    %3850 = vbcast.lane.b32.xlu0 %v3659, 256
    %v3851 = vpop.permute.xlu0 %3850
    %s3853 = sor.u32 256, 8
    %3854 = vbcast.lane.b32.xlu0 %v3659, %s3853
    %v3855 = vpop.permute.xlu0 %3854
    %s3857 = sor.u32 256, 16
    %3858 = vbcast.lane.b32.xlu0 %v3659, %s3857
    %v3859 = vpop.permute.xlu0 %3858
    %s3861 = sor.u32 256, 24
    %3862 = vbcast.lane.b32.xlu0 %v3659, %s3861
    %v3863 = vpop.permute.xlu0 %3862
    %s3865 = sor.u32 256, 32
    %3866 = vbcast.lane.b32.xlu0 %v3659, %s3865
    %v3867 = vpop.permute.xlu0 %3866
    %s3869 = sor.u32 256, 40
    %3870 = vbcast.lane.b32.xlu0 %v3659, %s3869
    %v3871 = vpop.permute.xlu0 %3870
    %s3873 = sor.u32 256, 48
    %3874 = vbcast.lane.b32.xlu0 %v3659, %s3873
    %v3875 = vpop.permute.xlu0 %3874
    %s3877 = sor.u32 256, 56
    %3878 = vbcast.lane.b32.xlu0 %v3659, %s3877
    %v3879 = vpop.permute.xlu0 %3878
    %s3881 = sor.u32 256, 64
    %3882 = vbcast.lane.b32.xlu0 %v3659, %s3881
    %v3883 = vpop.permute.xlu0 %3882
    %s3885 = sor.u32 256, 72
    %3886 = vbcast.lane.b32.xlu0 %v3659, %s3885
    %v3887 = vpop.permute.xlu0 %3886
    %s3889 = sor.u32 256, 80
    %3890 = vbcast.lane.b32.xlu0 %v3659, %s3889
    %v3891 = vpop.permute.xlu0 %3890
    %s3893 = sor.u32 256, 88
    %3894 = vbcast.lane.b32.xlu0 %v3659, %s3893
    %v3895 = vpop.permute.xlu0 %3894
    %s3897 = sor.u32 256, 96
    %3898 = vbcast.lane.b32.xlu0 %v3659, %s3897
    %v3899 = vpop.permute.xlu0 %3898
    %s3901 = sor.u32 256, 104
    %3902 = vbcast.lane.b32.xlu0 %v3659, %s3901
    %v3903 = vpop.permute.xlu0 %3902
    %s3905 = sor.u32 256, 112
    %3906 = vbcast.lane.b32.xlu0 %v3659, %s3905
    %v3907 = vpop.permute.xlu0 %3906
    %s3909 = sor.u32 256, 120
    %3910 = vbcast.lane.b32.xlu0 %v3659, %s3909
    %v3911 = vpop.permute.xlu0 %3910
    %v3976 = vadd.f32 %v3515, %v3662
    %v3977 = vadd.f32 %v3516, %v3666
    %v3978 = vadd.f32 %v3517, %v3670
    %v3979 = vadd.f32 %v3518, %v3674
    %v3980 = vadd.f32 %v3519, %v3678
    %v3981 = vadd.f32 %v3520, %v3682
    %v3982 = vadd.f32 %v3521, %v3686
    %v3983 = vadd.f32 %v3522, %v3690
    %v3984 = vadd.f32 %v3523, %v3694
    %v3985 = vadd.f32 %v3524, %v3698
    %v3986 = vadd.f32 %v3525, %v3702
    %v3987 = vadd.f32 %v3526, %v3706
    %v3988 = vadd.f32 %v3527, %v3710
    %v3989 = vadd.f32 %v3528, %v3714
    %v3990 = vadd.f32 %v3529, %v3718
    %v3991 = vadd.f32 %v3530, %v3722
    %v3992 = vadd.f32 %v3531, %v3725
    %v3993 = vadd.f32 %v3532, %v3729
    %v3994 = vadd.f32 %v3533, %v3733
    %v3995 = vadd.f32 %v3534, %v3737
    %v3996 = vadd.f32 %v3535, %v3741
    %v3997 = vadd.f32 %v3536, %v3745
    %v3998 = vadd.f32 %v3537, %v3749
    %v3999 = vadd.f32 %v3538, %v3753
    %v4000 = vadd.f32 %v3539, %v3757
    %v4001 = vadd.f32 %v3540, %v3761
    %v4002 = vadd.f32 %v3541, %v3765
    %v4003 = vadd.f32 %v3542, %v3769
    %v4004 = vadd.f32 %v3543, %v3773
    %v4005 = vadd.f32 %v3544, %v3777
    %v4006 = vadd.f32 %v3545, %v3781
    %v4007 = vadd.f32 %v3546, %v3785
    %v4008 = vadd.f32 %v3547, %v3788
    %v4009 = vadd.f32 %v3548, %v3792
    %v4010 = vadd.f32 %v3549, %v3796
    %v4011 = vadd.f32 %v3550, %v3800
    %v4012 = vadd.f32 %v3551, %v3804
    %v4013 = vadd.f32 %v3552, %v3808
    %v4014 = vadd.f32 %v3553, %v3812
    %v4015 = vadd.f32 %v3554, %v3816
    %v4016 = vadd.f32 %v3555, %v3820
    %v4017 = vadd.f32 %v3556, %v3824
    %v4018 = vadd.f32 %v3557, %v3828
    %v4019 = vadd.f32 %v3558, %v3832
    %v4020 = vadd.f32 %v3559, %v3836
    %v4021 = vadd.f32 %v3560, %v3840
    %v4022 = vadd.f32 %v3561, %v3844
    %v4023 = vadd.f32 %v3562, %v3848
    %v4024 = vadd.f32 %v3563, %v3851
    %v4025 = vadd.f32 %v3564, %v3855
    %v4026 = vadd.f32 %v3565, %v3859
    %v4027 = vadd.f32 %v3566, %v3863
    %v4028 = vadd.f32 %v3567, %v3867
    %v4029 = vadd.f32 %v3568, %v3871
    %v4030 = vadd.f32 %v3569, %v3875
    %v4031 = vadd.f32 %v3570, %v3879
    %v4032 = vadd.f32 %v3571, %v3883
    %v4033 = vadd.f32 %v3572, %v3887
    %v4034 = vadd.f32 %v3573, %v3891
    %v4035 = vadd.f32 %v3574, %v3895
    %v4036 = vadd.f32 %v3575, %v3899
    %v4037 = vadd.f32 %v3576, %v3903
    %v4038 = vadd.f32 %v3577, %v3907
    %v4039 = vadd.f32 %v3578, %v3911
    %v4040 = vadd.f32 %v3579, %v3662
    %v4041 = vadd.f32 %v3580, %v3666
    %v4042 = vadd.f32 %v3581, %v3670
    %v4043 = vadd.f32 %v3582, %v3674
    %v4044 = vadd.f32 %v3583, %v3678
    %v4045 = vadd.f32 %v3584, %v3682
    %v4046 = vadd.f32 %v3585, %v3686
    %v4047 = vadd.f32 %v3586, %v3690
    %v4048 = vadd.f32 %v3587, %v3694
    %v4049 = vadd.f32 %v3588, %v3698
    %v4050 = vadd.f32 %v3589, %v3702
    %v4051 = vadd.f32 %v3590, %v3706
    %v4052 = vadd.f32 %v3591, %v3710
    %v4053 = vadd.f32 %v3592, %v3714
    %v4054 = vadd.f32 %v3593, %v3718
    %v4055 = vadd.f32 %v3594, %v3722
    %v4056 = vadd.f32 %v3595, %v3725
    %v4057 = vadd.f32 %v3596, %v3729
    %v4058 = vadd.f32 %v3597, %v3733
    %v4059 = vadd.f32 %v3598, %v3737
    %v4060 = vadd.f32 %v3599, %v3741
    %v4061 = vadd.f32 %v3600, %v3745
    %v4062 = vadd.f32 %v3601, %v3749
    %v4063 = vadd.f32 %v3602, %v3753
    %v4064 = vadd.f32 %v3603, %v3757
    %v4065 = vadd.f32 %v3604, %v3761
    %v4066 = vadd.f32 %v3605, %v3765
    %v4067 = vadd.f32 %v3606, %v3769
    %v4068 = vadd.f32 %v3607, %v3773
    %v4069 = vadd.f32 %v3608, %v3777
    %v4070 = vadd.f32 %v3609, %v3781
    %v4071 = vadd.f32 %v3610, %v3785
    %v4072 = vadd.f32 %v3611, %v3788
    %v4073 = vadd.f32 %v3612, %v3792
    %v4074 = vadd.f32 %v3613, %v3796
    %v4075 = vadd.f32 %v3614, %v3800
    %v4076 = vadd.f32 %v3615, %v3804
    %v4077 = vadd.f32 %v3616, %v3808
    %v4078 = vadd.f32 %v3617, %v3812
    %v4079 = vadd.f32 %v3618, %v3816
    %v4080 = vadd.f32 %v3619, %v3820
    %v4081 = vadd.f32 %v3620, %v3824
    %v4082 = vadd.f32 %v3621, %v3828
    %v4083 = vadd.f32 %v3622, %v3832
    %v4084 = vadd.f32 %v3623, %v3836
    %v4085 = vadd.f32 %v3624, %v3840
    %v4086 = vadd.f32 %v3625, %v3844
    %v4087 = vadd.f32 %v3626, %v3848
    %v4088 = vadd.f32 %v3627, %v3851
    %v4089 = vadd.f32 %v3628, %v3855
    %v4090 = vadd.f32 %v3629, %v3859
    %v4091 = vadd.f32 %v3630, %v3863
    %v4092 = vadd.f32 %v3631, %v3867
    %v4093 = vadd.f32 %v3632, %v3871
    %v4094 = vadd.f32 %v3633, %v3875
    %v4095 = vadd.f32 %v3634, %v3879
    %v4096 = vadd.f32 %v3635, %v3883
    %v4097 = vadd.f32 %v3636, %v3887
    %v4098 = vadd.f32 %v3637, %v3891
    %v4099 = vadd.f32 %v3638, %v3895
    %v4100 = vadd.f32 %v3639, %v3899
    %v4101 = vadd.f32 %v3640, %v3903
    %v4102 = vadd.f32 %v3641, %v3907
    %v4103 = vadd.f32 %v3642, %v3911
    %v4104 = vpack.c.bf16 %v147, %v147
    %v4105 = vpack.c.bf16 %v148, %v148
    %v4106 = vpack.c.bf16 %v149, %v149
    %v4107 = vpack.c.bf16 %v150, %v150
    %v4108 = vld [vmem:[#allocation2] sm:$0xff]
    %v4109 = vld [vmem:[#allocation2 + $0x8] sm:$0xff]
    %v4110 = vld [vmem:[#allocation2 + $0x10] sm:$0xff]
    %v4111 = vld [vmem:[#allocation2 + $0x18] sm:$0xff]
    %v4112 = vld [vmem:[#allocation2 + $0x20] sm:$0xff]
    %v4113 = vld [vmem:[#allocation2 + $0x28] sm:$0xff]
    %v4114 = vld [vmem:[#allocation2 + $0x30] sm:$0xff]
    %v4115 = vld [vmem:[#allocation2 + $0x38] sm:$0xff]
    %v4116 = vld [vmem:[#allocation2 + $0x40] sm:$0xff]
    %v4117 = vld [vmem:[#allocation2 + $0x48] sm:$0xff]
    %v4118 = vld [vmem:[#allocation2 + $0x50] sm:$0xff]
    %v4119 = vld [vmem:[#allocation2 + $0x58] sm:$0xff]
    %v4120 = vld [vmem:[#allocation2 + $0x60] sm:$0xff]
    %v4121 = vld [vmem:[#allocation2 + $0x68] sm:$0xff]
    %v4122 = vld [vmem:[#allocation2 + $0x70] sm:$0xff]
    %v4123 = vld [vmem:[#allocation2 + $0x78] sm:$0xff]
    %v4124 = vld [vmem:[#allocation2 + $0x80] sm:$0xff]
    %v4125 = vld [vmem:[#allocation2 + $0x88] sm:$0xff]
    %v4126 = vld [vmem:[#allocation2 + $0x90] sm:$0xff]
    %v4127 = vld [vmem:[#allocation2 + $0x98] sm:$0xff]
    %v4128 = vld [vmem:[#allocation2 + $0xa0] sm:$0xff]
    %v4129 = vld [vmem:[#allocation2 + $0xa8] sm:$0xff]
    %v4130 = vld [vmem:[#allocation2 + $0xb0] sm:$0xff]
    %v4131 = vld [vmem:[#allocation2 + $0xb8] sm:$0xff]
    %v4132 = vld [vmem:[#allocation2 + $0xc0] sm:$0xff]
    %v4133 = vld [vmem:[#allocation2 + $0xc8] sm:$0xff]
    %v4134 = vld [vmem:[#allocation2 + $0xd0] sm:$0xff]
    %v4135 = vld [vmem:[#allocation2 + $0xd8] sm:$0xff]
    %v4136 = vld [vmem:[#allocation2 + $0xe0] sm:$0xff]
    %v4137 = vld [vmem:[#allocation2 + $0xe8] sm:$0xff]
    %v4138 = vld [vmem:[#allocation2 + $0xf0] sm:$0xff]
    %v4139 = vld [vmem:[#allocation2 + $0xf8] sm:$0xff]
    %v4140 = vld [vmem:[#allocation2 + $0x100] sm:$0xff]
    %v4141 = vld [vmem:[#allocation2 + $0x108] sm:$0xff]
    %v4142 = vld [vmem:[#allocation2 + $0x110] sm:$0xff]
    %v4143 = vld [vmem:[#allocation2 + $0x118] sm:$0xff]
    %v4144 = vld [vmem:[#allocation2 + $0x120] sm:$0xff]
    %v4145 = vld [vmem:[#allocation2 + $0x128] sm:$0xff]
    %v4146 = vld [vmem:[#allocation2 + $0x130] sm:$0xff]
    %v4147 = vld [vmem:[#allocation2 + $0x138] sm:$0xff]
    %v4148 = vld [vmem:[#allocation2 + $0x140] sm:$0xff]
    %v4149 = vld [vmem:[#allocation2 + $0x148] sm:$0xff]
    %v4150 = vld [vmem:[#allocation2 + $0x150] sm:$0xff]
    %v4151 = vld [vmem:[#allocation2 + $0x158] sm:$0xff]
    %v4152 = vld [vmem:[#allocation2 + $0x160] sm:$0xff]
    %v4153 = vld [vmem:[#allocation2 + $0x168] sm:$0xff]
    %v4154 = vld [vmem:[#allocation2 + $0x170] sm:$0xff]
    %v4155 = vld [vmem:[#allocation2 + $0x178] sm:$0xff]
    %v4156 = vld [vmem:[#allocation2 + $0x180] sm:$0xff]
    %v4157 = vld [vmem:[#allocation2 + $0x188] sm:$0xff]
    %v4158 = vld [vmem:[#allocation2 + $0x190] sm:$0xff]
    %v4159 = vld [vmem:[#allocation2 + $0x198] sm:$0xff]
    %v4160 = vld [vmem:[#allocation2 + $0x1a0] sm:$0xff]
    %v4161 = vld [vmem:[#allocation2 + $0x1a8] sm:$0xff]
    %v4162 = vld [vmem:[#allocation2 + $0x1b0] sm:$0xff]
    %v4163 = vld [vmem:[#allocation2 + $0x1b8] sm:$0xff]
    %v4164 = vld [vmem:[#allocation2 + $0x1c0] sm:$0xff]
    %v4165 = vld [vmem:[#allocation2 + $0x1c8] sm:$0xff]
    %v4166 = vld [vmem:[#allocation2 + $0x1d0] sm:$0xff]
    %v4167 = vld [vmem:[#allocation2 + $0x1d8] sm:$0xff]
    %v4168 = vld [vmem:[#allocation2 + $0x1e0] sm:$0xff]
    %v4169 = vld [vmem:[#allocation2 + $0x1e8] sm:$0xff]
    %v4170 = vld [vmem:[#allocation2 + $0x1f0] sm:$0xff]
    %v4171 = vld [vmem:[#allocation2 + $0x1f8] sm:$0xff]
    %v4172 = vpack.c.bf16 %v3977, %v3976
    %v4173 = vpack.c.bf16 %v3979, %v3978
    %v4174 = vpack.c.bf16 %v3981, %v3980
    %v4175 = vpack.c.bf16 %v3983, %v3982
    %v4176 = vpack.c.bf16 %v3985, %v3984
    %v4177 = vpack.c.bf16 %v3987, %v3986
    %v4178 = vpack.c.bf16 %v3989, %v3988
    %v4179 = vpack.c.bf16 %v3991, %v3990
    %v4180 = vpack.c.bf16 %v3993, %v3992
    %v4181 = vpack.c.bf16 %v3995, %v3994
    %v4182 = vpack.c.bf16 %v3997, %v3996
    %v4183 = vpack.c.bf16 %v3999, %v3998
    %v4184 = vpack.c.bf16 %v4001, %v4000
    %v4185 = vpack.c.bf16 %v4003, %v4002
    %v4186 = vpack.c.bf16 %v4005, %v4004
    %v4187 = vpack.c.bf16 %v4007, %v4006
    %v4188 = vpack.c.bf16 %v4009, %v4008
    %v4189 = vpack.c.bf16 %v4011, %v4010
    %v4190 = vpack.c.bf16 %v4013, %v4012
    %v4191 = vpack.c.bf16 %v4015, %v4014
    %v4192 = vpack.c.bf16 %v4017, %v4016
    %v4193 = vpack.c.bf16 %v4019, %v4018
    %v4194 = vpack.c.bf16 %v4021, %v4020
    %v4195 = vpack.c.bf16 %v4023, %v4022
    %v4196 = vpack.c.bf16 %v4025, %v4024
    %v4197 = vpack.c.bf16 %v4027, %v4026
    %v4198 = vpack.c.bf16 %v4029, %v4028
    %v4199 = vpack.c.bf16 %v4031, %v4030
    %v4200 = vpack.c.bf16 %v4033, %v4032
    %v4201 = vpack.c.bf16 %v4035, %v4034
    %v4202 = vpack.c.bf16 %v4037, %v4036
    %v4203 = vpack.c.bf16 %v4039, %v4038
    %v4204 = vpack.c.bf16 %v4041, %v4040
    %v4205 = vpack.c.bf16 %v4043, %v4042
    %v4206 = vpack.c.bf16 %v4045, %v4044
    %v4207 = vpack.c.bf16 %v4047, %v4046
    %v4208 = vpack.c.bf16 %v4049, %v4048
    %v4209 = vpack.c.bf16 %v4051, %v4050
    %v4210 = vpack.c.bf16 %v4053, %v4052
    %v4211 = vpack.c.bf16 %v4055, %v4054
    %v4212 = vpack.c.bf16 %v4057, %v4056
    %v4213 = vpack.c.bf16 %v4059, %v4058
    %v4214 = vpack.c.bf16 %v4061, %v4060
    %v4215 = vpack.c.bf16 %v4063, %v4062
    %v4216 = vpack.c.bf16 %v4065, %v4064
    %v4217 = vpack.c.bf16 %v4067, %v4066
    %v4218 = vpack.c.bf16 %v4069, %v4068
    %v4219 = vpack.c.bf16 %v4071, %v4070
    %v4220 = vpack.c.bf16 %v4073, %v4072
    %v4221 = vpack.c.bf16 %v4075, %v4074
    %v4222 = vpack.c.bf16 %v4077, %v4076
    %v4223 = vpack.c.bf16 %v4079, %v4078
    %v4224 = vpack.c.bf16 %v4081, %v4080
    %v4225 = vpack.c.bf16 %v4083, %v4082
    %v4226 = vpack.c.bf16 %v4085, %v4084
    %v4227 = vpack.c.bf16 %v4087, %v4086
    %v4228 = vpack.c.bf16 %v4089, %v4088
    %v4229 = vpack.c.bf16 %v4091, %v4090
    %v4230 = vpack.c.bf16 %v4093, %v4092
    %v4231 = vpack.c.bf16 %v4095, %v4094
    %v4232 = vpack.c.bf16 %v4097, %v4096
    %v4233 = vpack.c.bf16 %v4099, %v4098
    %v4234 = vpack.c.bf16 %v4101, %v4100
    %v4235 = vpack.c.bf16 %v4103, %v4102
    %v4236 = vld [vmem:[#allocation5] sm:$0xff]
    %v4237 = vld [vmem:[#allocation5 + $0x8] sm:$0xff]
    %v4238 = vld [vmem:[#allocation5 + $0x10] sm:$0xff]
    %v4239 = vld [vmem:[#allocation5 + $0x18] sm:$0xff]
    %v4240 = vld [vmem:[#allocation5 + $0x20] sm:$0xff]
    %v4241 = vld [vmem:[#allocation5 + $0x28] sm:$0xff]
    %v4242 = vld [vmem:[#allocation5 + $0x30] sm:$0xff]
    %v4243 = vld [vmem:[#allocation5 + $0x38] sm:$0xff]
    %v4244 = vld [vmem:[#allocation5 + $0x40] sm:$0xff]
    %v4245 = vld [vmem:[#allocation5 + $0x48] sm:$0xff]
    %v4246 = vld [vmem:[#allocation5 + $0x50] sm:$0xff]
    %v4247 = vld [vmem:[#allocation5 + $0x58] sm:$0xff]
    %v4248 = vld [vmem:[#allocation5 + $0x60] sm:$0xff]
    %v4249 = vld [vmem:[#allocation5 + $0x68] sm:$0xff]
    %v4250 = vld [vmem:[#allocation5 + $0x70] sm:$0xff]
    %v4251 = vld [vmem:[#allocation5 + $0x78] sm:$0xff]
    %v4252 = vld [vmem:[#allocation5 + $0x80] sm:$0xff]
    %v4253 = vld [vmem:[#allocation5 + $0x88] sm:$0xff]
    %v4254 = vld [vmem:[#allocation5 + $0x90] sm:$0xff]
    %v4255 = vld [vmem:[#allocation5 + $0x98] sm:$0xff]
    %v4256 = vld [vmem:[#allocation5 + $0xa0] sm:$0xff]
    %v4257 = vld [vmem:[#allocation5 + $0xa8] sm:$0xff]
    %v4258 = vld [vmem:[#allocation5 + $0xb0] sm:$0xff]
    %v4259 = vld [vmem:[#allocation5 + $0xb8] sm:$0xff]
    %v4260 = vld [vmem:[#allocation5 + $0xc0] sm:$0xff]
    %v4261 = vld [vmem:[#allocation5 + $0xc8] sm:$0xff]
    %v4262 = vld [vmem:[#allocation5 + $0xd0] sm:$0xff]
    %v4263 = vld [vmem:[#allocation5 + $0xd8] sm:$0xff]
    %v4264 = vld [vmem:[#allocation5 + $0xe0] sm:$0xff]
    %v4265 = vld [vmem:[#allocation5 + $0xe8] sm:$0xff]
    %v4266 = vld [vmem:[#allocation5 + $0xf0] sm:$0xff]
    %v4267 = vld [vmem:[#allocation5 + $0xf8] sm:$0xff]
    %v4268 = vld [vmem:[#allocation5 + $0x100] sm:$0xff]
    %v4269 = vld [vmem:[#allocation5 + $0x108] sm:$0xff]
    %v4270 = vld [vmem:[#allocation5 + $0x110] sm:$0xff]
    %v4271 = vld [vmem:[#allocation5 + $0x118] sm:$0xff]
    %v4272 = vld [vmem:[#allocation5 + $0x120] sm:$0xff]
    %v4273 = vld [vmem:[#allocation5 + $0x128] sm:$0xff]
    %v4274 = vld [vmem:[#allocation5 + $0x130] sm:$0xff]
    %v4275 = vld [vmem:[#allocation5 + $0x138] sm:$0xff]
    %v4276 = vld [vmem:[#allocation5 + $0x140] sm:$0xff]
    %v4277 = vld [vmem:[#allocation5 + $0x148] sm:$0xff]
    %v4278 = vld [vmem:[#allocation5 + $0x150] sm:$0xff]
    %v4279 = vld [vmem:[#allocation5 + $0x158] sm:$0xff]
    %v4280 = vld [vmem:[#allocation5 + $0x160] sm:$0xff]
    %v4281 = vld [vmem:[#allocation5 + $0x168] sm:$0xff]
    %v4282 = vld [vmem:[#allocation5 + $0x170] sm:$0xff]
    %v4283 = vld [vmem:[#allocation5 + $0x178] sm:$0xff]
    %v4284 = vld [vmem:[#allocation5 + $0x180] sm:$0xff]
    %v4285 = vld [vmem:[#allocation5 + $0x188] sm:$0xff]
    %v4286 = vld [vmem:[#allocation5 + $0x190] sm:$0xff]
    %v4287 = vld [vmem:[#allocation5 + $0x198] sm:$0xff]
    %v4288 = vld [vmem:[#allocation5 + $0x1a0] sm:$0xff]
    %v4289 = vld [vmem:[#allocation5 + $0x1a8] sm:$0xff]
    %v4290 = vld [vmem:[#allocation5 + $0x1b0] sm:$0xff]
    %v4291 = vld [vmem:[#allocation5 + $0x1b8] sm:$0xff]
    %v4292 = vld [vmem:[#allocation5 + $0x1c0] sm:$0xff]
    %v4293 = vld [vmem:[#allocation5 + $0x1c8] sm:$0xff]
    %v4294 = vld [vmem:[#allocation5 + $0x1d0] sm:$0xff]
    %v4295 = vld [vmem:[#allocation5 + $0x1d8] sm:$0xff]
    %v4296 = vld [vmem:[#allocation5 + $0x1e0] sm:$0xff]
    %v4297 = vld [vmem:[#allocation5 + $0x1e8] sm:$0xff]
    %v4298 = vld [vmem:[#allocation5 + $0x1f0] sm:$0xff]
    %v4299 = vld [vmem:[#allocation5 + $0x1f8] sm:$0xff]
    %v4364 = vunpack.c.l.b16 %v4172
    %v4365 = vunpack.c.h.b16 %v4172
    %v4366 = vunpack.c.l.b16 %v4173
    %v4367 = vunpack.c.h.b16 %v4173
    %v4368 = vunpack.c.l.b16 %v4174
    %v4369 = vunpack.c.h.b16 %v4174
    %v4370 = vunpack.c.l.b16 %v4175
    %v4371 = vunpack.c.h.b16 %v4175
    %v4372 = vunpack.c.l.b16 %v4176
    %v4373 = vunpack.c.h.b16 %v4176
    %v4374 = vunpack.c.l.b16 %v4177
    %v4375 = vunpack.c.h.b16 %v4177
    %v4376 = vunpack.c.l.b16 %v4178
    %v4377 = vunpack.c.h.b16 %v4178
    %v4378 = vunpack.c.l.b16 %v4179
    %v4379 = vunpack.c.h.b16 %v4179
    %v4380 = vunpack.c.l.b16 %v4180
    %v4381 = vunpack.c.h.b16 %v4180
    %v4382 = vunpack.c.l.b16 %v4181
    %v4383 = vunpack.c.h.b16 %v4181
    %v4384 = vunpack.c.l.b16 %v4182
    %v4385 = vunpack.c.h.b16 %v4182
    %v4386 = vunpack.c.l.b16 %v4183
    %v4387 = vunpack.c.h.b16 %v4183
    %v4388 = vunpack.c.l.b16 %v4184
    %v4389 = vunpack.c.h.b16 %v4184
    %v4390 = vunpack.c.l.b16 %v4185
    %v4391 = vunpack.c.h.b16 %v4185
    %v4392 = vunpack.c.l.b16 %v4186
    %v4393 = vunpack.c.h.b16 %v4186
    %v4394 = vunpack.c.l.b16 %v4187
    %v4395 = vunpack.c.h.b16 %v4187
    %v4396 = vunpack.c.l.b16 %v4188
    %v4397 = vunpack.c.h.b16 %v4188
    %v4398 = vunpack.c.l.b16 %v4189
    %v4399 = vunpack.c.h.b16 %v4189
    %v4400 = vunpack.c.l.b16 %v4190
    %v4401 = vunpack.c.h.b16 %v4190
    %v4402 = vunpack.c.l.b16 %v4191
    %v4403 = vunpack.c.h.b16 %v4191
    %v4404 = vunpack.c.l.b16 %v4192
    %v4405 = vunpack.c.h.b16 %v4192
    %v4406 = vunpack.c.l.b16 %v4193
    %v4407 = vunpack.c.h.b16 %v4193
    %v4408 = vunpack.c.l.b16 %v4194
    %v4409 = vunpack.c.h.b16 %v4194
    %v4410 = vunpack.c.l.b16 %v4195
    %v4411 = vunpack.c.h.b16 %v4195
    %v4412 = vunpack.c.l.b16 %v4196
    %v4413 = vunpack.c.h.b16 %v4196
    %v4414 = vunpack.c.l.b16 %v4197
    %v4415 = vunpack.c.h.b16 %v4197
    %v4416 = vunpack.c.l.b16 %v4198
    %v4417 = vunpack.c.h.b16 %v4198
    %v4418 = vunpack.c.l.b16 %v4199
    %v4419 = vunpack.c.h.b16 %v4199
    %v4420 = vunpack.c.l.b16 %v4200
    %v4421 = vunpack.c.h.b16 %v4200
    %v4422 = vunpack.c.l.b16 %v4201
    %v4423 = vunpack.c.h.b16 %v4201
    %v4424 = vunpack.c.l.b16 %v4202
    %v4425 = vunpack.c.h.b16 %v4202
    %v4426 = vunpack.c.l.b16 %v4203
    %v4427 = vunpack.c.h.b16 %v4203
    %v4428 = vunpack.c.l.b16 %v4204
    %v4429 = vunpack.c.h.b16 %v4204
    %v4430 = vunpack.c.l.b16 %v4205
    %v4431 = vunpack.c.h.b16 %v4205
    %v4432 = vunpack.c.l.b16 %v4206
    %v4433 = vunpack.c.h.b16 %v4206
    %v4434 = vunpack.c.l.b16 %v4207
    %v4435 = vunpack.c.h.b16 %v4207
    %v4436 = vunpack.c.l.b16 %v4208
    %v4437 = vunpack.c.h.b16 %v4208
    %v4438 = vunpack.c.l.b16 %v4209
    %v4439 = vunpack.c.h.b16 %v4209
    %v4440 = vunpack.c.l.b16 %v4210
    %v4441 = vunpack.c.h.b16 %v4210
    %v4442 = vunpack.c.l.b16 %v4211
    %v4443 = vunpack.c.h.b16 %v4211
    %v4444 = vunpack.c.l.b16 %v4212
    %v4445 = vunpack.c.h.b16 %v4212
    %v4446 = vunpack.c.l.b16 %v4213
    %v4447 = vunpack.c.h.b16 %v4213
    %v4448 = vunpack.c.l.b16 %v4214
    %v4449 = vunpack.c.h.b16 %v4214
    %v4450 = vunpack.c.l.b16 %v4215
    %v4451 = vunpack.c.h.b16 %v4215
    %v4452 = vunpack.c.l.b16 %v4216
    %v4453 = vunpack.c.h.b16 %v4216
    %v4454 = vunpack.c.l.b16 %v4217
    %v4455 = vunpack.c.h.b16 %v4217
    %v4456 = vunpack.c.l.b16 %v4218
    %v4457 = vunpack.c.h.b16 %v4218
    %v4458 = vunpack.c.l.b16 %v4219
    %v4459 = vunpack.c.h.b16 %v4219
    %v4460 = vunpack.c.l.b16 %v4220
    %v4461 = vunpack.c.h.b16 %v4220
    %v4462 = vunpack.c.l.b16 %v4221
    %v4463 = vunpack.c.h.b16 %v4221
    %v4464 = vunpack.c.l.b16 %v4222
    %v4465 = vunpack.c.h.b16 %v4222
    %v4466 = vunpack.c.l.b16 %v4223
    %v4467 = vunpack.c.h.b16 %v4223
    %v4468 = vunpack.c.l.b16 %v4224
    %v4469 = vunpack.c.h.b16 %v4224
    %v4470 = vunpack.c.l.b16 %v4225
    %v4471 = vunpack.c.h.b16 %v4225
    %v4472 = vunpack.c.l.b16 %v4226
    %v4473 = vunpack.c.h.b16 %v4226
    %v4474 = vunpack.c.l.b16 %v4227
    %v4475 = vunpack.c.h.b16 %v4227
    %v4476 = vunpack.c.l.b16 %v4228
    %v4477 = vunpack.c.h.b16 %v4228
    %v4478 = vunpack.c.l.b16 %v4229
    %v4479 = vunpack.c.h.b16 %v4229
    %v4480 = vunpack.c.l.b16 %v4230
    %v4481 = vunpack.c.h.b16 %v4230
    %v4482 = vunpack.c.l.b16 %v4231
    %v4483 = vunpack.c.h.b16 %v4231
    %v4484 = vunpack.c.l.b16 %v4232
    %v4485 = vunpack.c.h.b16 %v4232
    %v4486 = vunpack.c.l.b16 %v4233
    %v4487 = vunpack.c.h.b16 %v4233
    %v4488 = vunpack.c.l.b16 %v4234
    %v4489 = vunpack.c.h.b16 %v4234
    %v4490 = vunpack.c.l.b16 %v4235
    %v4491 = vunpack.c.h.b16 %v4235
    %4492 = vset.pattern.permute.xlu0 0
    %4493 = vperm.xlu0 %4492, %v4364
    %v4494 = vpop.permute.xlu0 %4493
    %4495 = vset.pattern.permute.xlu0 0
    %4496 = vperm.xlu0 %4495, %v4365
    %v4497 = vpop.permute.xlu0 %4496
    %4498 = vset.pattern.permute.xlu0 0
    %4499 = vperm.xlu0 %4498, %v4366
    %v4500 = vpop.permute.xlu0 %4499
    %4501 = vset.pattern.permute.xlu0 0
    %4502 = vperm.xlu0 %4501, %v4367
    %v4503 = vpop.permute.xlu0 %4502
    %4504 = vset.pattern.permute.xlu0 0
    %4505 = vperm.xlu0 %4504, %v4368
    %v4506 = vpop.permute.xlu0 %4505
    %4507 = vset.pattern.permute.xlu0 0
    %4508 = vperm.xlu0 %4507, %v4369
    %v4509 = vpop.permute.xlu0 %4508
    %4510 = vset.pattern.permute.xlu0 0
    %4511 = vperm.xlu0 %4510, %v4370
    %v4512 = vpop.permute.xlu0 %4511
    %4513 = vset.pattern.permute.xlu0 0
    %4514 = vperm.xlu0 %4513, %v4371
    %v4515 = vpop.permute.xlu0 %4514
    %4516 = vset.pattern.permute.xlu0 0
    %4517 = vperm.xlu0 %4516, %v4372
    %v4518 = vpop.permute.xlu0 %4517
    %4519 = vset.pattern.permute.xlu0 0
    %4520 = vperm.xlu0 %4519, %v4373
    %v4521 = vpop.permute.xlu0 %4520
    %4522 = vset.pattern.permute.xlu0 0
    %4523 = vperm.xlu0 %4522, %v4374
    %v4524 = vpop.permute.xlu0 %4523
    %4525 = vset.pattern.permute.xlu0 0
    %4526 = vperm.xlu0 %4525, %v4375
    %v4527 = vpop.permute.xlu0 %4526
    %4528 = vset.pattern.permute.xlu0 0
    %4529 = vperm.xlu0 %4528, %v4376
    %v4530 = vpop.permute.xlu0 %4529
    %4531 = vset.pattern.permute.xlu0 0
    %4532 = vperm.xlu0 %4531, %v4377
    %v4533 = vpop.permute.xlu0 %4532
    %4534 = vset.pattern.permute.xlu0 0
    %4535 = vperm.xlu0 %4534, %v4378
    %v4536 = vpop.permute.xlu0 %4535
    %4537 = vset.pattern.permute.xlu0 0
    %4538 = vperm.xlu0 %4537, %v4379
    %v4539 = vpop.permute.xlu0 %4538
    %4540 = vset.pattern.permute.xlu0 0
    %4541 = vperm.xlu0 %4540, %v4380
    %v4542 = vpop.permute.xlu0 %4541
    %4543 = vset.pattern.permute.xlu0 0
    %4544 = vperm.xlu0 %4543, %v4381
    %v4545 = vpop.permute.xlu0 %4544
    %4546 = vset.pattern.permute.xlu0 0
    %4547 = vperm.xlu0 %4546, %v4382
    %v4548 = vpop.permute.xlu0 %4547
    %4549 = vset.pattern.permute.xlu0 0
    %4550 = vperm.xlu0 %4549, %v4383
    %v4551 = vpop.permute.xlu0 %4550
    %4552 = vset.pattern.permute.xlu0 0
    %4553 = vperm.xlu0 %4552, %v4384
    %v4554 = vpop.permute.xlu0 %4553
    %4555 = vset.pattern.permute.xlu0 0
    %4556 = vperm.xlu0 %4555, %v4385
    %v4557 = vpop.permute.xlu0 %4556
    %4558 = vset.pattern.permute.xlu0 0
    %4559 = vperm.xlu0 %4558, %v4386
    %v4560 = vpop.permute.xlu0 %4559
    %4561 = vset.pattern.permute.xlu0 0
    %4562 = vperm.xlu0 %4561, %v4387
    %v4563 = vpop.permute.xlu0 %4562
    %4564 = vset.pattern.permute.xlu0 0
    %4565 = vperm.xlu0 %4564, %v4388
    %v4566 = vpop.permute.xlu0 %4565
    %4567 = vset.pattern.permute.xlu0 0
    %4568 = vperm.xlu0 %4567, %v4389
    %v4569 = vpop.permute.xlu0 %4568
    %4570 = vset.pattern.permute.xlu0 0
    %4571 = vperm.xlu0 %4570, %v4390
    %v4572 = vpop.permute.xlu0 %4571
    %4573 = vset.pattern.permute.xlu0 0
    %4574 = vperm.xlu0 %4573, %v4391
    %v4575 = vpop.permute.xlu0 %4574
    %4576 = vset.pattern.permute.xlu0 0
    %4577 = vperm.xlu0 %4576, %v4392
    %v4578 = vpop.permute.xlu0 %4577
    %4579 = vset.pattern.permute.xlu0 0
    %4580 = vperm.xlu0 %4579, %v4393
    %v4581 = vpop.permute.xlu0 %4580
    %4582 = vset.pattern.permute.xlu0 0
    %4583 = vperm.xlu0 %4582, %v4394
    %v4584 = vpop.permute.xlu0 %4583
    %4585 = vset.pattern.permute.xlu0 0
    %4586 = vperm.xlu0 %4585, %v4395
    %v4587 = vpop.permute.xlu0 %4586
    %4588 = vset.pattern.permute.xlu0 0
    %4589 = vperm.xlu0 %4588, %v4396
    %v4590 = vpop.permute.xlu0 %4589
    %4591 = vset.pattern.permute.xlu0 0
    %4592 = vperm.xlu0 %4591, %v4397
    %v4593 = vpop.permute.xlu0 %4592
    %4594 = vset.pattern.permute.xlu0 0
    %4595 = vperm.xlu0 %4594, %v4398
    %v4596 = vpop.permute.xlu0 %4595
    %4597 = vset.pattern.permute.xlu0 0
    %4598 = vperm.xlu0 %4597, %v4399
    %v4599 = vpop.permute.xlu0 %4598
    %4600 = vset.pattern.permute.xlu0 0
    %4601 = vperm.xlu0 %4600, %v4400
    %v4602 = vpop.permute.xlu0 %4601
    %4603 = vset.pattern.permute.xlu0 0
    %4604 = vperm.xlu0 %4603, %v4401
    %v4605 = vpop.permute.xlu0 %4604
    %4606 = vset.pattern.permute.xlu0 0
    %4607 = vperm.xlu0 %4606, %v4402
    %v4608 = vpop.permute.xlu0 %4607
    %4609 = vset.pattern.permute.xlu0 0
    %4610 = vperm.xlu0 %4609, %v4403
    %v4611 = vpop.permute.xlu0 %4610
    %4612 = vset.pattern.permute.xlu0 0
    %4613 = vperm.xlu0 %4612, %v4404
    %v4614 = vpop.permute.xlu0 %4613
    %4615 = vset.pattern.permute.xlu0 0
    %4616 = vperm.xlu0 %4615, %v4405
    %v4617 = vpop.permute.xlu0 %4616
    %4618 = vset.pattern.permute.xlu0 0
    %4619 = vperm.xlu0 %4618, %v4406
    %v4620 = vpop.permute.xlu0 %4619
    %4621 = vset.pattern.permute.xlu0 0
    %4622 = vperm.xlu0 %4621, %v4407
    %v4623 = vpop.permute.xlu0 %4622
    %4624 = vset.pattern.permute.xlu0 0
    %4625 = vperm.xlu0 %4624, %v4408
    %v4626 = vpop.permute.xlu0 %4625
    %4627 = vset.pattern.permute.xlu0 0
    %4628 = vperm.xlu0 %4627, %v4409
    %v4629 = vpop.permute.xlu0 %4628
    %4630 = vset.pattern.permute.xlu0 0
    %4631 = vperm.xlu0 %4630, %v4410
    %v4632 = vpop.permute.xlu0 %4631
    %4633 = vset.pattern.permute.xlu0 0
    %4634 = vperm.xlu0 %4633, %v4411
    %v4635 = vpop.permute.xlu0 %4634
    %4636 = vset.pattern.permute.xlu0 0
    %4637 = vperm.xlu0 %4636, %v4412
    %v4638 = vpop.permute.xlu0 %4637
    %4639 = vset.pattern.permute.xlu0 0
    %4640 = vperm.xlu0 %4639, %v4413
    %v4641 = vpop.permute.xlu0 %4640
    %4642 = vset.pattern.permute.xlu0 0
    %4643 = vperm.xlu0 %4642, %v4414
    %v4644 = vpop.permute.xlu0 %4643
    %4645 = vset.pattern.permute.xlu0 0
    %4646 = vperm.xlu0 %4645, %v4415
    %v4647 = vpop.permute.xlu0 %4646
    %4648 = vset.pattern.permute.xlu0 0
    %4649 = vperm.xlu0 %4648, %v4416
    %v4650 = vpop.permute.xlu0 %4649
    %4651 = vset.pattern.permute.xlu0 0
    %4652 = vperm.xlu0 %4651, %v4417
    %v4653 = vpop.permute.xlu0 %4652
    %4654 = vset.pattern.permute.xlu0 0
    %4655 = vperm.xlu0 %4654, %v4418
    %v4656 = vpop.permute.xlu0 %4655
    %4657 = vset.pattern.permute.xlu0 0
    %4658 = vperm.xlu0 %4657, %v4419
    %v4659 = vpop.permute.xlu0 %4658
    %4660 = vset.pattern.permute.xlu0 0
    %4661 = vperm.xlu0 %4660, %v4420
    %v4662 = vpop.permute.xlu0 %4661
    %4663 = vset.pattern.permute.xlu0 0
    %4664 = vperm.xlu0 %4663, %v4421
    %v4665 = vpop.permute.xlu0 %4664
    %4666 = vset.pattern.permute.xlu0 0
    %4667 = vperm.xlu0 %4666, %v4422
    %v4668 = vpop.permute.xlu0 %4667
    %4669 = vset.pattern.permute.xlu0 0
    %4670 = vperm.xlu0 %4669, %v4423
    %v4671 = vpop.permute.xlu0 %4670
    %4672 = vset.pattern.permute.xlu0 0
    %4673 = vperm.xlu0 %4672, %v4424
    %v4674 = vpop.permute.xlu0 %4673
    %4675 = vset.pattern.permute.xlu0 0
    %4676 = vperm.xlu0 %4675, %v4425
    %v4677 = vpop.permute.xlu0 %4676
    %4678 = vset.pattern.permute.xlu0 0
    %4679 = vperm.xlu0 %4678, %v4426
    %v4680 = vpop.permute.xlu0 %4679
    %4681 = vset.pattern.permute.xlu0 0
    %4682 = vperm.xlu0 %4681, %v4427
    %v4683 = vpop.permute.xlu0 %4682
    %4684 = vset.pattern.permute.xlu0 0
    %4685 = vperm.xlu0 %4684, %v4428
    %v4686 = vpop.permute.xlu0 %4685
    %4687 = vset.pattern.permute.xlu0 0
    %4688 = vperm.xlu0 %4687, %v4429
    %v4689 = vpop.permute.xlu0 %4688
    %4690 = vset.pattern.permute.xlu0 0
    %4691 = vperm.xlu0 %4690, %v4430
    %v4692 = vpop.permute.xlu0 %4691
    %4693 = vset.pattern.permute.xlu0 0
    %4694 = vperm.xlu0 %4693, %v4431
    %v4695 = vpop.permute.xlu0 %4694
    %4696 = vset.pattern.permute.xlu0 0
    %4697 = vperm.xlu0 %4696, %v4432
    %v4698 = vpop.permute.xlu0 %4697
    %4699 = vset.pattern.permute.xlu0 0
    %4700 = vperm.xlu0 %4699, %v4433
    %v4701 = vpop.permute.xlu0 %4700
    %4702 = vset.pattern.permute.xlu0 0
    %4703 = vperm.xlu0 %4702, %v4434
    %v4704 = vpop.permute.xlu0 %4703
    %4705 = vset.pattern.permute.xlu0 0
    %4706 = vperm.xlu0 %4705, %v4435
    %v4707 = vpop.permute.xlu0 %4706
    %4708 = vset.pattern.permute.xlu0 0
    %4709 = vperm.xlu0 %4708, %v4436
    %v4710 = vpop.permute.xlu0 %4709
    %4711 = vset.pattern.permute.xlu0 0
    %4712 = vperm.xlu0 %4711, %v4437
    %v4713 = vpop.permute.xlu0 %4712
    %4714 = vset.pattern.permute.xlu0 0
    %4715 = vperm.xlu0 %4714, %v4438
    %v4716 = vpop.permute.xlu0 %4715
    %4717 = vset.pattern.permute.xlu0 0
    %4718 = vperm.xlu0 %4717, %v4439
    %v4719 = vpop.permute.xlu0 %4718
    %4720 = vset.pattern.permute.xlu0 0
    %4721 = vperm.xlu0 %4720, %v4440
    %v4722 = vpop.permute.xlu0 %4721
    %4723 = vset.pattern.permute.xlu0 0
    %4724 = vperm.xlu0 %4723, %v4441
    %v4725 = vpop.permute.xlu0 %4724
    %4726 = vset.pattern.permute.xlu0 0
    %4727 = vperm.xlu0 %4726, %v4442
    %v4728 = vpop.permute.xlu0 %4727
    %4729 = vset.pattern.permute.xlu0 0
    %4730 = vperm.xlu0 %4729, %v4443
    %v4731 = vpop.permute.xlu0 %4730
    %4732 = vset.pattern.permute.xlu0 0
    %4733 = vperm.xlu0 %4732, %v4444
    %v4734 = vpop.permute.xlu0 %4733
    %4735 = vset.pattern.permute.xlu0 0
    %4736 = vperm.xlu0 %4735, %v4445
    %v4737 = vpop.permute.xlu0 %4736
    %4738 = vset.pattern.permute.xlu0 0
    %4739 = vperm.xlu0 %4738, %v4446
    %v4740 = vpop.permute.xlu0 %4739
    %4741 = vset.pattern.permute.xlu0 0
    %4742 = vperm.xlu0 %4741, %v4447
    %v4743 = vpop.permute.xlu0 %4742
    %4744 = vset.pattern.permute.xlu0 0
    %4745 = vperm.xlu0 %4744, %v4448
    %v4746 = vpop.permute.xlu0 %4745
    %4747 = vset.pattern.permute.xlu0 0
    %4748 = vperm.xlu0 %4747, %v4449
    %v4749 = vpop.permute.xlu0 %4748
    %4750 = vset.pattern.permute.xlu0 0
    %4751 = vperm.xlu0 %4750, %v4450
    %v4752 = vpop.permute.xlu0 %4751
    %4753 = vset.pattern.permute.xlu0 0
    %4754 = vperm.xlu0 %4753, %v4451
    %v4755 = vpop.permute.xlu0 %4754
    %4756 = vset.pattern.permute.xlu0 0
    %4757 = vperm.xlu0 %4756, %v4452
    %v4758 = vpop.permute.xlu0 %4757
    %4759 = vset.pattern.permute.xlu0 0
    %4760 = vperm.xlu0 %4759, %v4453
    %v4761 = vpop.permute.xlu0 %4760
    %4762 = vset.pattern.permute.xlu0 0
    %4763 = vperm.xlu0 %4762, %v4454
    %v4764 = vpop.permute.xlu0 %4763
    %4765 = vset.pattern.permute.xlu0 0
    %4766 = vperm.xlu0 %4765, %v4455
    %v4767 = vpop.permute.xlu0 %4766
    %4768 = vset.pattern.permute.xlu0 0
    %4769 = vperm.xlu0 %4768, %v4456
    %v4770 = vpop.permute.xlu0 %4769
    %4771 = vset.pattern.permute.xlu0 0
    %4772 = vperm.xlu0 %4771, %v4457
    %v4773 = vpop.permute.xlu0 %4772
    %4774 = vset.pattern.permute.xlu0 0
    %4775 = vperm.xlu0 %4774, %v4458
    %v4776 = vpop.permute.xlu0 %4775
    %4777 = vset.pattern.permute.xlu0 0
    %4778 = vperm.xlu0 %4777, %v4459
    %v4779 = vpop.permute.xlu0 %4778
    %4780 = vset.pattern.permute.xlu0 0
    %4781 = vperm.xlu0 %4780, %v4460
    %v4782 = vpop.permute.xlu0 %4781
    %4783 = vset.pattern.permute.xlu0 0
    %4784 = vperm.xlu0 %4783, %v4461
    %v4785 = vpop.permute.xlu0 %4784
    %4786 = vset.pattern.permute.xlu0 0
    %4787 = vperm.xlu0 %4786, %v4462
    %v4788 = vpop.permute.xlu0 %4787
    %4789 = vset.pattern.permute.xlu0 0
    %4790 = vperm.xlu0 %4789, %v4463
    %v4791 = vpop.permute.xlu0 %4790
    %4792 = vset.pattern.permute.xlu0 0
    %4793 = vperm.xlu0 %4792, %v4464
    %v4794 = vpop.permute.xlu0 %4793
    %4795 = vset.pattern.permute.xlu0 0
    %4796 = vperm.xlu0 %4795, %v4465
    %v4797 = vpop.permute.xlu0 %4796
    %4798 = vset.pattern.permute.xlu0 0
    %4799 = vperm.xlu0 %4798, %v4466
    %v4800 = vpop.permute.xlu0 %4799
    %4801 = vset.pattern.permute.xlu0 0
    %4802 = vperm.xlu0 %4801, %v4467
    %v4803 = vpop.permute.xlu0 %4802
    %4804 = vset.pattern.permute.xlu0 0
    %4805 = vperm.xlu0 %4804, %v4468
    %v4806 = vpop.permute.xlu0 %4805
    %4807 = vset.pattern.permute.xlu0 0
    %4808 = vperm.xlu0 %4807, %v4469
    %v4809 = vpop.permute.xlu0 %4808
    %4810 = vset.pattern.permute.xlu0 0
    %4811 = vperm.xlu0 %4810, %v4470
    %v4812 = vpop.permute.xlu0 %4811
    %4813 = vset.pattern.permute.xlu0 0
    %4814 = vperm.xlu0 %4813, %v4471
    %v4815 = vpop.permute.xlu0 %4814
    %4816 = vset.pattern.permute.xlu0 0
    %4817 = vperm.xlu0 %4816, %v4472
    %v4818 = vpop.permute.xlu0 %4817
    %4819 = vset.pattern.permute.xlu0 0
    %4820 = vperm.xlu0 %4819, %v4473
    %v4821 = vpop.permute.xlu0 %4820
    %4822 = vset.pattern.permute.xlu0 0
    %4823 = vperm.xlu0 %4822, %v4474
    %v4824 = vpop.permute.xlu0 %4823
    %4825 = vset.pattern.permute.xlu0 0
    %4826 = vperm.xlu0 %4825, %v4475
    %v4827 = vpop.permute.xlu0 %4826
    %4828 = vset.pattern.permute.xlu0 0
    %4829 = vperm.xlu0 %4828, %v4476
    %v4830 = vpop.permute.xlu0 %4829
    %4831 = vset.pattern.permute.xlu0 0
    %4832 = vperm.xlu0 %4831, %v4477
    %v4833 = vpop.permute.xlu0 %4832
    %4834 = vset.pattern.permute.xlu0 0
    %4835 = vperm.xlu0 %4834, %v4478
    %v4836 = vpop.permute.xlu0 %4835
    %4837 = vset.pattern.permute.xlu0 0
    %4838 = vperm.xlu0 %4837, %v4479
    %v4839 = vpop.permute.xlu0 %4838
    %4840 = vset.pattern.permute.xlu0 0
    %4841 = vperm.xlu0 %4840, %v4480
    %v4842 = vpop.permute.xlu0 %4841
    %4843 = vset.pattern.permute.xlu0 0
    %4844 = vperm.xlu0 %4843, %v4481
    %v4845 = vpop.permute.xlu0 %4844
    %4846 = vset.pattern.permute.xlu0 0
    %4847 = vperm.xlu0 %4846, %v4482
    %v4848 = vpop.permute.xlu0 %4847
    %4849 = vset.pattern.permute.xlu0 0
    %4850 = vperm.xlu0 %4849, %v4483
    %v4851 = vpop.permute.xlu0 %4850
    %4852 = vset.pattern.permute.xlu0 0
    %4853 = vperm.xlu0 %4852, %v4484
    %v4854 = vpop.permute.xlu0 %4853
    %4855 = vset.pattern.permute.xlu0 0
    %4856 = vperm.xlu0 %4855, %v4485
    %v4857 = vpop.permute.xlu0 %4856
    %4858 = vset.pattern.permute.xlu0 0
    %4859 = vperm.xlu0 %4858, %v4486
    %v4860 = vpop.permute.xlu0 %4859
    %4861 = vset.pattern.permute.xlu0 0
    %4862 = vperm.xlu0 %4861, %v4487
    %v4863 = vpop.permute.xlu0 %4862
    %4864 = vset.pattern.permute.xlu0 0
    %4865 = vperm.xlu0 %4864, %v4488
    %v4866 = vpop.permute.xlu0 %4865
    %4867 = vset.pattern.permute.xlu0 0
    %4868 = vperm.xlu0 %4867, %v4489
    %v4869 = vpop.permute.xlu0 %4868
    %4870 = vset.pattern.permute.xlu0 0
    %4871 = vperm.xlu0 %4870, %v4490
    %v4872 = vpop.permute.xlu0 %4871
    %4873 = vset.pattern.permute.xlu0 0
    %4874 = vperm.xlu0 %4873, %v4491
    %v4875 = vpop.permute.xlu0 %4874
    %v4876 = vlaneseq
    %v4877 = vand.u32 %v4876, 127
    %v4878 = vlaneseq
    %v4879 = vshrl.u32 %v4878, 7
    %v4880 = vsub.s32 %v4877, %v4879
    %v4881 = vrot.slane %v4494, %v4880
    %v4882 = vadd.s32 %v4877, 4294967288
    %v4883 = vlaneseq
    %v4884 = vshrl.u32 %v4883, 7
    %v4885 = vsub.s32 %v4882, %v4884
    %v4886 = vrot.slane %v4497, %v4885
    %vm4887 = vcmask 130112
    %v4888 = vsel %vm4887, %v4886, %v4881
    %v4889 = vadd.s32 %v4877, 4294967280
    %v4890 = vlaneseq
    %v4891 = vshrl.u32 %v4890, 7
    %v4892 = vsub.s32 %v4889, %v4891
    %v4893 = vrot.slane %v4500, %v4892
    %vm4894 = vcmask 195712
    %v4895 = vsel %vm4894, %v4893, %v4888
    %v4896 = vadd.s32 %v4877, 4294967272
    %v4897 = vlaneseq
    %v4898 = vshrl.u32 %v4897, 7
    %v4899 = vsub.s32 %v4896, %v4898
    %v4900 = vrot.slane %v4503, %v4899
    %vm4901 = vcmask 261312
    %v4902 = vsel %vm4901, %v4900, %v4895
    %v4903 = vadd.s32 %v4877, 4294967264
    %v4904 = vlaneseq
    %v4905 = vshrl.u32 %v4904, 7
    %v4906 = vsub.s32 %v4903, %v4905
    %v4907 = vrot.slane %v4506, %v4906
    %vm4908 = vcmask 326912
    %v4909 = vsel %vm4908, %v4907, %v4902
    %v4910 = vadd.s32 %v4877, 4294967256
    %v4911 = vlaneseq
    %v4912 = vshrl.u32 %v4911, 7
    %v4913 = vsub.s32 %v4910, %v4912
    %v4914 = vrot.slane %v4509, %v4913
    %vm4915 = vcmask 392512
    %v4916 = vsel %vm4915, %v4914, %v4909
    %v4917 = vadd.s32 %v4877, 4294967248
    %v4918 = vlaneseq
    %v4919 = vshrl.u32 %v4918, 7
    %v4920 = vsub.s32 %v4917, %v4919
    %v4921 = vrot.slane %v4512, %v4920
    %vm4922 = vcmask 458112
    %v4923 = vsel %vm4922, %v4921, %v4916
    %v4924 = vadd.s32 %v4877, 4294967240
    %v4925 = vlaneseq
    %v4926 = vshrl.u32 %v4925, 7
    %v4927 = vsub.s32 %v4924, %v4926
    %v4928 = vrot.slane %v4515, %v4927
    %vm4929 = vcmask 523712
    %v4930 = vsel %vm4929, %v4928, %v4923
    %v4931 = vadd.s32 %v4877, 4294967232
    %v4932 = vlaneseq
    %v4933 = vshrl.u32 %v4932, 7
    %v4934 = vsub.s32 %v4931, %v4933
    %v4935 = vrot.slane %v4518, %v4934
    %vm4936 = vcmask 589312
    %v4937 = vsel %vm4936, %v4935, %v4930
    %v4938 = vadd.s32 %v4877, 4294967224
    %v4939 = vlaneseq
    %v4940 = vshrl.u32 %v4939, 7
    %v4941 = vsub.s32 %v4938, %v4940
    %v4942 = vrot.slane %v4521, %v4941
    %vm4943 = vcmask 654912
    %v4944 = vsel %vm4943, %v4942, %v4937
    %v4945 = vadd.s32 %v4877, 4294967216
    %v4946 = vlaneseq
    %v4947 = vshrl.u32 %v4946, 7
    %v4948 = vsub.s32 %v4945, %v4947
    %v4949 = vrot.slane %v4524, %v4948
    %vm4950 = vcmask 720512
    %v4951 = vsel %vm4950, %v4949, %v4944
    %v4952 = vadd.s32 %v4877, 4294967208
    %v4953 = vlaneseq
    %v4954 = vshrl.u32 %v4953, 7
    %v4955 = vsub.s32 %v4952, %v4954
    %v4956 = vrot.slane %v4527, %v4955
    %vm4957 = vcmask 786112
    %v4958 = vsel %vm4957, %v4956, %v4951
    %v4959 = vadd.s32 %v4877, 4294967200
    %v4960 = vlaneseq
    %v4961 = vshrl.u32 %v4960, 7
    %v4962 = vsub.s32 %v4959, %v4961
    %v4963 = vrot.slane %v4530, %v4962
    %vm4964 = vcmask 851712
    %v4965 = vsel %vm4964, %v4963, %v4958
    %v4966 = vadd.s32 %v4877, 4294967192
    %v4967 = vlaneseq
    %v4968 = vshrl.u32 %v4967, 7
    %v4969 = vsub.s32 %v4966, %v4968
    %v4970 = vrot.slane %v4533, %v4969
    %vm4971 = vcmask 917312
    %v4972 = vsel %vm4971, %v4970, %v4965
    %v4973 = vadd.s32 %v4877, 4294967184
    %v4974 = vlaneseq
    %v4975 = vshrl.u32 %v4974, 7
    %v4976 = vsub.s32 %v4973, %v4975
    %v4977 = vrot.slane %v4536, %v4976
    %vm4978 = vcmask 982912
    %v4979 = vsel %vm4978, %v4977, %v4972
    %v4980 = vadd.s32 %v4877, 4294967176
    %v4981 = vlaneseq
    %v4982 = vshrl.u32 %v4981, 7
    %v4983 = vsub.s32 %v4980, %v4982
    %v4984 = vrot.slane %v4539, %v4983
    %vm4985 = vcmask 1048512
    %v4986 = vsel %vm4985, %v4984, %v4979
    %v4987 = vlaneseq
    %v4988 = vshrl.u32 %v4987, 7
    %v4989 = vsub.s32 %v4877, %v4988
    %v4990 = vrot.slane %v4542, %v4989
    %v4991 = vlaneseq
    %v4992 = vshrl.u32 %v4991, 7
    %v4993 = vsub.s32 %v4882, %v4992
    %v4994 = vrot.slane %v4545, %v4993
    %v4995 = vsel %vm4887, %v4994, %v4990
    %v4996 = vlaneseq
    %v4997 = vshrl.u32 %v4996, 7
    %v4998 = vsub.s32 %v4889, %v4997
    %v4999 = vrot.slane %v4548, %v4998
    %v5000 = vsel %vm4894, %v4999, %v4995
    %v5001 = vlaneseq
    %v5002 = vshrl.u32 %v5001, 7
    %v5003 = vsub.s32 %v4896, %v5002
    %v5004 = vrot.slane %v4551, %v5003
    %v5005 = vsel %vm4901, %v5004, %v5000
    %v5006 = vlaneseq
    %v5007 = vshrl.u32 %v5006, 7
    %v5008 = vsub.s32 %v4903, %v5007
    %v5009 = vrot.slane %v4554, %v5008
    %v5010 = vsel %vm4908, %v5009, %v5005
    %v5011 = vlaneseq
    %v5012 = vshrl.u32 %v5011, 7
    %v5013 = vsub.s32 %v4910, %v5012
    %v5014 = vrot.slane %v4557, %v5013
    %v5015 = vsel %vm4915, %v5014, %v5010
    %v5016 = vlaneseq
    %v5017 = vshrl.u32 %v5016, 7
    %v5018 = vsub.s32 %v4917, %v5017
    %v5019 = vrot.slane %v4560, %v5018
    %v5020 = vsel %vm4922, %v5019, %v5015
    %v5021 = vlaneseq
    %v5022 = vshrl.u32 %v5021, 7
    %v5023 = vsub.s32 %v4924, %v5022
    %v5024 = vrot.slane %v4563, %v5023
    %v5025 = vsel %vm4929, %v5024, %v5020
    %v5026 = vlaneseq
    %v5027 = vshrl.u32 %v5026, 7
    %v5028 = vsub.s32 %v4931, %v5027
    %v5029 = vrot.slane %v4566, %v5028
    %v5030 = vsel %vm4936, %v5029, %v5025
    %v5031 = vlaneseq
    %v5032 = vshrl.u32 %v5031, 7
    %v5033 = vsub.s32 %v4938, %v5032
    %v5034 = vrot.slane %v4569, %v5033
    %v5035 = vsel %vm4943, %v5034, %v5030
    %v5036 = vlaneseq
    %v5037 = vshrl.u32 %v5036, 7
    %v5038 = vsub.s32 %v4945, %v5037
    %v5039 = vrot.slane %v4572, %v5038
    %v5040 = vsel %vm4950, %v5039, %v5035
    %v5041 = vlaneseq
    %v5042 = vshrl.u32 %v5041, 7
    %v5043 = vsub.s32 %v4952, %v5042
    %v5044 = vrot.slane %v4575, %v5043
    %v5045 = vsel %vm4957, %v5044, %v5040
    %v5046 = vlaneseq
    %v5047 = vshrl.u32 %v5046, 7
    %v5048 = vsub.s32 %v4959, %v5047
    %v5049 = vrot.slane %v4578, %v5048
    %v5050 = vsel %vm4964, %v5049, %v5045
    %v5051 = vlaneseq
    %v5052 = vshrl.u32 %v5051, 7
    %v5053 = vsub.s32 %v4966, %v5052
    %v5054 = vrot.slane %v4581, %v5053
    %v5055 = vsel %vm4971, %v5054, %v5050
    %v5056 = vlaneseq
    %v5057 = vshrl.u32 %v5056, 7
    %v5058 = vsub.s32 %v4973, %v5057
    %v5059 = vrot.slane %v4584, %v5058
    %v5060 = vsel %vm4978, %v5059, %v5055
    %v5061 = vlaneseq
    %v5062 = vshrl.u32 %v5061, 7
    %v5063 = vsub.s32 %v4980, %v5062
    %v5064 = vrot.slane %v4587, %v5063
    %v5065 = vsel %vm4985, %v5064, %v5060
    %v5066 = vlaneseq
    %v5067 = vshrl.u32 %v5066, 7
    %v5068 = vsub.s32 %v4877, %v5067
    %v5069 = vrot.slane %v4590, %v5068
    %v5070 = vlaneseq
    %v5071 = vshrl.u32 %v5070, 7
    %v5072 = vsub.s32 %v4882, %v5071
    %v5073 = vrot.slane %v4593, %v5072
    %v5074 = vsel %vm4887, %v5073, %v5069
    %v5075 = vlaneseq
    %v5076 = vshrl.u32 %v5075, 7
    %v5077 = vsub.s32 %v4889, %v5076
    %v5078 = vrot.slane %v4596, %v5077
    %v5079 = vsel %vm4894, %v5078, %v5074
    %v5080 = vlaneseq
    %v5081 = vshrl.u32 %v5080, 7
    %v5082 = vsub.s32 %v4896, %v5081
    %v5083 = vrot.slane %v4599, %v5082
    %v5084 = vsel %vm4901, %v5083, %v5079
    %v5085 = vlaneseq
    %v5086 = vshrl.u32 %v5085, 7
    %v5087 = vsub.s32 %v4903, %v5086
    %v5088 = vrot.slane %v4602, %v5087
    %v5089 = vsel %vm4908, %v5088, %v5084
    %v5090 = vlaneseq
    %v5091 = vshrl.u32 %v5090, 7
    %v5092 = vsub.s32 %v4910, %v5091
    %v5093 = vrot.slane %v4605, %v5092
    %v5094 = vsel %vm4915, %v5093, %v5089
    %v5095 = vlaneseq
    %v5096 = vshrl.u32 %v5095, 7
    %v5097 = vsub.s32 %v4917, %v5096
    %v5098 = vrot.slane %v4608, %v5097
    %v5099 = vsel %vm4922, %v5098, %v5094
    %v5100 = vlaneseq
    %v5101 = vshrl.u32 %v5100, 7
    %v5102 = vsub.s32 %v4924, %v5101
    %v5103 = vrot.slane %v4611, %v5102
    %v5104 = vsel %vm4929, %v5103, %v5099
    %v5105 = vlaneseq
    %v5106 = vshrl.u32 %v5105, 7
    %v5107 = vsub.s32 %v4931, %v5106
    %v5108 = vrot.slane %v4614, %v5107
    %v5109 = vsel %vm4936, %v5108, %v5104
    %v5110 = vlaneseq
    %v5111 = vshrl.u32 %v5110, 7
    %v5112 = vsub.s32 %v4938, %v5111
    %v5113 = vrot.slane %v4617, %v5112
    %v5114 = vsel %vm4943, %v5113, %v5109
    %v5115 = vlaneseq
    %v5116 = vshrl.u32 %v5115, 7
    %v5117 = vsub.s32 %v4945, %v5116
    %v5118 = vrot.slane %v4620, %v5117
    %v5119 = vsel %vm4950, %v5118, %v5114
    %v5120 = vlaneseq
    %v5121 = vshrl.u32 %v5120, 7
    %v5122 = vsub.s32 %v4952, %v5121
    %v5123 = vrot.slane %v4623, %v5122
    %v5124 = vsel %vm4957, %v5123, %v5119
    %v5125 = vlaneseq
    %v5126 = vshrl.u32 %v5125, 7
    %v5127 = vsub.s32 %v4959, %v5126
    %v5128 = vrot.slane %v4626, %v5127
    %v5129 = vsel %vm4964, %v5128, %v5124
    %v5130 = vlaneseq
    %v5131 = vshrl.u32 %v5130, 7
    %v5132 = vsub.s32 %v4966, %v5131
    %v5133 = vrot.slane %v4629, %v5132
    %v5134 = vsel %vm4971, %v5133, %v5129
    %v5135 = vlaneseq
    %v5136 = vshrl.u32 %v5135, 7
    %v5137 = vsub.s32 %v4973, %v5136
    %v5138 = vrot.slane %v4632, %v5137
    %v5139 = vsel %vm4978, %v5138, %v5134
    %v5140 = vlaneseq
    %v5141 = vshrl.u32 %v5140, 7
    %v5142 = vsub.s32 %v4980, %v5141
    %v5143 = vrot.slane %v4635, %v5142
    %v5144 = vsel %vm4985, %v5143, %v5139
    %v5145 = vlaneseq
    %v5146 = vshrl.u32 %v5145, 7
    %v5147 = vsub.s32 %v4877, %v5146
    %v5148 = vrot.slane %v4638, %v5147
    %v5149 = vlaneseq
    %v5150 = vshrl.u32 %v5149, 7
    %v5151 = vsub.s32 %v4882, %v5150
    %v5152 = vrot.slane %v4641, %v5151
    %v5153 = vsel %vm4887, %v5152, %v5148
    %v5154 = vlaneseq
    %v5155 = vshrl.u32 %v5154, 7
    %v5156 = vsub.s32 %v4889, %v5155
    %v5157 = vrot.slane %v4644, %v5156
    %v5158 = vsel %vm4894, %v5157, %v5153
    %v5159 = vlaneseq
    %v5160 = vshrl.u32 %v5159, 7
    %v5161 = vsub.s32 %v4896, %v5160
    %v5162 = vrot.slane %v4647, %v5161
    %v5163 = vsel %vm4901, %v5162, %v5158
    %v5164 = vlaneseq
    %v5165 = vshrl.u32 %v5164, 7
    %v5166 = vsub.s32 %v4903, %v5165
    %v5167 = vrot.slane %v4650, %v5166
    %v5168 = vsel %vm4908, %v5167, %v5163
    %v5169 = vlaneseq
    %v5170 = vshrl.u32 %v5169, 7
    %v5171 = vsub.s32 %v4910, %v5170
    %v5172 = vrot.slane %v4653, %v5171
    %v5173 = vsel %vm4915, %v5172, %v5168
    %v5174 = vlaneseq
    %v5175 = vshrl.u32 %v5174, 7
    %v5176 = vsub.s32 %v4917, %v5175
    %v5177 = vrot.slane %v4656, %v5176
    %v5178 = vsel %vm4922, %v5177, %v5173
    %v5179 = vlaneseq
    %v5180 = vshrl.u32 %v5179, 7
    %v5181 = vsub.s32 %v4924, %v5180
    %v5182 = vrot.slane %v4659, %v5181
    %v5183 = vsel %vm4929, %v5182, %v5178
    %v5184 = vlaneseq
    %v5185 = vshrl.u32 %v5184, 7
    %v5186 = vsub.s32 %v4931, %v5185
    %v5187 = vrot.slane %v4662, %v5186
    %v5188 = vsel %vm4936, %v5187, %v5183
    %v5189 = vlaneseq
    %v5190 = vshrl.u32 %v5189, 7
    %v5191 = vsub.s32 %v4938, %v5190
    %v5192 = vrot.slane %v4665, %v5191
    %v5193 = vsel %vm4943, %v5192, %v5188
    %v5194 = vlaneseq
    %v5195 = vshrl.u32 %v5194, 7
    %v5196 = vsub.s32 %v4945, %v5195
    %v5197 = vrot.slane %v4668, %v5196
    %v5198 = vsel %vm4950, %v5197, %v5193
    %v5199 = vlaneseq
    %v5200 = vshrl.u32 %v5199, 7
    %v5201 = vsub.s32 %v4952, %v5200
    %v5202 = vrot.slane %v4671, %v5201
    %v5203 = vsel %vm4957, %v5202, %v5198
    %v5204 = vlaneseq
    %v5205 = vshrl.u32 %v5204, 7
    %v5206 = vsub.s32 %v4959, %v5205
    %v5207 = vrot.slane %v4674, %v5206
    %v5208 = vsel %vm4964, %v5207, %v5203
    %v5209 = vlaneseq
    %v5210 = vshrl.u32 %v5209, 7
    %v5211 = vsub.s32 %v4966, %v5210
    %v5212 = vrot.slane %v4677, %v5211
    %v5213 = vsel %vm4971, %v5212, %v5208
    %v5214 = vlaneseq
    %v5215 = vshrl.u32 %v5214, 7
    %v5216 = vsub.s32 %v4973, %v5215
    %v5217 = vrot.slane %v4680, %v5216
    %v5218 = vsel %vm4978, %v5217, %v5213
    %v5219 = vlaneseq
    %v5220 = vshrl.u32 %v5219, 7
    %v5221 = vsub.s32 %v4980, %v5220
    %v5222 = vrot.slane %v4683, %v5221
    %v5223 = vsel %vm4985, %v5222, %v5218
    %v5224 = vlaneseq
    %v5225 = vshrl.u32 %v5224, 7
    %v5226 = vsub.s32 %v4877, %v5225
    %v5227 = vrot.slane %v4686, %v5226
    %v5228 = vlaneseq
    %v5229 = vshrl.u32 %v5228, 7
    %v5230 = vsub.s32 %v4882, %v5229
    %v5231 = vrot.slane %v4689, %v5230
    %v5232 = vsel %vm4887, %v5231, %v5227
    %v5233 = vlaneseq
    %v5234 = vshrl.u32 %v5233, 7
    %v5235 = vsub.s32 %v4889, %v5234
    %v5236 = vrot.slane %v4692, %v5235
    %v5237 = vsel %vm4894, %v5236, %v5232
    %v5238 = vlaneseq
    %v5239 = vshrl.u32 %v5238, 7
    %v5240 = vsub.s32 %v4896, %v5239
    %v5241 = vrot.slane %v4695, %v5240
    %v5242 = vsel %vm4901, %v5241, %v5237
    %v5243 = vlaneseq
    %v5244 = vshrl.u32 %v5243, 7
    %v5245 = vsub.s32 %v4903, %v5244
    %v5246 = vrot.slane %v4698, %v5245
    %v5247 = vsel %vm4908, %v5246, %v5242
    %v5248 = vlaneseq
    %v5249 = vshrl.u32 %v5248, 7
    %v5250 = vsub.s32 %v4910, %v5249
    %v5251 = vrot.slane %v4701, %v5250
    %v5252 = vsel %vm4915, %v5251, %v5247
    %v5253 = vlaneseq
    %v5254 = vshrl.u32 %v5253, 7
    %v5255 = vsub.s32 %v4917, %v5254
    %v5256 = vrot.slane %v4704, %v5255
    %v5257 = vsel %vm4922, %v5256, %v5252
    %v5258 = vlaneseq
    %v5259 = vshrl.u32 %v5258, 7
    %v5260 = vsub.s32 %v4924, %v5259
    %v5261 = vrot.slane %v4707, %v5260
    %v5262 = vsel %vm4929, %v5261, %v5257
    %v5263 = vlaneseq
    %v5264 = vshrl.u32 %v5263, 7
    %v5265 = vsub.s32 %v4931, %v5264
    %v5266 = vrot.slane %v4710, %v5265
    %v5267 = vsel %vm4936, %v5266, %v5262
    %v5268 = vlaneseq
    %v5269 = vshrl.u32 %v5268, 7
    %v5270 = vsub.s32 %v4938, %v5269
    %v5271 = vrot.slane %v4713, %v5270
    %v5272 = vsel %vm4943, %v5271, %v5267
    %v5273 = vlaneseq
    %v5274 = vshrl.u32 %v5273, 7
    %v5275 = vsub.s32 %v4945, %v5274
    %v5276 = vrot.slane %v4716, %v5275
    %v5277 = vsel %vm4950, %v5276, %v5272
    %v5278 = vlaneseq
    %v5279 = vshrl.u32 %v5278, 7
    %v5280 = vsub.s32 %v4952, %v5279
    %v5281 = vrot.slane %v4719, %v5280
    %v5282 = vsel %vm4957, %v5281, %v5277
    %v5283 = vlaneseq
    %v5284 = vshrl.u32 %v5283, 7
    %v5285 = vsub.s32 %v4959, %v5284
    %v5286 = vrot.slane %v4722, %v5285
    %v5287 = vsel %vm4964, %v5286, %v5282
    %v5288 = vlaneseq
    %v5289 = vshrl.u32 %v5288, 7
    %v5290 = vsub.s32 %v4966, %v5289
    %v5291 = vrot.slane %v4725, %v5290
    %v5292 = vsel %vm4971, %v5291, %v5287
    %v5293 = vlaneseq
    %v5294 = vshrl.u32 %v5293, 7
    %v5295 = vsub.s32 %v4973, %v5294
    %v5296 = vrot.slane %v4728, %v5295
    %v5297 = vsel %vm4978, %v5296, %v5292
    %v5298 = vlaneseq
    %v5299 = vshrl.u32 %v5298, 7
    %v5300 = vsub.s32 %v4980, %v5299
    %v5301 = vrot.slane %v4731, %v5300
    %v5302 = vsel %vm4985, %v5301, %v5297
    %v5303 = vlaneseq
    %v5304 = vshrl.u32 %v5303, 7
    %v5305 = vsub.s32 %v4877, %v5304
    %v5306 = vrot.slane %v4734, %v5305
    %v5307 = vlaneseq
    %v5308 = vshrl.u32 %v5307, 7
    %v5309 = vsub.s32 %v4882, %v5308
    %v5310 = vrot.slane %v4737, %v5309
    %v5311 = vsel %vm4887, %v5310, %v5306
    %v5312 = vlaneseq
    %v5313 = vshrl.u32 %v5312, 7
    %v5314 = vsub.s32 %v4889, %v5313
    %v5315 = vrot.slane %v4740, %v5314
    %v5316 = vsel %vm4894, %v5315, %v5311
    %v5317 = vlaneseq
    %v5318 = vshrl.u32 %v5317, 7
    %v5319 = vsub.s32 %v4896, %v5318
    %v5320 = vrot.slane %v4743, %v5319
    %v5321 = vsel %vm4901, %v5320, %v5316
    %v5322 = vlaneseq
    %v5323 = vshrl.u32 %v5322, 7
    %v5324 = vsub.s32 %v4903, %v5323
    %v5325 = vrot.slane %v4746, %v5324
    %v5326 = vsel %vm4908, %v5325, %v5321
    %v5327 = vlaneseq
    %v5328 = vshrl.u32 %v5327, 7
    %v5329 = vsub.s32 %v4910, %v5328
    %v5330 = vrot.slane %v4749, %v5329
    %v5331 = vsel %vm4915, %v5330, %v5326
    %v5332 = vlaneseq
    %v5333 = vshrl.u32 %v5332, 7
    %v5334 = vsub.s32 %v4917, %v5333
    %v5335 = vrot.slane %v4752, %v5334
    %v5336 = vsel %vm4922, %v5335, %v5331
    %v5337 = vlaneseq
    %v5338 = vshrl.u32 %v5337, 7
    %v5339 = vsub.s32 %v4924, %v5338
    %v5340 = vrot.slane %v4755, %v5339
    %v5341 = vsel %vm4929, %v5340, %v5336
    %v5342 = vlaneseq
    %v5343 = vshrl.u32 %v5342, 7
    %v5344 = vsub.s32 %v4931, %v5343
    %v5345 = vrot.slane %v4758, %v5344
    %v5346 = vsel %vm4936, %v5345, %v5341
    %v5347 = vlaneseq
    %v5348 = vshrl.u32 %v5347, 7
    %v5349 = vsub.s32 %v4938, %v5348
    %v5350 = vrot.slane %v4761, %v5349
    %v5351 = vsel %vm4943, %v5350, %v5346
    %v5352 = vlaneseq
    %v5353 = vshrl.u32 %v5352, 7
    %v5354 = vsub.s32 %v4945, %v5353
    %v5355 = vrot.slane %v4764, %v5354
    %v5356 = vsel %vm4950, %v5355, %v5351
    %v5357 = vlaneseq
    %v5358 = vshrl.u32 %v5357, 7
    %v5359 = vsub.s32 %v4952, %v5358
    %v5360 = vrot.slane %v4767, %v5359
    %v5361 = vsel %vm4957, %v5360, %v5356
    %v5362 = vlaneseq
    %v5363 = vshrl.u32 %v5362, 7
    %v5364 = vsub.s32 %v4959, %v5363
    %v5365 = vrot.slane %v4770, %v5364
    %v5366 = vsel %vm4964, %v5365, %v5361
    %v5367 = vlaneseq
    %v5368 = vshrl.u32 %v5367, 7
    %v5369 = vsub.s32 %v4966, %v5368
    %v5370 = vrot.slane %v4773, %v5369
    %v5371 = vsel %vm4971, %v5370, %v5366
    %v5372 = vlaneseq
    %v5373 = vshrl.u32 %v5372, 7
    %v5374 = vsub.s32 %v4973, %v5373
    %v5375 = vrot.slane %v4776, %v5374
    %v5376 = vsel %vm4978, %v5375, %v5371
    %v5377 = vlaneseq
    %v5378 = vshrl.u32 %v5377, 7
    %v5379 = vsub.s32 %v4980, %v5378
    %v5380 = vrot.slane %v4779, %v5379
    %v5381 = vsel %vm4985, %v5380, %v5376
    %v5382 = vlaneseq
    %v5383 = vshrl.u32 %v5382, 7
    %v5384 = vsub.s32 %v4877, %v5383
    %v5385 = vrot.slane %v4782, %v5384
    %v5386 = vlaneseq
    %v5387 = vshrl.u32 %v5386, 7
    %v5388 = vsub.s32 %v4882, %v5387
    %v5389 = vrot.slane %v4785, %v5388
    %v5390 = vsel %vm4887, %v5389, %v5385
    %v5391 = vlaneseq
    %v5392 = vshrl.u32 %v5391, 7
    %v5393 = vsub.s32 %v4889, %v5392
    %v5394 = vrot.slane %v4788, %v5393
    %v5395 = vsel %vm4894, %v5394, %v5390
    %v5396 = vlaneseq
    %v5397 = vshrl.u32 %v5396, 7
    %v5398 = vsub.s32 %v4896, %v5397
    %v5399 = vrot.slane %v4791, %v5398
    %v5400 = vsel %vm4901, %v5399, %v5395
    %v5401 = vlaneseq
    %v5402 = vshrl.u32 %v5401, 7
    %v5403 = vsub.s32 %v4903, %v5402
    %v5404 = vrot.slane %v4794, %v5403
    %v5405 = vsel %vm4908, %v5404, %v5400
    %v5406 = vlaneseq
    %v5407 = vshrl.u32 %v5406, 7
    %v5408 = vsub.s32 %v4910, %v5407
    %v5409 = vrot.slane %v4797, %v5408
    %v5410 = vsel %vm4915, %v5409, %v5405
    %v5411 = vlaneseq
    %v5412 = vshrl.u32 %v5411, 7
    %v5413 = vsub.s32 %v4917, %v5412
    %v5414 = vrot.slane %v4800, %v5413
    %v5415 = vsel %vm4922, %v5414, %v5410
    %v5416 = vlaneseq
    %v5417 = vshrl.u32 %v5416, 7
    %v5418 = vsub.s32 %v4924, %v5417
    %v5419 = vrot.slane %v4803, %v5418
    %v5420 = vsel %vm4929, %v5419, %v5415
    %v5421 = vlaneseq
    %v5422 = vshrl.u32 %v5421, 7
    %v5423 = vsub.s32 %v4931, %v5422
    %v5424 = vrot.slane %v4806, %v5423
    %v5425 = vsel %vm4936, %v5424, %v5420
    %v5426 = vlaneseq
    %v5427 = vshrl.u32 %v5426, 7
    %v5428 = vsub.s32 %v4938, %v5427
    %v5429 = vrot.slane %v4809, %v5428
    %v5430 = vsel %vm4943, %v5429, %v5425
    %v5431 = vlaneseq
    %v5432 = vshrl.u32 %v5431, 7
    %v5433 = vsub.s32 %v4945, %v5432
    %v5434 = vrot.slane %v4812, %v5433
    %v5435 = vsel %vm4950, %v5434, %v5430
    %v5436 = vlaneseq
    %v5437 = vshrl.u32 %v5436, 7
    %v5438 = vsub.s32 %v4952, %v5437
    %v5439 = vrot.slane %v4815, %v5438
    %v5440 = vsel %vm4957, %v5439, %v5435
    %v5441 = vlaneseq
    %v5442 = vshrl.u32 %v5441, 7
    %v5443 = vsub.s32 %v4959, %v5442
    %v5444 = vrot.slane %v4818, %v5443
    %v5445 = vsel %vm4964, %v5444, %v5440
    %v5446 = vlaneseq
    %v5447 = vshrl.u32 %v5446, 7
    %v5448 = vsub.s32 %v4966, %v5447
    %v5449 = vrot.slane %v4821, %v5448
    %v5450 = vsel %vm4971, %v5449, %v5445
    %v5451 = vlaneseq
    %v5452 = vshrl.u32 %v5451, 7
    %v5453 = vsub.s32 %v4973, %v5452
    %v5454 = vrot.slane %v4824, %v5453
    %v5455 = vsel %vm4978, %v5454, %v5450
    %v5456 = vlaneseq
    %v5457 = vshrl.u32 %v5456, 7
    %v5458 = vsub.s32 %v4980, %v5457
    %v5459 = vrot.slane %v4827, %v5458
    %v5460 = vsel %vm4985, %v5459, %v5455
    %v5461 = vlaneseq
    %v5462 = vshrl.u32 %v5461, 7
    %v5463 = vsub.s32 %v4877, %v5462
    %v5464 = vrot.slane %v4830, %v5463
    %v5465 = vlaneseq
    %v5466 = vshrl.u32 %v5465, 7
    %v5467 = vsub.s32 %v4882, %v5466
    %v5468 = vrot.slane %v4833, %v5467
    %v5469 = vsel %vm4887, %v5468, %v5464
    %v5470 = vlaneseq
    %v5471 = vshrl.u32 %v5470, 7
    %v5472 = vsub.s32 %v4889, %v5471
    %v5473 = vrot.slane %v4836, %v5472
    %v5474 = vsel %vm4894, %v5473, %v5469
    %v5475 = vlaneseq
    %v5476 = vshrl.u32 %v5475, 7
    %v5477 = vsub.s32 %v4896, %v5476
    %v5478 = vrot.slane %v4839, %v5477
    %v5479 = vsel %vm4901, %v5478, %v5474
    %v5480 = vlaneseq
    %v5481 = vshrl.u32 %v5480, 7
    %v5482 = vsub.s32 %v4903, %v5481
    %v5483 = vrot.slane %v4842, %v5482
    %v5484 = vsel %vm4908, %v5483, %v5479
    %v5485 = vlaneseq
    %v5486 = vshrl.u32 %v5485, 7
    %v5487 = vsub.s32 %v4910, %v5486
    %v5488 = vrot.slane %v4845, %v5487
    %v5489 = vsel %vm4915, %v5488, %v5484
    %v5490 = vlaneseq
    %v5491 = vshrl.u32 %v5490, 7
    %v5492 = vsub.s32 %v4917, %v5491
    %v5493 = vrot.slane %v4848, %v5492
    %v5494 = vsel %vm4922, %v5493, %v5489
    %v5495 = vlaneseq
    %v5496 = vshrl.u32 %v5495, 7
    %v5497 = vsub.s32 %v4924, %v5496
    %v5498 = vrot.slane %v4851, %v5497
    %v5499 = vsel %vm4929, %v5498, %v5494
    %v5500 = vlaneseq
    %v5501 = vshrl.u32 %v5500, 7
    %v5502 = vsub.s32 %v4931, %v5501
    %v5503 = vrot.slane %v4854, %v5502
    %v5504 = vsel %vm4936, %v5503, %v5499
    %v5505 = vlaneseq
    %v5506 = vshrl.u32 %v5505, 7
    %v5507 = vsub.s32 %v4938, %v5506
    %v5508 = vrot.slane %v4857, %v5507
    %v5509 = vsel %vm4943, %v5508, %v5504
    %v5510 = vlaneseq
    %v5511 = vshrl.u32 %v5510, 7
    %v5512 = vsub.s32 %v4945, %v5511
    %v5513 = vrot.slane %v4860, %v5512
    %v5514 = vsel %vm4950, %v5513, %v5509
    %v5515 = vlaneseq
    %v5516 = vshrl.u32 %v5515, 7
    %v5517 = vsub.s32 %v4952, %v5516
    %v5518 = vrot.slane %v4863, %v5517
    %v5519 = vsel %vm4957, %v5518, %v5514
    %v5520 = vlaneseq
    %v5521 = vshrl.u32 %v5520, 7
    %v5522 = vsub.s32 %v4959, %v5521
    %v5523 = vrot.slane %v4866, %v5522
    %v5524 = vsel %vm4964, %v5523, %v5519
    %v5525 = vlaneseq
    %v5526 = vshrl.u32 %v5525, 7
    %v5527 = vsub.s32 %v4966, %v5526
    %v5528 = vrot.slane %v4869, %v5527
    %v5529 = vsel %vm4971, %v5528, %v5524
    %v5530 = vlaneseq
    %v5531 = vshrl.u32 %v5530, 7
    %v5532 = vsub.s32 %v4973, %v5531
    %v5533 = vrot.slane %v4872, %v5532
    %v5534 = vsel %vm4978, %v5533, %v5529
    %v5535 = vlaneseq
    %v5536 = vshrl.u32 %v5535, 7
    %v5537 = vsub.s32 %v4980, %v5536
    %v5538 = vrot.slane %v4875, %v5537
    %v5539 = vsel %vm4985, %v5538, %v5534
    %vm5540 = vcmask 1041409
    %v5541 = vsel %vm5540, %v5302, %v4986
    %v5542 = vsel %vm5540, %v5381, %v5065
    %v5543 = vsel %vm5540, %v5460, %v5144
    %v5544 = vsel %vm5540, %v5539, %v5223
    %v5545 = vpack.c.b16 %v5541, %v5541
    %v5546 = vpack.c.b16 %v5542, %v5542
    %v5547 = vpack.c.b16 %v5543, %v5543
    %v5548 = vpack.c.b16 %v5544, %v5544
    %v5617 = vunpack.c.l.b16 %v4236
    %v5618 = vunpack.c.h.b16 %v4236
    %v5619 = vunpack.c.l.b16 %v4237
    %v5620 = vunpack.c.h.b16 %v4237
    %v5621 = vunpack.c.l.b16 %v4238
    %v5622 = vunpack.c.h.b16 %v4238
    %v5623 = vunpack.c.l.b16 %v4239
    %v5624 = vunpack.c.h.b16 %v4239
    %v5625 = vunpack.c.l.b16 %v4240
    %v5626 = vunpack.c.h.b16 %v4240
    %v5627 = vunpack.c.l.b16 %v4241
    %v5628 = vunpack.c.h.b16 %v4241
    %v5629 = vunpack.c.l.b16 %v4242
    %v5630 = vunpack.c.h.b16 %v4242
    %v5631 = vunpack.c.l.b16 %v4243
    %v5632 = vunpack.c.h.b16 %v4243
    %v5633 = vunpack.c.l.b16 %v4244
    %v5634 = vunpack.c.h.b16 %v4244
    %v5635 = vunpack.c.l.b16 %v4245
    %v5636 = vunpack.c.h.b16 %v4245
    %v5637 = vunpack.c.l.b16 %v4246
    %v5638 = vunpack.c.h.b16 %v4246
    %v5639 = vunpack.c.l.b16 %v4247
    %v5640 = vunpack.c.h.b16 %v4247
    %v5641 = vunpack.c.l.b16 %v4248
    %v5642 = vunpack.c.h.b16 %v4248
    %v5643 = vunpack.c.l.b16 %v4249
    %v5644 = vunpack.c.h.b16 %v4249
    %v5645 = vunpack.c.l.b16 %v4250
    %v5646 = vunpack.c.h.b16 %v4250
    %v5647 = vunpack.c.l.b16 %v4251
    %v5648 = vunpack.c.h.b16 %v4251
    %v5649 = vunpack.c.l.b16 %v4252
    %v5650 = vunpack.c.h.b16 %v4252
    %v5651 = vunpack.c.l.b16 %v4253
    %v5652 = vunpack.c.h.b16 %v4253
    %v5653 = vunpack.c.l.b16 %v4254
    %v5654 = vunpack.c.h.b16 %v4254
    %v5655 = vunpack.c.l.b16 %v4255
    %v5656 = vunpack.c.h.b16 %v4255
    %v5657 = vunpack.c.l.b16 %v4256
    %v5658 = vunpack.c.h.b16 %v4256
    %v5659 = vunpack.c.l.b16 %v4257
    %v5660 = vunpack.c.h.b16 %v4257
    %v5661 = vunpack.c.l.b16 %v4258
    %v5662 = vunpack.c.h.b16 %v4258
    %v5663 = vunpack.c.l.b16 %v4259
    %v5664 = vunpack.c.h.b16 %v4259
    %v5665 = vunpack.c.l.b16 %v4260
    %v5666 = vunpack.c.h.b16 %v4260
    %v5667 = vunpack.c.l.b16 %v4261
    %v5668 = vunpack.c.h.b16 %v4261
    %v5669 = vunpack.c.l.b16 %v4262
    %v5670 = vunpack.c.h.b16 %v4262
    %v5671 = vunpack.c.l.b16 %v4263
    %v5672 = vunpack.c.h.b16 %v4263
    %v5673 = vunpack.c.l.b16 %v4264
    %v5674 = vunpack.c.h.b16 %v4264
    %v5675 = vunpack.c.l.b16 %v4265
    %v5676 = vunpack.c.h.b16 %v4265
    %v5677 = vunpack.c.l.b16 %v4266
    %v5678 = vunpack.c.h.b16 %v4266
    %v5679 = vunpack.c.l.b16 %v4267
    %v5680 = vunpack.c.h.b16 %v4267
    %v5681 = vunpack.c.l.b16 %v4268
    %v5682 = vunpack.c.h.b16 %v4268
    %v5683 = vunpack.c.l.b16 %v4269
    %v5684 = vunpack.c.h.b16 %v4269
    %v5685 = vunpack.c.l.b16 %v4270
    %v5686 = vunpack.c.h.b16 %v4270
    %v5687 = vunpack.c.l.b16 %v4271
    %v5688 = vunpack.c.h.b16 %v4271
    %v5689 = vunpack.c.l.b16 %v4272
    %v5690 = vunpack.c.h.b16 %v4272
    %v5691 = vunpack.c.l.b16 %v4273
    %v5692 = vunpack.c.h.b16 %v4273
    %v5693 = vunpack.c.l.b16 %v4274
    %v5694 = vunpack.c.h.b16 %v4274
    %v5695 = vunpack.c.l.b16 %v4275
    %v5696 = vunpack.c.h.b16 %v4275
    %v5697 = vunpack.c.l.b16 %v4276
    %v5698 = vunpack.c.h.b16 %v4276
    %v5699 = vunpack.c.l.b16 %v4277
    %v5700 = vunpack.c.h.b16 %v4277
    %v5701 = vunpack.c.l.b16 %v4278
    %v5702 = vunpack.c.h.b16 %v4278
    %v5703 = vunpack.c.l.b16 %v4279
    %v5704 = vunpack.c.h.b16 %v4279
    %v5705 = vunpack.c.l.b16 %v4280
    %v5706 = vunpack.c.h.b16 %v4280
    %v5707 = vunpack.c.l.b16 %v4281
    %v5708 = vunpack.c.h.b16 %v4281
    %v5709 = vunpack.c.l.b16 %v4282
    %v5710 = vunpack.c.h.b16 %v4282
    %v5711 = vunpack.c.l.b16 %v4283
    %v5712 = vunpack.c.h.b16 %v4283
    %v5713 = vunpack.c.l.b16 %v4284
    %v5714 = vunpack.c.h.b16 %v4284
    %v5715 = vunpack.c.l.b16 %v4285
    %v5716 = vunpack.c.h.b16 %v4285
    %v5717 = vunpack.c.l.b16 %v4286
    %v5718 = vunpack.c.h.b16 %v4286
    %v5719 = vunpack.c.l.b16 %v4287
    %v5720 = vunpack.c.h.b16 %v4287
    %v5721 = vunpack.c.l.b16 %v4288
    %v5722 = vunpack.c.h.b16 %v4288
    %v5723 = vunpack.c.l.b16 %v4289
    %v5724 = vunpack.c.h.b16 %v4289
    %v5725 = vunpack.c.l.b16 %v4290
    %v5726 = vunpack.c.h.b16 %v4290
    %v5727 = vunpack.c.l.b16 %v4291
    %v5728 = vunpack.c.h.b16 %v4291
    %v5729 = vunpack.c.l.b16 %v4292
    %v5730 = vunpack.c.h.b16 %v4292
    %v5731 = vunpack.c.l.b16 %v4293
    %v5732 = vunpack.c.h.b16 %v4293
    %v5733 = vunpack.c.l.b16 %v4294
    %v5734 = vunpack.c.h.b16 %v4294
    %v5735 = vunpack.c.l.b16 %v4295
    %v5736 = vunpack.c.h.b16 %v4295
    %v5737 = vunpack.c.l.b16 %v4296
    %v5738 = vunpack.c.h.b16 %v4296
    %v5739 = vunpack.c.l.b16 %v4297
    %v5740 = vunpack.c.h.b16 %v4297
    %v5741 = vunpack.c.l.b16 %v4298
    %v5742 = vunpack.c.h.b16 %v4298
    %v5743 = vunpack.c.l.b16 %v4299
    %v5744 = vunpack.c.h.b16 %v4299
    %v5745 = vpack.c.b16 %v5619, %v5617
    %v5746 = vpack.c.b16 %v5620, %v5618
    %v5747 = vpack.c.b16 %v5623, %v5621
    %v5748 = vpack.c.b16 %v5624, %v5622
    %v5749 = vpack.c.b16 %v5627, %v5625
    %v5750 = vpack.c.b16 %v5628, %v5626
    %v5751 = vpack.c.b16 %v5631, %v5629
    %v5752 = vpack.c.b16 %v5632, %v5630
    %v5753 = vpack.c.b16 %v5635, %v5633
    %v5754 = vpack.c.b16 %v5636, %v5634
    %v5755 = vpack.c.b16 %v5639, %v5637
    %v5756 = vpack.c.b16 %v5640, %v5638
    %v5757 = vpack.c.b16 %v5643, %v5641
    %v5758 = vpack.c.b16 %v5644, %v5642
    %v5759 = vpack.c.b16 %v5647, %v5645
    %v5760 = vpack.c.b16 %v5648, %v5646
    %v5761 = vpack.c.b16 %v5651, %v5649
    %v5762 = vpack.c.b16 %v5652, %v5650
    %v5763 = vpack.c.b16 %v5655, %v5653
    %v5764 = vpack.c.b16 %v5656, %v5654
    %v5765 = vpack.c.b16 %v5659, %v5657
    %v5766 = vpack.c.b16 %v5660, %v5658
    %v5767 = vpack.c.b16 %v5663, %v5661
    %v5768 = vpack.c.b16 %v5664, %v5662
    %v5769 = vpack.c.b16 %v5667, %v5665
    %v5770 = vpack.c.b16 %v5668, %v5666
    %v5771 = vpack.c.b16 %v5671, %v5669
    %v5772 = vpack.c.b16 %v5672, %v5670
    %v5773 = vpack.c.b16 %v5675, %v5673
    %v5774 = vpack.c.b16 %v5676, %v5674
    %v5775 = vpack.c.b16 %v5679, %v5677
    %v5776 = vpack.c.b16 %v5680, %v5678
    %v5777 = vpack.c.b16 %v5683, %v5681
    %v5778 = vpack.c.b16 %v5684, %v5682
    %v5779 = vpack.c.b16 %v5687, %v5685
    %v5780 = vpack.c.b16 %v5688, %v5686
    %v5781 = vpack.c.b16 %v5691, %v5689
    %v5782 = vpack.c.b16 %v5692, %v5690
    %v5783 = vpack.c.b16 %v5695, %v5693
    %v5784 = vpack.c.b16 %v5696, %v5694
    %v5785 = vpack.c.b16 %v5699, %v5697
    %v5786 = vpack.c.b16 %v5700, %v5698
    %v5787 = vpack.c.b16 %v5703, %v5701
    %v5788 = vpack.c.b16 %v5704, %v5702
    %v5789 = vpack.c.b16 %v5707, %v5705
    %v5790 = vpack.c.b16 %v5708, %v5706
    %v5791 = vpack.c.b16 %v5711, %v5709
    %v5792 = vpack.c.b16 %v5712, %v5710
    %v5793 = vpack.c.b16 %v5715, %v5713
    %v5794 = vpack.c.b16 %v5716, %v5714
    %v5795 = vpack.c.b16 %v5719, %v5717
    %v5796 = vpack.c.b16 %v5720, %v5718
    %v5797 = vpack.c.b16 %v5723, %v5721
    %v5798 = vpack.c.b16 %v5724, %v5722
    %v5799 = vpack.c.b16 %v5727, %v5725
    %v5800 = vpack.c.b16 %v5728, %v5726
    %v5801 = vpack.c.b16 %v5731, %v5729
    %v5802 = vpack.c.b16 %v5732, %v5730
    %v5803 = vpack.c.b16 %v5735, %v5733
    %v5804 = vpack.c.b16 %v5736, %v5734
    %v5805 = vpack.c.b16 %v5739, %v5737
    %v5806 = vpack.c.b16 %v5740, %v5738
    %v5807 = vpack.c.b16 %v5743, %v5741
    %v5808 = vpack.c.b16 %v5744, %v5742
    %5873 = vmatprep.subr.bf16.mxu0 %v5746
    %5874 = vmatpush1.bf16.msra.mxu0 %v5745
    %5875 = vmatprep.subr.bf16.mxu0 %v5748
    %5876 = vmatpush1.bf16.msra.mxu0 %v5747
    %5877 = vmatprep.subr.bf16.mxu0 %v5750
    %5878 = vmatpush1.bf16.msra.mxu0 %v5749
    %5879 = vmatprep.subr.bf16.mxu0 %v5752
    %5880 = vmatpush1.bf16.msra.mxu0 %v5751
    %5881 = vmatprep.subr.bf16.mxu0 %v5754
    %5882 = vmatpush1.bf16.msra.mxu0 %v5753
    %5883 = vmatprep.subr.bf16.mxu0 %v5756
    %5884 = vmatpush1.bf16.msra.mxu0 %v5755
    %5885 = vmatprep.subr.bf16.mxu0 %v5758
    %5886 = vmatpush1.bf16.msra.mxu0 %v5757
    %5887 = vmatprep.subr.bf16.mxu0 %v5760
    %5888 = vmatpush1.bf16.msra.mxu0 %v5759
    %5889 = vmatprep.subr.bf16.mxu0 %v5762
    %5890 = vmatpush1.bf16.msra.mxu0 %v5761
    %5891 = vmatprep.subr.bf16.mxu0 %v5764
    %5892 = vmatpush1.bf16.msra.mxu0 %v5763
    %5893 = vmatprep.subr.bf16.mxu0 %v5766
    %5894 = vmatpush1.bf16.msra.mxu0 %v5765
    %5895 = vmatprep.subr.bf16.mxu0 %v5768
    %5896 = vmatpush1.bf16.msra.mxu0 %v5767
    %5897 = vmatprep.subr.bf16.mxu0 %v5770
    %5898 = vmatpush1.bf16.msra.mxu0 %v5769
    %5899 = vmatprep.subr.bf16.mxu0 %v5772
    %5900 = vmatpush1.bf16.msra.mxu0 %v5771
    %5901 = vmatprep.subr.bf16.mxu0 %v5774
    %5902 = vmatpush1.bf16.msra.mxu0 %v5773
    %5903 = vmatprep.subr.bf16.mxu0 %v5776
    %5904 = vmatpush1.bf16.msra.mxu0 %v5775
    %5905 = vmatprep.mubr.bf16.mxu0 %v5546
    %5906 = vmatmul.mubr.bf16.gmra.mrb[0].mxu0 %v5545
    %v5907 = vpop.f32.mrb[0].mxu0
    %v5908 = vadd.f32 0.0, %v5907
    %v5909 = vpop.f32.mrb[0].mxu0
    %v5910 = vadd.f32 0.0, %v5909
    %v5911 = vpop.f32.mrb[0].mxu0
    %v5912 = vpop.f32.mrb[0].mxu0
    %5913 = vdwg.mxu0
    %5914 = vmatprep.subr.bf16.mxu0 %v5778
    %5915 = vmatpush1.bf16.msra.mxu0 %v5777
    %5916 = vmatprep.subr.bf16.mxu0 %v5780
    %5917 = vmatpush1.bf16.msra.mxu0 %v5779
    %5918 = vmatprep.subr.bf16.mxu0 %v5782
    %5919 = vmatpush1.bf16.msra.mxu0 %v5781
    %5920 = vmatprep.subr.bf16.mxu0 %v5784
    %5921 = vmatpush1.bf16.msra.mxu0 %v5783
    %5922 = vmatprep.subr.bf16.mxu0 %v5786
    %5923 = vmatpush1.bf16.msra.mxu0 %v5785
    %5924 = vmatprep.subr.bf16.mxu0 %v5788
    %5925 = vmatpush1.bf16.msra.mxu0 %v5787
    %5926 = vmatprep.subr.bf16.mxu0 %v5790
    %5927 = vmatpush1.bf16.msra.mxu0 %v5789
    %5928 = vmatprep.subr.bf16.mxu0 %v5792
    %5929 = vmatpush1.bf16.msra.mxu0 %v5791
    %5930 = vmatprep.subr.bf16.mxu0 %v5794
    %5931 = vmatpush1.bf16.msra.mxu0 %v5793
    %5932 = vmatprep.subr.bf16.mxu0 %v5796
    %5933 = vmatpush1.bf16.msra.mxu0 %v5795
    %5934 = vmatprep.subr.bf16.mxu0 %v5798
    %5935 = vmatpush1.bf16.msra.mxu0 %v5797
    %5936 = vmatprep.subr.bf16.mxu0 %v5800
    %5937 = vmatpush1.bf16.msra.mxu0 %v5799
    %5938 = vmatprep.subr.bf16.mxu0 %v5802
    %5939 = vmatpush1.bf16.msra.mxu0 %v5801
    %5940 = vmatprep.subr.bf16.mxu0 %v5804
    %5941 = vmatpush1.bf16.msra.mxu0 %v5803
    %5942 = vmatprep.subr.bf16.mxu0 %v5806
    %5943 = vmatpush1.bf16.msra.mxu0 %v5805
    %5944 = vmatprep.subr.bf16.mxu0 %v5808
    %5945 = vmatpush1.bf16.msra.mxu0 %v5807
    %5946 = vmatprep.mubr.bf16.mxu0 %v5548
    %5947 = vmatmul.mubr.bf16.gmra.mrb[0].mxu0 %v5547
    %v5948 = vpop.f32.mrb[0].mxu0
    %v5949 = vadd.f32 %v5908, %v5948
    %v5950 = vpop.f32.mrb[0].mxu0
    %v5951 = vadd.f32 %v5910, %v5950
    %v5952 = vpop.f32.mrb[0].mxu0
    %v5953 = vpop.f32.mrb[0].mxu0
    %5954 = vdwg.mxu0
    %v6019 = vunpack.c.l.b16 %v4108
    %v6020 = vunpack.c.h.b16 %v4108
    %v6021 = vunpack.c.l.b16 %v4109
    %v6022 = vunpack.c.h.b16 %v4109
    %v6023 = vunpack.c.l.b16 %v4110
    %v6024 = vunpack.c.h.b16 %v4110
    %v6025 = vunpack.c.l.b16 %v4111
    %v6026 = vunpack.c.h.b16 %v4111
    %v6027 = vunpack.c.l.b16 %v4112
    %v6028 = vunpack.c.h.b16 %v4112
    %v6029 = vunpack.c.l.b16 %v4113
    %v6030 = vunpack.c.h.b16 %v4113
    %v6031 = vunpack.c.l.b16 %v4114
    %v6032 = vunpack.c.h.b16 %v4114
    %v6033 = vunpack.c.l.b16 %v4115
    %v6034 = vunpack.c.h.b16 %v4115
    %v6035 = vunpack.c.l.b16 %v4116
    %v6036 = vunpack.c.h.b16 %v4116
    %v6037 = vunpack.c.l.b16 %v4117
    %v6038 = vunpack.c.h.b16 %v4117
    %v6039 = vunpack.c.l.b16 %v4118
    %v6040 = vunpack.c.h.b16 %v4118
    %v6041 = vunpack.c.l.b16 %v4119
    %v6042 = vunpack.c.h.b16 %v4119
    %v6043 = vunpack.c.l.b16 %v4120
    %v6044 = vunpack.c.h.b16 %v4120
    %v6045 = vunpack.c.l.b16 %v4121
    %v6046 = vunpack.c.h.b16 %v4121
    %v6047 = vunpack.c.l.b16 %v4122
    %v6048 = vunpack.c.h.b16 %v4122
    %v6049 = vunpack.c.l.b16 %v4123
    %v6050 = vunpack.c.h.b16 %v4123
    %v6051 = vunpack.c.l.b16 %v4124
    %v6052 = vunpack.c.h.b16 %v4124
    %v6053 = vunpack.c.l.b16 %v4125
    %v6054 = vunpack.c.h.b16 %v4125
    %v6055 = vunpack.c.l.b16 %v4126
    %v6056 = vunpack.c.h.b16 %v4126
    %v6057 = vunpack.c.l.b16 %v4127
    %v6058 = vunpack.c.h.b16 %v4127
    %v6059 = vunpack.c.l.b16 %v4128
    %v6060 = vunpack.c.h.b16 %v4128
    %v6061 = vunpack.c.l.b16 %v4129
    %v6062 = vunpack.c.h.b16 %v4129
    %v6063 = vunpack.c.l.b16 %v4130
    %v6064 = vunpack.c.h.b16 %v4130
    %v6065 = vunpack.c.l.b16 %v4131
    %v6066 = vunpack.c.h.b16 %v4131
    %v6067 = vunpack.c.l.b16 %v4132
    %v6068 = vunpack.c.h.b16 %v4132
    %v6069 = vunpack.c.l.b16 %v4133
    %v6070 = vunpack.c.h.b16 %v4133
    %v6071 = vunpack.c.l.b16 %v4134
    %v6072 = vunpack.c.h.b16 %v4134
    %v6073 = vunpack.c.l.b16 %v4135
    %v6074 = vunpack.c.h.b16 %v4135
    %v6075 = vunpack.c.l.b16 %v4136
    %v6076 = vunpack.c.h.b16 %v4136
    %v6077 = vunpack.c.l.b16 %v4137
    %v6078 = vunpack.c.h.b16 %v4137
    %v6079 = vunpack.c.l.b16 %v4138
    %v6080 = vunpack.c.h.b16 %v4138
    %v6081 = vunpack.c.l.b16 %v4139
    %v6082 = vunpack.c.h.b16 %v4139
    %v6083 = vunpack.c.l.b16 %v4140
    %v6084 = vunpack.c.h.b16 %v4140
    %v6085 = vunpack.c.l.b16 %v4141
    %v6086 = vunpack.c.h.b16 %v4141
    %v6087 = vunpack.c.l.b16 %v4142
    %v6088 = vunpack.c.h.b16 %v4142
    %v6089 = vunpack.c.l.b16 %v4143
    %v6090 = vunpack.c.h.b16 %v4143
    %v6091 = vunpack.c.l.b16 %v4144
    %v6092 = vunpack.c.h.b16 %v4144
    %v6093 = vunpack.c.l.b16 %v4145
    %v6094 = vunpack.c.h.b16 %v4145
    %v6095 = vunpack.c.l.b16 %v4146
    %v6096 = vunpack.c.h.b16 %v4146
    %v6097 = vunpack.c.l.b16 %v4147
    %v6098 = vunpack.c.h.b16 %v4147
    %v6099 = vunpack.c.l.b16 %v4148
    %v6100 = vunpack.c.h.b16 %v4148
    %v6101 = vunpack.c.l.b16 %v4149
    %v6102 = vunpack.c.h.b16 %v4149
    %v6103 = vunpack.c.l.b16 %v4150
    %v6104 = vunpack.c.h.b16 %v4150
    %v6105 = vunpack.c.l.b16 %v4151
    %v6106 = vunpack.c.h.b16 %v4151
    %v6107 = vunpack.c.l.b16 %v4152
    %v6108 = vunpack.c.h.b16 %v4152
    %v6109 = vunpack.c.l.b16 %v4153
    %v6110 = vunpack.c.h.b16 %v4153
    %v6111 = vunpack.c.l.b16 %v4154
    %v6112 = vunpack.c.h.b16 %v4154
    %v6113 = vunpack.c.l.b16 %v4155
    %v6114 = vunpack.c.h.b16 %v4155
    %v6115 = vunpack.c.l.b16 %v4156
    %v6116 = vunpack.c.h.b16 %v4156
    %v6117 = vunpack.c.l.b16 %v4157
    %v6118 = vunpack.c.h.b16 %v4157
    %v6119 = vunpack.c.l.b16 %v4158
    %v6120 = vunpack.c.h.b16 %v4158
    %v6121 = vunpack.c.l.b16 %v4159
    %v6122 = vunpack.c.h.b16 %v4159
    %v6123 = vunpack.c.l.b16 %v4160
    %v6124 = vunpack.c.h.b16 %v4160
    %v6125 = vunpack.c.l.b16 %v4161
    %v6126 = vunpack.c.h.b16 %v4161
    %v6127 = vunpack.c.l.b16 %v4162
    %v6128 = vunpack.c.h.b16 %v4162
    %v6129 = vunpack.c.l.b16 %v4163
    %v6130 = vunpack.c.h.b16 %v4163
    %v6131 = vunpack.c.l.b16 %v4164
    %v6132 = vunpack.c.h.b16 %v4164
    %v6133 = vunpack.c.l.b16 %v4165
    %v6134 = vunpack.c.h.b16 %v4165
    %v6135 = vunpack.c.l.b16 %v4166
    %v6136 = vunpack.c.h.b16 %v4166
    %v6137 = vunpack.c.l.b16 %v4167
    %v6138 = vunpack.c.h.b16 %v4167
    %v6139 = vunpack.c.l.b16 %v4168
    %v6140 = vunpack.c.h.b16 %v4168
    %v6141 = vunpack.c.l.b16 %v4169
    %v6142 = vunpack.c.h.b16 %v4169
    %v6143 = vunpack.c.l.b16 %v4170
    %v6144 = vunpack.c.h.b16 %v4170
    %v6145 = vunpack.c.l.b16 %v4171
    %v6146 = vunpack.c.h.b16 %v4171
    %v6147 = vpack.c.b16 %v6021, %v6019
    %v6148 = vpack.c.b16 %v6022, %v6020
    %v6149 = vpack.c.b16 %v6025, %v6023
    %v6150 = vpack.c.b16 %v6026, %v6024
    %v6151 = vpack.c.b16 %v6029, %v6027
    %v6152 = vpack.c.b16 %v6030, %v6028
    %v6153 = vpack.c.b16 %v6033, %v6031
    %v6154 = vpack.c.b16 %v6034, %v6032
    %v6155 = vpack.c.b16 %v6037, %v6035
    %v6156 = vpack.c.b16 %v6038, %v6036
    %v6157 = vpack.c.b16 %v6041, %v6039
    %v6158 = vpack.c.b16 %v6042, %v6040
    %v6159 = vpack.c.b16 %v6045, %v6043
    %v6160 = vpack.c.b16 %v6046, %v6044
    %v6161 = vpack.c.b16 %v6049, %v6047
    %v6162 = vpack.c.b16 %v6050, %v6048
    %v6163 = vpack.c.b16 %v6053, %v6051
    %v6164 = vpack.c.b16 %v6054, %v6052
    %v6165 = vpack.c.b16 %v6057, %v6055
    %v6166 = vpack.c.b16 %v6058, %v6056
    %v6167 = vpack.c.b16 %v6061, %v6059
    %v6168 = vpack.c.b16 %v6062, %v6060
    %v6169 = vpack.c.b16 %v6065, %v6063
    %v6170 = vpack.c.b16 %v6066, %v6064
    %v6171 = vpack.c.b16 %v6069, %v6067
    %v6172 = vpack.c.b16 %v6070, %v6068
    %v6173 = vpack.c.b16 %v6073, %v6071
    %v6174 = vpack.c.b16 %v6074, %v6072
    %v6175 = vpack.c.b16 %v6077, %v6075
    %v6176 = vpack.c.b16 %v6078, %v6076
    %v6177 = vpack.c.b16 %v6081, %v6079
    %v6178 = vpack.c.b16 %v6082, %v6080
    %v6179 = vpack.c.b16 %v6085, %v6083
    %v6180 = vpack.c.b16 %v6086, %v6084
    %v6181 = vpack.c.b16 %v6089, %v6087
    %v6182 = vpack.c.b16 %v6090, %v6088
    %v6183 = vpack.c.b16 %v6093, %v6091
    %v6184 = vpack.c.b16 %v6094, %v6092
    %v6185 = vpack.c.b16 %v6097, %v6095
    %v6186 = vpack.c.b16 %v6098, %v6096
    %v6187 = vpack.c.b16 %v6101, %v6099
    %v6188 = vpack.c.b16 %v6102, %v6100
    %v6189 = vpack.c.b16 %v6105, %v6103
    %v6190 = vpack.c.b16 %v6106, %v6104
    %v6191 = vpack.c.b16 %v6109, %v6107
    %v6192 = vpack.c.b16 %v6110, %v6108
    %v6193 = vpack.c.b16 %v6113, %v6111
    %v6194 = vpack.c.b16 %v6114, %v6112
    %v6195 = vpack.c.b16 %v6117, %v6115
    %v6196 = vpack.c.b16 %v6118, %v6116
    %v6197 = vpack.c.b16 %v6121, %v6119
    %v6198 = vpack.c.b16 %v6122, %v6120
    %v6199 = vpack.c.b16 %v6125, %v6123
    %v6200 = vpack.c.b16 %v6126, %v6124
    %v6201 = vpack.c.b16 %v6129, %v6127
    %v6202 = vpack.c.b16 %v6130, %v6128
    %v6203 = vpack.c.b16 %v6133, %v6131
    %v6204 = vpack.c.b16 %v6134, %v6132
    %v6205 = vpack.c.b16 %v6137, %v6135
    %v6206 = vpack.c.b16 %v6138, %v6136
    %v6207 = vpack.c.b16 %v6141, %v6139
    %v6208 = vpack.c.b16 %v6142, %v6140
    %v6209 = vpack.c.b16 %v6145, %v6143
    %v6210 = vpack.c.b16 %v6146, %v6144
    %6275 = vmatprep.subr.bf16.mxu0 %v6148
    %6276 = vmatpush1.bf16.msra.mxu0 %v6147
    %6277 = vmatprep.subr.bf16.mxu0 %v6150
    %6278 = vmatpush1.bf16.msra.mxu0 %v6149
    %6279 = vmatprep.subr.bf16.mxu0 %v6152
    %6280 = vmatpush1.bf16.msra.mxu0 %v6151
    %6281 = vmatprep.subr.bf16.mxu0 %v6154
    %6282 = vmatpush1.bf16.msra.mxu0 %v6153
    %6283 = vmatprep.subr.bf16.mxu0 %v6156
    %6284 = vmatpush1.bf16.msra.mxu0 %v6155
    %6285 = vmatprep.subr.bf16.mxu0 %v6158
    %6286 = vmatpush1.bf16.msra.mxu0 %v6157
    %6287 = vmatprep.subr.bf16.mxu0 %v6160
    %6288 = vmatpush1.bf16.msra.mxu0 %v6159
    %6289 = vmatprep.subr.bf16.mxu0 %v6162
    %6290 = vmatpush1.bf16.msra.mxu0 %v6161
    %6291 = vmatprep.subr.bf16.mxu0 %v6164
    %6292 = vmatpush1.bf16.msra.mxu0 %v6163
    %6293 = vmatprep.subr.bf16.mxu0 %v6166
    %6294 = vmatpush1.bf16.msra.mxu0 %v6165
    %6295 = vmatprep.subr.bf16.mxu0 %v6168
    %6296 = vmatpush1.bf16.msra.mxu0 %v6167
    %6297 = vmatprep.subr.bf16.mxu0 %v6170
    %6298 = vmatpush1.bf16.msra.mxu0 %v6169
    %6299 = vmatprep.subr.bf16.mxu0 %v6172
    %6300 = vmatpush1.bf16.msra.mxu0 %v6171
    %6301 = vmatprep.subr.bf16.mxu0 %v6174
    %6302 = vmatpush1.bf16.msra.mxu0 %v6173
    %6303 = vmatprep.subr.bf16.mxu0 %v6176
    %6304 = vmatpush1.bf16.msra.mxu0 %v6175
    %6305 = vmatprep.subr.bf16.mxu0 %v6178
    %6306 = vmatpush1.bf16.msra.mxu0 %v6177
    %6307 = vmatprep.mubr.bf16.mxu0 %v4105
    %6308 = vmatmul.mubr.bf16.gmra.mrb[0].mxu0 %v4104
    %v6309 = vpop.f32.mrb[0].mxu0
    %v6310 = vadd.f32 %v5949, %v6309
    %v6311 = vpop.f32.mrb[0].mxu0
    %v6312 = vadd.f32 %v5951, %v6311
    %v6313 = vpop.f32.mrb[0].mxu0
    %v6314 = vpop.f32.mrb[0].mxu0
    %6315 = vdwg.mxu0
    %6316 = vmatprep.subr.bf16.mxu0 %v6180
    %6317 = vmatpush1.bf16.msra.mxu0 %v6179
    %6318 = vmatprep.subr.bf16.mxu0 %v6182
    %6319 = vmatpush1.bf16.msra.mxu0 %v6181
    %6320 = vmatprep.subr.bf16.mxu0 %v6184
    %6321 = vmatpush1.bf16.msra.mxu0 %v6183
    %6322 = vmatprep.subr.bf16.mxu0 %v6186
    %6323 = vmatpush1.bf16.msra.mxu0 %v6185
    %6324 = vmatprep.subr.bf16.mxu0 %v6188
    %6325 = vmatpush1.bf16.msra.mxu0 %v6187
    %6326 = vmatprep.subr.bf16.mxu0 %v6190
    %6327 = vmatpush1.bf16.msra.mxu0 %v6189
    %6328 = vmatprep.subr.bf16.mxu0 %v6192
    %6329 = vmatpush1.bf16.msra.mxu0 %v6191
    %6330 = vmatprep.subr.bf16.mxu0 %v6194
    %6331 = vmatpush1.bf16.msra.mxu0 %v6193
    %6332 = vmatprep.subr.bf16.mxu0 %v6196
    %6333 = vmatpush1.bf16.msra.mxu0 %v6195
    %6334 = vmatprep.subr.bf16.mxu0 %v6198
    %6335 = vmatpush1.bf16.msra.mxu0 %v6197
    %6336 = vmatprep.subr.bf16.mxu0 %v6200
    %6337 = vmatpush1.bf16.msra.mxu0 %v6199
    %6338 = vmatprep.subr.bf16.mxu0 %v6202
    %6339 = vmatpush1.bf16.msra.mxu0 %v6201
    %6340 = vmatprep.subr.bf16.mxu0 %v6204
    %6341 = vmatpush1.bf16.msra.mxu0 %v6203
    %6342 = vmatprep.subr.bf16.mxu0 %v6206
    %6343 = vmatpush1.bf16.msra.mxu0 %v6205
    %6344 = vmatprep.subr.bf16.mxu0 %v6208
    %6345 = vmatpush1.bf16.msra.mxu0 %v6207
    %6346 = vmatprep.subr.bf16.mxu0 %v6210
    %6347 = vmatpush1.bf16.msra.mxu0 %v6209
    %6348 = vmatprep.mubr.bf16.mxu0 %v4107
    %6349 = vmatmul.mubr.bf16.gmra.mrb[0].mxu0 %v4106
    %v6350 = vpop.f32.mrb[0].mxu0
    %v6351 = vadd.f32 %v6310, %v6350
    %v6352 = vpop.f32.mrb[0].mxu0
    %v6353 = vadd.f32 %v6312, %v6352
    %v6354 = vpop.f32.mrb[0].mxu0
    %v6355 = vpop.f32.mrb[0].mxu0
    %6356 = vdwg.mxu0
    %v6357 = vld [vmem:[%s8] sm:$0x3]
    %v6359 = vlaneseq
    %v6360 = vshrl.u32 %v6359, 7
    %v6361 = vsub.s32 0, %v6360
    %v6362 = vrot.slane %v6357, %v6361
    %v6363 = vlaneseq
    %v6364 = vshrl.u32 %v6363, 7
    %v6365 = vsub.s32 1, %v6364
    %v6366 = vrot.slane %v6357, %v6365
    %v6369 = vadd.f32 %v6351, %v6362
    %v6370 = vadd.f32 %v6353, %v6366
    %v6371 = vmax.f32 %v6369, 0.0
    %v6372 = vmax.f32 %v6370, 0.0
    %v6373 = vpack.c.bf16 %v6371, %v6371
    %v6374 = vpack.c.bf16 %v6372, %v6372
    %v6375 = vld [vmem:[#allocation7] sm:$0xf]
    %v6376 = vld [vmem:[#allocation7 + $0x4] sm:$0xf]
    %v6377 = vld [vmem:[#allocation7 + $0x8] sm:$0xf]
    %v6378 = vld [vmem:[#allocation7 + $0xc] sm:$0xf]
    %v6379 = vld [vmem:[#allocation7 + $0x10] sm:$0xf]
    %v6380 = vld [vmem:[#allocation7 + $0x14] sm:$0xf]
    %v6381 = vld [vmem:[#allocation7 + $0x18] sm:$0xf]
    %v6382 = vld [vmem:[#allocation7 + $0x1c] sm:$0xf]
    %v6383 = vld [vmem:[#allocation7 + $0x20] sm:$0xf]
    %v6384 = vld [vmem:[#allocation7 + $0x24] sm:$0xf]
    %v6385 = vld [vmem:[#allocation7 + $0x28] sm:$0xf]
    %v6386 = vld [vmem:[#allocation7 + $0x2c] sm:$0xf]
    %v6387 = vld [vmem:[#allocation7 + $0x30] sm:$0xf]
    %v6388 = vld [vmem:[#allocation7 + $0x34] sm:$0xf]
    %v6389 = vld [vmem:[#allocation7 + $0x38] sm:$0xf]
    %v6390 = vld [vmem:[#allocation7 + $0x3c] sm:$0xf]
    %v6391 = vld [vmem:[#allocation7 + $0x40] sm:$0xf]
    %v6392 = vld [vmem:[#allocation7 + $0x44] sm:$0xf]
    %v6393 = vld [vmem:[#allocation7 + $0x48] sm:$0xf]
    %v6394 = vld [vmem:[#allocation7 + $0x4c] sm:$0xf]
    %v6395 = vld [vmem:[#allocation7 + $0x50] sm:$0xf]
    %v6396 = vld [vmem:[#allocation7 + $0x54] sm:$0xf]
    %v6397 = vld [vmem:[#allocation7 + $0x58] sm:$0xf]
    %v6398 = vld [vmem:[#allocation7 + $0x5c] sm:$0xf]
    %v6399 = vld [vmem:[#allocation7 + $0x60] sm:$0xf]
    %v6400 = vld [vmem:[#allocation7 + $0x64] sm:$0xf]
    %v6401 = vld [vmem:[#allocation7 + $0x68] sm:$0xf]
    %v6402 = vld [vmem:[#allocation7 + $0x6c] sm:$0xf]
    %v6403 = vld [vmem:[#allocation7 + $0x70] sm:$0xf]
    %v6404 = vld [vmem:[#allocation7 + $0x74] sm:$0xf]
    %v6405 = vld [vmem:[#allocation7 + $0x78] sm:$0xf]
    %v6406 = vld [vmem:[#allocation7 + $0x7c] sm:$0xf]
    %v6407 = vld [vmem:[%s10] sm:$0x1]
    %v6409 = vlaneseq
    %v6410 = vshrl.u32 %v6409, 7
    %v6411 = vsub.s32 0, %v6410
    %v6412 = vrot.slane %v6407, %v6411
    %v6446 = vunpack.c.l.b16 %v6375
    %v6447 = vunpack.c.l.b16 %v6376
    %v6448 = vunpack.c.l.b16 %v6377
    %v6449 = vunpack.c.l.b16 %v6378
    %v6450 = vunpack.c.l.b16 %v6379
    %v6451 = vunpack.c.l.b16 %v6380
    %v6452 = vunpack.c.l.b16 %v6381
    %v6453 = vunpack.c.l.b16 %v6382
    %v6454 = vunpack.c.l.b16 %v6383
    %v6455 = vunpack.c.l.b16 %v6384
    %v6456 = vunpack.c.l.b16 %v6385
    %v6457 = vunpack.c.l.b16 %v6386
    %v6458 = vunpack.c.l.b16 %v6387
    %v6459 = vunpack.c.l.b16 %v6388
    %v6460 = vunpack.c.l.b16 %v6389
    %v6461 = vunpack.c.l.b16 %v6390
    %v6462 = vunpack.c.l.b16 %v6391
    %v6463 = vunpack.c.l.b16 %v6392
    %v6464 = vunpack.c.l.b16 %v6393
    %v6465 = vunpack.c.l.b16 %v6394
    %v6466 = vunpack.c.l.b16 %v6395
    %v6467 = vunpack.c.l.b16 %v6396
    %v6468 = vunpack.c.l.b16 %v6397
    %v6469 = vunpack.c.l.b16 %v6398
    %v6470 = vunpack.c.l.b16 %v6399
    %v6471 = vunpack.c.l.b16 %v6400
    %v6472 = vunpack.c.l.b16 %v6401
    %v6473 = vunpack.c.l.b16 %v6402
    %v6474 = vunpack.c.l.b16 %v6403
    %v6475 = vunpack.c.l.b16 %v6404
    %v6476 = vunpack.c.l.b16 %v6405
    %v6477 = vunpack.c.l.b16 %v6406
    %v6478 = vpack.c.b16 %v6447, %v6446
    %v6479 = vpack.c.b16 %v6449, %v6448
    %v6480 = vpack.c.b16 %v6451, %v6450
    %v6481 = vpack.c.b16 %v6453, %v6452
    %v6482 = vpack.c.b16 %v6455, %v6454
    %v6483 = vpack.c.b16 %v6457, %v6456
    %v6484 = vpack.c.b16 %v6459, %v6458
    %v6485 = vpack.c.b16 %v6461, %v6460
    %v6486 = vpack.c.b16 %v6463, %v6462
    %v6487 = vpack.c.b16 %v6465, %v6464
    %v6488 = vpack.c.b16 %v6467, %v6466
    %v6489 = vpack.c.b16 %v6469, %v6468
    %v6490 = vpack.c.b16 %v6471, %v6470
    %v6491 = vpack.c.b16 %v6473, %v6472
    %v6492 = vpack.c.b16 %v6475, %v6474
    %v6493 = vpack.c.b16 %v6477, %v6476
    %6510 = vmatprep.subr.bf16.mxu0 0
    %6511 = vmatpush1.bf16.msra.mxu0 %v6478
    %6512 = vmatprep.subr.bf16.mxu0 0
    %6513 = vmatpush1.bf16.msra.mxu0 %v6479
    %6514 = vmatprep.subr.bf16.mxu0 0
    %6515 = vmatpush1.bf16.msra.mxu0 %v6480
    %6516 = vmatprep.subr.bf16.mxu0 0
    %6517 = vmatpush1.bf16.msra.mxu0 %v6481
    %6518 = vmatprep.subr.bf16.mxu0 0
    %6519 = vmatpush1.bf16.msra.mxu0 %v6482
    %6520 = vmatprep.subr.bf16.mxu0 0
    %6521 = vmatpush1.bf16.msra.mxu0 %v6483
    %6522 = vmatprep.subr.bf16.mxu0 0
    %6523 = vmatpush1.bf16.msra.mxu0 %v6484
    %6524 = vmatprep.subr.bf16.mxu0 0
    %6525 = vmatpush1.bf16.msra.mxu0 %v6485
    %6526 = vmatprep.subr.bf16.mxu0 0
    %6527 = vmatpush1.bf16.msra.mxu0 %v6486
    %6528 = vmatprep.subr.bf16.mxu0 0
    %6529 = vmatpush1.bf16.msra.mxu0 %v6487
    %6530 = vmatprep.subr.bf16.mxu0 0
    %6531 = vmatpush1.bf16.msra.mxu0 %v6488
    %6532 = vmatprep.subr.bf16.mxu0 0
    %6533 = vmatpush1.bf16.msra.mxu0 %v6489
    %6534 = vmatprep.subr.bf16.mxu0 0
    %6535 = vmatpush1.bf16.msra.mxu0 %v6490
    %6536 = vmatprep.subr.bf16.mxu0 0
    %6537 = vmatpush1.bf16.msra.mxu0 %v6491
    %6538 = vmatprep.subr.bf16.mxu0 0
    %6539 = vmatpush1.bf16.msra.mxu0 %v6492
    %6540 = vmatprep.subr.bf16.mxu0 0
    %6541 = vmatpush1.bf16.msra.mxu0 %v6493
    %6542 = vmatprep.mubr.bf16.mxu0 %v6374
    %6543 = vmatmul.mubr.bf16.gmra.mrb[0].mxu0 %v6373
    %v6544 = vpop.f32.mrb[0].mxu0
    %v6545 = vadd.f32 %v6412, %v6544
    %v6546 = vpop.f32.mrb[0].mxu0
    %v6547 = vpop.f32.mrb[0].mxu0
    %v6548 = vpop.f32.mrb[0].mxu0
    %6549 = vdwg.mxu0
    %6550 = vst [vmem:[#allocation8] sm:$0x3] %v6545
    // Predicated region
    $region58: #{tpu_custom_call.1} parent=1 // pred_check
      _
    $region59: #{tpu_custom_call.1} parent=1 // pred_check_branch
      %6552 = sbr.rel (0) target = $region61
    $region60: #{tpu_custom_call.1} parent=1 // pred_region
      %s6554 = ssub.s32 32, 32
      %6555 = vsyncadd [#allocation4], %s6554
      %s6557 = sshll.u32 [#allocation8], 4
      %s6558 = int_to_ptr.vmem [resolvable:$true] %s6557
      %6560 = dma.vmem_to_hbm [thread:$0]  %s6558, 32, %s11, [#allocation4]
    $region61: #{tpu_custom_call.1} parent=1 // pred_fallthru
      _
    // Predicated region
    $region62: #{tpu_custom_call.1} parent=1 // pred_check
      _
    $region63: #{tpu_custom_call.1} parent=1 // pred_check_branch
      %6562 = sbr.rel (0) target = $region65
    $region64: #{tpu_custom_call.1} parent=1 // pred_region
      %6563 = dma.done [#allocation4], 32
    $region65: #{tpu_custom_call.1} parent=1 // pred_fallthru
      _
    %6564 = vsyncpa [#allocation3], 1
    %6565 = vsyncpa [#allocation6], 1
    %6566 = vsyncpa [#allocation4], 1

</llo_original>
